<compile_context>
chip_gen: v7x
topology: tpu7x:2x2x1
jax: 0.10.0
libtpu: 0.0.40
codegen_flags: <defaults>
</compile_context>

<pallas_src>
import functools

import jax
import jax.numpy as jnp
from jax.experimental import pallas as pl
from jax.experimental.pallas import tpu as pltpu


def _sae_kernel(x_ref,
                w1, b1, w2, b2, w3, b3, w4, b4, wo, bo,
                dw1, db1, dw2, db2, dwo, dbo,
                lamb_ref,
                recon_ref, latent_sparse_ref,
                *, tanh_dtype):
    f32 = jnp.float32
    bf16 = jnp.bfloat16

    def linear(h, w_ref, b_ref):
        # bf16 operands, f32 accumulation on the MXU, f32 bias add.
        return jnp.dot(h.astype(bf16), w_ref[...],
                       preferred_element_type=f32) + b_ref[...]

    def act(z):
        # tanh on the EUP; bf16 where the chip has a bf16 EUP path (v6e/v7x)
        # -> ~2x transcendental throughput and no separate f32->bf16 cast
        # before the next matmul.  f32 on v5e (no bf16 VPU/EUP).
        return jnp.tanh(z.astype(tanh_dtype))

    # ---------------- encoder ----------------
    h = act(linear(x_ref[...], w1, b1))
    h = act(linear(h, w2, b2))
    h = act(linear(h, w3, b3))
    h = act(linear(h, w4, b4))
    latent = linear(h, wo, bo)                       # [TB, input_dim], f32

    # ---------------- soft_thres (complex soft thresholding) ----------------
    lamb = jnp.abs(lamb_ref[0])
    half = latent.shape[1] // 2
    re = latent[:, :half]
    im = latent[:, half:]
    mag2 = re * re + im * im
    inv_mag = jax.lax.rsqrt(jnp.where(mag2 > 0.0, mag2, 1.0))   # EUP rsqrt
    factor = jnp.maximum(1.0 - lamb * inv_mag, 0.0)             # relu(|z|-l)/|z|
    factor = jnp.where(mag2 > 0.0, factor, 0.0)                 # torch nan -> 0
    latent_sparse_ref[:, :half] = re * factor
    latent_sparse_ref[:, half:] = im * factor

    # ---------------- decoder ----------------
    # defc1 as ONE full-K matmul: read the just-written latent_sparse tile
    # back out of VMEM (cheap vld), cast once to bf16, single dot.  Fills the
    # 256-wide MXU on v6e/v7x instead of two half-utilized K=half pushes.
    ls_bf16 = latent_sparse_ref[...].astype(bf16)
    d = act(jnp.dot(ls_bf16, dw1[...], preferred_element_type=f32) + db1[...])
    d = act(linear(d, dw2, db2))
    recon_ref[...] = linear(d, dwo, dbo)             # [TB, output_dim], f32


def _default_tanh_dtype():
    # bf16 tanh only where a bf16 EUP exists (v6e/v7x); f32 elsewhere (v5e..).
    try:
        kind = jax.devices()[0].device_kind.lower()
    except Exception:
        return jnp.float32
    return jnp.bfloat16 if ("v6" in kind or "v7" in kind) else jnp.float32


def sparse_autoencoder2_forward(x, params, *, tile_batch=256, tanh_dtype=None):
    """params: 8 x (W_t[in,out] bf16, b[1,out] f32) followed by lamb[(1,)] f32."""
    (w1, b1, w2, b2, w3, b3, w4, b4, wo, bo,
     dw1, db1, dw2, db2, dwo, dbo, lamb) = params

    batch, input_dim = x.shape
    output_dim = dwo.shape[1]

    if tanh_dtype is None:
        tanh_dtype = _default_tanh_dtype()

    # Tile selection: large tiles amortize per-step overhead and weight reuse,
    # but small batches get a single pad-free tile (multiple of 8) instead of
    # padding dead rows (dead MXU/EUP work + wasted output DMA).
    tb = int(tile_batch)
    rounded = ((batch + 7) // 8) * 8
    if rounded <= tb:
        tb = rounded
    grid_b = pl.cdiv(batch, tb)
    padded = grid_b * tb
    if padded != batch:
        # rows are independent -> zero padding is safe; sliced off afterwards.
        x = jnp.pad(x, ((0, padded - batch), (0, 0)))

    weights = (w1, b1, w2, b2, w3, b3, w4, b4, wo, bo,
               dw1, db1, dw2, db2, dwo, dbo)

    # Activations: tiled along the batch (double-buffered by the pipeline).
    # Weights/biases: constant block index + Buffered(1) -> fetched once,
    # single VMEM copy, resident across all grid steps.
    resident = pl.Buffered(1)
    in_specs = ([pl.BlockSpec((tb, input_dim), lambda i: (i, 0))]
                + [pl.BlockSpec(a.shape, lambda i: (0, 0),
                                pipeline_mode=resident) for a in weights]
                + [pl.BlockSpec(memory_space=pltpu.MemorySpace.SMEM)])

    out_specs = [
        pl.BlockSpec((tb, output_dim), lambda i: (i, 0)),
        pl.BlockSpec((tb, input_dim), lambda i: (i, 0)),
    ]
    out_shape = (
        jax.ShapeDtypeStruct((padded, output_dim), jnp.float32),
        jax.ShapeDtypeStruct((padded, input_dim), jnp.float32),
    )

    # VMEM budget: single-buffered weights + 2x (double-buffered) streamed
    # f32 tiles + margin.  Only raise the scoped limit if we actually need
    # more than the 32 MiB default; never claim all of v7x's 64 MiB.
    weight_bytes = sum(int(a.size) * a.dtype.itemsize for a in weights)
    stream_bytes = 2 * 4 * tb * (input_dim + output_dim + input_dim)
    need = weight_bytes + stream_bytes + (4 << 20)
    vmem_limit = None if need <= (32 << 20) else min(need, 48 << 20)

    kernel = functools.partial(_sae_kernel, tanh_dtype=tanh_dtype)

    recon, latent_sparse = pl.pallas_call(
        kernel,
        grid=(grid_b,),
        in_specs=in_specs,
        out_specs=out_specs,
        out_shape=out_shape,
        compiler_params=pltpu.CompilerParams(
            dimension_semantics=("parallel",),      # megacore on v7x
            vmem_limit_bytes=vmem_limit),
    )(x, *weights, lamb)

    if padded != batch:
        recon = recon[:batch]
        latent_sparse = latent_sparse[:batch]
    return recon, latent_sparse


def init_params(key, input_dim, hidden_dim, output_dim=None):
    """Deterministic init mimicking PyTorch nn.Linear default (U[-k, k]).

    Weights are stored pre-transposed [in, out] in bf16; biases [1, out] f32.
    """
    if output_dim is None:
        output_dim = input_dim

    layer_dims = [
        (input_dim, hidden_dim),   # enfc1
        (hidden_dim, hidden_dim),  # enfc2
        (hidden_dim, hidden_dim),  # enfc3
        (hidden_dim, hidden_dim),  # enfc4
        (hidden_dim, input_dim),   # enfco
        (input_dim, hidden_dim),   # defc1
        (hidden_dim, hidden_dim),  # defc2
        (hidden_dim, output_dim),  # defco
    ]

    params = []
    for fan_in, fan_out in layer_dims:
        key, kw, kb = jax.random.split(key, 3)
        k = 1.0 / jnp.sqrt(jnp.float32(fan_in))
        w_t = jax.random.uniform(kw, (fan_in, fan_out), jnp.float32, -k, k)
        b = jax.random.uniform(kb, (1, fan_out), jnp.float32, -k, k)
        params += [w_t.astype(jnp.bfloat16), b]

    lamb = jnp.full((1,), 0.01, dtype=jnp.float32)
    params.append(lamb)
    return tuple(params)


if __name__ == "__main__":
    key = jax.random.PRNGKey(0)

    # Lane-aligned demo dims: input_dim/hidden_dim multiples of 128 so that
    # half = input_dim // 2 is also lane-aligned; batch=200 exercises the
    # small-batch pad-free tile selection (tb rounds to 200, one grid step).
    batch = 200
    input_dim = 256     # must be even for the complex split in soft_thres
    hidden_dim = 256

    key, kx, kp = jax.random.split(key, 3)
    x = jax.random.normal(kx, (batch, input_dim), dtype=jnp.float32)
    params = init_params(kp, input_dim, hidden_dim)

    recon, latent_sparse = sparse_autoencoder2_forward(x, params)
    jax.block_until_ready((recon, latent_sparse))

    assert recon.shape == (batch, input_dim)
    assert latent_sparse.shape == (batch, input_dim)
    assert bool(jnp.all(jnp.isfinite(recon)))
    assert bool(jnp.all(jnp.isfinite(latent_sparse)))

    print("KERNEL_OK")
</pallas_src>

<mosaic_0001>
module attributes {stable_mosaic.version = 11 : i64} {
  func.func @_sae_kernel(%arg0: i32, %arg1: memref<200x256xf32, #tpu.memory_space<vmem>>, %arg2: memref<256x256xbf16, #tpu.memory_space<vmem>>, %arg3: memref<1x256xf32, #tpu.memory_space<vmem>>, %arg4: memref<256x256xbf16, #tpu.memory_space<vmem>>, %arg5: memref<1x256xf32, #tpu.memory_space<vmem>>, %arg6: memref<256x256xbf16, #tpu.memory_space<vmem>>, %arg7: memref<1x256xf32, #tpu.memory_space<vmem>>, %arg8: memref<256x256xbf16, #tpu.memory_space<vmem>>, %arg9: memref<1x256xf32, #tpu.memory_space<vmem>>, %arg10: memref<256x256xbf16, #tpu.memory_space<vmem>>, %arg11: memref<1x256xf32, #tpu.memory_space<vmem>>, %arg12: memref<256x256xbf16, #tpu.memory_space<vmem>>, %arg13: memref<1x256xf32, #tpu.memory_space<vmem>>, %arg14: memref<256x256xbf16, #tpu.memory_space<vmem>>, %arg15: memref<1x256xf32, #tpu.memory_space<vmem>>, %arg16: memref<256x256xbf16, #tpu.memory_space<vmem>>, %arg17: memref<1x256xf32, #tpu.memory_space<vmem>>, %arg18: memref<1xf32, #tpu.memory_space<smem>>, %arg19: memref<200x256xf32, #tpu.memory_space<vmem>>, %arg20: memref<200x256xf32, #tpu.memory_space<vmem>>) attributes {dimension_semantics = [#tpu.dimension_semantics<parallel>], iteration_bounds = array<i64: 1>, scalar_prefetch = 0 : i64, scratch_operands = 0 : i64, tpu.core_type = #tpu.core_type<tc>, window_params = [{transform_indices = @transform_0, window_bounds = array<i64: 200, 256>}, {pipeline_mode = #tpu.pipeline_mode<synchronous>, transform_indices = @transform_1, window_bounds = array<i64: 256, 256>}, {pipeline_mode = #tpu.pipeline_mode<synchronous>, transform_indices = @transform_2, window_bounds = array<i64: 1, 256>}, {pipeline_mode = #tpu.pipeline_mode<synchronous>, transform_indices = @transform_3, window_bounds = array<i64: 256, 256>}, {pipeline_mode = #tpu.pipeline_mode<synchronous>, transform_indices = @transform_4, window_bounds = array<i64: 1, 256>}, {pipeline_mode = #tpu.pipeline_mode<synchronous>, transform_indices = @transform_5, window_bounds = array<i64: 256, 256>}, {pipeline_mode = #tpu.pipeline_mode<synchronous>, transform_indices = @transform_6, window_bounds = array<i64: 1, 256>}, {pipeline_mode = #tpu.pipeline_mode<synchronous>, transform_indices = @transform_7, window_bounds = array<i64: 256, 256>}, {pipeline_mode = #tpu.pipeline_mode<synchronous>, transform_indices = @transform_8, window_bounds = array<i64: 1, 256>}, {pipeline_mode = #tpu.pipeline_mode<synchronous>, transform_indices = @transform_9, window_bounds = array<i64: 256, 256>}, {pipeline_mode = #tpu.pipeline_mode<synchronous>, transform_indices = @transform_10, window_bounds = array<i64: 1, 256>}, {pipeline_mode = #tpu.pipeline_mode<synchronous>, transform_indices = @transform_11, window_bounds = array<i64: 256, 256>}, {pipeline_mode = #tpu.pipeline_mode<synchronous>, transform_indices = @transform_12, window_bounds = array<i64: 1, 256>}, {pipeline_mode = #tpu.pipeline_mode<synchronous>, transform_indices = @transform_13, window_bounds = array<i64: 256, 256>}, {pipeline_mode = #tpu.pipeline_mode<synchronous>, transform_indices = @transform_14, window_bounds = array<i64: 1, 256>}, {pipeline_mode = #tpu.pipeline_mode<synchronous>, transform_indices = @transform_15, window_bounds = array<i64: 256, 256>}, {pipeline_mode = #tpu.pipeline_mode<synchronous>, transform_indices = @transform_16, window_bounds = array<i64: 1, 256>}, {transform_indices = @transform_17, window_bounds = array<i64: 1>}, {transform_indices = @transform_18, window_bounds = array<i64: 200, 256>}, {transform_indices = @transform_19, window_bounds = array<i64: 200, 256>}]} {
    %c0 = arith.constant 0 : index
    %c0_0 = arith.constant 0 : index
    %0 = vector.load %arg1[%c0, %c0_0] : memref<200x256xf32, #tpu.memory_space<vmem>>, vector<200x256xf32>
    %1 = arith.truncf %0 : vector<200x256xf32> to vector<200x256xbf16>
    %c0_1 = arith.constant 0 : index
    %c0_2 = arith.constant 0 : index
    %2 = vector.load %arg2[%c0_1, %c0_2] : memref<256x256xbf16, #tpu.memory_space<vmem>>, vector<256x256xbf16>
    %cst = arith.constant dense<0.000000e+00> : vector<200x256xf32>
    %3 = tpu.matmul %1, %2, %cst {dimension_numbers = #tpu.dot_dimension_numbers<[1], [0], [0], [1], [0, 0, 1, 1], [], []>} : vector<200x256xbf16>, vector<256x256xbf16>, vector<200x256xf32> -> vector<200x256xf32>
    %c0_3 = arith.constant 0 : index
    %c0_4 = arith.constant 0 : index
    %4 = vector.load %arg3[%c0_3, %c0_4] : memref<1x256xf32, #tpu.memory_space<vmem>>, vector<1x256xf32>
    %5 = vector.broadcast %4 : vector<1x256xf32> to vector<200x256xf32>
    %6 = arith.addf %3, %5 : vector<200x256xf32>
    %7 = math.tanh %6 : vector<200x256xf32>
    %8 = arith.truncf %7 : vector<200x256xf32> to vector<200x256xbf16>
    %c0_5 = arith.constant 0 : index
    %c0_6 = arith.constant 0 : index
    %9 = vector.load %arg4[%c0_5, %c0_6] : memref<256x256xbf16, #tpu.memory_space<vmem>>, vector<256x256xbf16>
    %cst_7 = arith.constant dense<0.000000e+00> : vector<200x256xf32>
    %10 = tpu.matmul %8, %9, %cst_7 {dimension_numbers = #tpu.dot_dimension_numbers<[1], [0], [0], [1], [0, 0, 1, 1], [], []>} : vector<200x256xbf16>, vector<256x256xbf16>, vector<200x256xf32> -> vector<200x256xf32>
    %c0_8 = arith.constant 0 : index
    %c0_9 = arith.constant 0 : index
    %11 = vector.load %arg5[%c0_8, %c0_9] : memref<1x256xf32, #tpu.memory_space<vmem>>, vector<1x256xf32>
    %12 = vector.broadcast %11 : vector<1x256xf32> to vector<200x256xf32>
    %13 = arith.addf %10, %12 : vector<200x256xf32>
    %14 = math.tanh %13 : vector<200x256xf32>
    %15 = arith.truncf %14 : vector<200x256xf32> to vector<200x256xbf16>
    %c0_10 = arith.constant 0 : index
    %c0_11 = arith.constant 0 : index
    %16 = vector.load %arg6[%c0_10, %c0_11] : memref<256x256xbf16, #tpu.memory_space<vmem>>, vector<256x256xbf16>
    %cst_12 = arith.constant dense<0.000000e+00> : vector<200x256xf32>
    %17 = tpu.matmul %15, %16, %cst_12 {dimension_numbers = #tpu.dot_dimension_numbers<[1], [0], [0], [1], [0, 0, 1, 1], [], []>} : vector<200x256xbf16>, vector<256x256xbf16>, vector<200x256xf32> -> vector<200x256xf32>
    %c0_13 = arith.constant 0 : index
    %c0_14 = arith.constant 0 : index
    %18 = vector.load %arg7[%c0_13, %c0_14] : memref<1x256xf32, #tpu.memory_space<vmem>>, vector<1x256xf32>
    %19 = vector.broadcast %18 : vector<1x256xf32> to vector<200x256xf32>
    %20 = arith.addf %17, %19 : vector<200x256xf32>
    %21 = math.tanh %20 : vector<200x256xf32>
    %22 = arith.truncf %21 : vector<200x256xf32> to vector<200x256xbf16>
    %c0_15 = arith.constant 0 : index
    %c0_16 = arith.constant 0 : index
    %23 = vector.load %arg8[%c0_15, %c0_16] : memref<256x256xbf16, #tpu.memory_space<vmem>>, vector<256x256xbf16>
    %cst_17 = arith.constant dense<0.000000e+00> : vector<200x256xf32>
    %24 = tpu.matmul %22, %23, %cst_17 {dimension_numbers = #tpu.dot_dimension_numbers<[1], [0], [0], [1], [0, 0, 1, 1], [], []>} : vector<200x256xbf16>, vector<256x256xbf16>, vector<200x256xf32> -> vector<200x256xf32>
    %c0_18 = arith.constant 0 : index
    %c0_19 = arith.constant 0 : index
    %25 = vector.load %arg9[%c0_18, %c0_19] : memref<1x256xf32, #tpu.memory_space<vmem>>, vector<1x256xf32>
    %26 = vector.broadcast %25 : vector<1x256xf32> to vector<200x256xf32>
    %27 = arith.addf %24, %26 : vector<200x256xf32>
    %28 = math.tanh %27 : vector<200x256xf32>
    %29 = arith.truncf %28 : vector<200x256xf32> to vector<200x256xbf16>
    %c0_20 = arith.constant 0 : index
    %c0_21 = arith.constant 0 : index
    %30 = vector.load %arg10[%c0_20, %c0_21] : memref<256x256xbf16, #tpu.memory_space<vmem>>, vector<256x256xbf16>
    %cst_22 = arith.constant dense<0.000000e+00> : vector<200x256xf32>
    %31 = tpu.matmul %29, %30, %cst_22 {dimension_numbers = #tpu.dot_dimension_numbers<[1], [0], [0], [1], [0, 0, 1, 1], [], []>} : vector<200x256xbf16>, vector<256x256xbf16>, vector<200x256xf32> -> vector<200x256xf32>
    %c0_23 = arith.constant 0 : index
    %c0_24 = arith.constant 0 : index
    %32 = vector.load %arg11[%c0_23, %c0_24] : memref<1x256xf32, #tpu.memory_space<vmem>>, vector<1x256xf32>
    %33 = vector.broadcast %32 : vector<1x256xf32> to vector<200x256xf32>
    %34 = arith.addf %31, %33 : vector<200x256xf32>
    %c0_25 = arith.constant 0 : index
    %35 = memref.load %arg18[%c0_25] : memref<1xf32, #tpu.memory_space<smem>>
    %36 = math.absf %35 : f32
    %37 = vector.extract_strided_slice %34 {offsets = [0, 0], sizes = [200, 128], strides = [1, 1]} : vector<200x256xf32> to vector<200x128xf32>
    %38 = vector.extract_strided_slice %34 {offsets = [0, 128], sizes = [200, 128], strides = [1, 1]} : vector<200x256xf32> to vector<200x128xf32>
    %39 = arith.mulf %37, %37 : vector<200x128xf32>
    %40 = arith.mulf %38, %38 : vector<200x128xf32>
    %41 = arith.addf %39, %40 : vector<200x128xf32>
    %cst_26 = arith.constant 0.000000e+00 : f32
    %42 = vector.broadcast %cst_26 : f32 to vector<200x128xf32>
    %43 = arith.cmpf ogt, %41, %42 : vector<200x128xf32>
    %cst_27 = arith.constant 1.000000e+00 : f32
    %44 = vector.broadcast %cst_27 : f32 to vector<200x128xf32>
    %45 = arith.select %43, %41, %44 : vector<200x128xi1>, vector<200x128xf32>
    %46 = math.rsqrt %45 : vector<200x128xf32>
    %47 = vector.broadcast %36 : f32 to vector<200x128xf32>
    %48 = arith.mulf %47, %46 : vector<200x128xf32>
    %cst_28 = arith.constant 1.000000e+00 : f32
    %49 = vector.broadcast %cst_28 : f32 to vector<200x128xf32>
    %50 = arith.subf %49, %48 : vector<200x128xf32>
    %cst_29 = arith.constant 0.000000e+00 : f32
    %51 = vector.broadcast %cst_29 : f32 to vector<200x128xf32>
    %52 = arith.maximumf %50, %51 : vector<200x128xf32>
    %cst_30 = arith.constant 0.000000e+00 : f32
    %53 = vector.broadcast %cst_30 : f32 to vector<200x128xf32>
    %54 = arith.cmpf ogt, %41, %53 : vector<200x128xf32>
    %cst_31 = arith.constant 0.000000e+00 : f32
    %55 = vector.broadcast %cst_31 : f32 to vector<200x128xf32>
    %56 = arith.select %54, %52, %55 : vector<200x128xi1>, vector<200x128xf32>
    %57 = arith.mulf %37, %56 : vector<200x128xf32>
    %c0_32 = arith.constant 0 : index
    %c0_33 = arith.constant 0 : index
    %58 = vector.load %arg20[%c0_32, %c0_33] : memref<200x256xf32, #tpu.memory_space<vmem>>, vector<200x128xf32>
    tpu.vector_store %arg20[%c0_32, %c0_33], %57 {strides = array<i32>} : memref<200x256xf32, #tpu.memory_space<vmem>>, vector<200x128xf32>,
    %59 = arith.mulf %38, %56 : vector<200x128xf32>
    %c0_34 = arith.constant 0 : index
    %c128 = arith.constant 128 : index
    %60 = vector.load %arg20[%c0_34, %c128] : memref<200x256xf32, #tpu.memory_space<vmem>>, vector<200x128xf32>
    tpu.vector_store %arg20[%c0_34, %c128], %59 {strides = array<i32>} : memref<200x256xf32, #tpu.memory_space<vmem>>, vector<200x128xf32>,
    %c0_35 = arith.constant 0 : index
    %c0_36 = arith.constant 0 : index
    %61 = vector.load %arg20[%c0_35, %c0_36] : memref<200x256xf32, #tpu.memory_space<vmem>>, vector<200x256xf32>
    %62 = arith.truncf %61 : vector<200x256xf32> to vector<200x256xbf16>
    %c0_37 = arith.constant 0 : index
    %c0_38 = arith.constant 0 : index
    %63 = vector.load %arg12[%c0_37, %c0_38] : memref<256x256xbf16, #tpu.memory_space<vmem>>, vector<256x256xbf16>
    %cst_39 = arith.constant dense<0.000000e+00> : vector<200x256xf32>
    %64 = tpu.matmul %62, %63, %cst_39 {dimension_numbers = #tpu.dot_dimension_numbers<[1], [0], [0], [1], [0, 0, 1, 1], [], []>} : vector<200x256xbf16>, vector<256x256xbf16>, vector<200x256xf32> -> vector<200x256xf32>
    %c0_40 = arith.constant 0 : index
    %c0_41 = arith.constant 0 : index
    %65 = vector.load %arg13[%c0_40, %c0_41] : memref<1x256xf32, #tpu.memory_space<vmem>>, vector<1x256xf32>
    %66 = vector.broadcast %65 : vector<1x256xf32> to vector<200x256xf32>
    %67 = arith.addf %64, %66 : vector<200x256xf32>
    %68 = math.tanh %67 : vector<200x256xf32>
    %69 = arith.truncf %68 : vector<200x256xf32> to vector<200x256xbf16>
    %c0_42 = arith.constant 0 : index
    %c0_43 = arith.constant 0 : index
    %70 = vector.load %arg14[%c0_42, %c0_43] : memref<256x256xbf16, #tpu.memory_space<vmem>>, vector<256x256xbf16>
    %cst_44 = arith.constant dense<0.000000e+00> : vector<200x256xf32>
    %71 = tpu.matmul %69, %70, %cst_44 {dimension_numbers = #tpu.dot_dimension_numbers<[1], [0], [0], [1], [0, 0, 1, 1], [], []>} : vector<200x256xbf16>, vector<256x256xbf16>, vector<200x256xf32> -> vector<200x256xf32>
    %c0_45 = arith.constant 0 : index
    %c0_46 = arith.constant 0 : index
    %72 = vector.load %arg15[%c0_45, %c0_46] : memref<1x256xf32, #tpu.memory_space<vmem>>, vector<1x256xf32>
    %73 = vector.broadcast %72 : vector<1x256xf32> to vector<200x256xf32>
    %74 = arith.addf %71, %73 : vector<200x256xf32>
    %75 = math.tanh %74 : vector<200x256xf32>
    %76 = arith.truncf %75 : vector<200x256xf32> to vector<200x256xbf16>
    %c0_47 = arith.constant 0 : index
    %c0_48 = arith.constant 0 : index
    %77 = vector.load %arg16[%c0_47, %c0_48] : memref<256x256xbf16, #tpu.memory_space<vmem>>, vector<256x256xbf16>
    %cst_49 = arith.constant dense<0.000000e+00> : vector<200x256xf32>
    %78 = tpu.matmul %76, %77, %cst_49 {dimension_numbers = #tpu.dot_dimension_numbers<[1], [0], [0], [1], [0, 0, 1, 1], [], []>} : vector<200x256xbf16>, vector<256x256xbf16>, vector<200x256xf32> -> vector<200x256xf32>
    %c0_50 = arith.constant 0 : index
    %c0_51 = arith.constant 0 : index
    %79 = vector.load %arg17[%c0_50, %c0_51] : memref<1x256xf32, #tpu.memory_space<vmem>>, vector<1x256xf32>
    %80 = vector.broadcast %79 : vector<1x256xf32> to vector<200x256xf32>
    %81 = arith.addf %78, %80 : vector<200x256xf32>
    %c0_52 = arith.constant 0 : index
    %c0_53 = arith.constant 0 : index
    %82 = vector.load %arg19[%c0_52, %c0_53] : memref<200x256xf32, #tpu.memory_space<vmem>>, vector<200x256xf32>
    tpu.vector_store %arg19[%c0_52, %c0_53], %81 {strides = array<i32>} : memref<200x256xf32, #tpu.memory_space<vmem>>, vector<200x256xf32>,
    return
  }
  func.func @transform_0(%arg0: i32) -> (i32, i32) {
    %c0_i32 = arith.constant 0 : i32
    %c0_i32_0 = arith.constant 0 : i32
    return %arg0, %c0_i32 : i32, i32
  }
  func.func @transform_1(%arg0: i32) -> (i32, i32) {
    %c0_i32 = arith.constant 0 : i32
    %c0_i32_0 = arith.constant 0 : i32
    %c0_i32_1 = arith.constant 0 : i32
    return %c0_i32, %c0_i32_0 : i32, i32
  }
  func.func @transform_2(%arg0: i32) -> (i32, i32) {
    %c0_i32 = arith.constant 0 : i32
    %c0_i32_0 = arith.constant 0 : i32
    %c0_i32_1 = arith.constant 0 : i32
    return %c0_i32, %c0_i32_0 : i32, i32
  }
  func.func @transform_3(%arg0: i32) -> (i32, i32) {
    %c0_i32 = arith.constant 0 : i32
    %c0_i32_0 = arith.constant 0 : i32
    %c0_i32_1 = arith.constant 0 : i32
    return %c0_i32, %c0_i32_0 : i32, i32
  }
  func.func @transform_4(%arg0: i32) -> (i32, i32) {
    %c0_i32 = arith.constant 0 : i32
    %c0_i32_0 = arith.constant 0 : i32
    %c0_i32_1 = arith.constant 0 : i32
    return %c0_i32, %c0_i32_0 : i32, i32
  }
  func.func @transform_5(%arg0: i32) -> (i32, i32) {
    %c0_i32 = arith.constant 0 : i32
    %c0_i32_0 = arith.constant 0 : i32
    %c0_i32_1 = arith.constant 0 : i32
    return %c0_i32, %c0_i32_0 : i32, i32
  }
  func.func @transform_6(%arg0: i32) -> (i32, i32) {
    %c0_i32 = arith.constant 0 : i32
    %c0_i32_0 = arith.constant 0 : i32
    %c0_i32_1 = arith.constant 0 : i32
    return %c0_i32, %c0_i32_0 : i32, i32
  }
  func.func @transform_7(%arg0: i32) -> (i32, i32) {
    %c0_i32 = arith.constant 0 : i32
    %c0_i32_0 = arith.constant 0 : i32
    %c0_i32_1 = arith.constant 0 : i32
    return %c0_i32, %c0_i32_0 : i32, i32
  }
  func.func @transform_8(%arg0: i32) -> (i32, i32) {
    %c0_i32 = arith.constant 0 : i32
    %c0_i32_0 = arith.constant 0 : i32
    %c0_i32_1 = arith.constant 0 : i32
    return %c0_i32, %c0_i32_0 : i32, i32
  }
  func.func @transform_9(%arg0: i32) -> (i32, i32) {
    %c0_i32 = arith.constant 0 : i32
    %c0_i32_0 = arith.constant 0 : i32
    %c0_i32_1 = arith.constant 0 : i32
    return %c0_i32, %c0_i32_0 : i32, i32
  }
  func.func @transform_10(%arg0: i32) -> (i32, i32) {
    %c0_i32 = arith.constant 0 : i32
    %c0_i32_0 = arith.constant 0 : i32
    %c0_i32_1 = arith.constant 0 : i32
    return %c0_i32, %c0_i32_0 : i32, i32
  }
  func.func @transform_11(%arg0: i32) -> (i32, i32) {
    %c0_i32 = arith.constant 0 : i32
    %c0_i32_0 = arith.constant 0 : i32
    %c0_i32_1 = arith.constant 0 : i32
    return %c0_i32, %c0_i32_0 : i32, i32
  }
  func.func @transform_12(%arg0: i32) -> (i32, i32) {
    %c0_i32 = arith.constant 0 : i32
    %c0_i32_0 = arith.constant 0 : i32
    %c0_i32_1 = arith.constant 0 : i32
    return %c0_i32, %c0_i32_0 : i32, i32
  }
  func.func @transform_13(%arg0: i32) -> (i32, i32) {
    %c0_i32 = arith.constant 0 : i32
    %c0_i32_0 = arith.constant 0 : i32
    %c0_i32_1 = arith.constant 0 : i32
    return %c0_i32, %c0_i32_0 : i32, i32
  }
  func.func @transform_14(%arg0: i32) -> (i32, i32) {
    %c0_i32 = arith.constant 0 : i32
    %c0_i32_0 = arith.constant 0 : i32
    %c0_i32_1 = arith.constant 0 : i32
    return %c0_i32, %c0_i32_0 : i32, i32
  }
  func.func @transform_15(%arg0: i32) -> (i32, i32) {
    %c0_i32 = arith.constant 0 : i32
    %c0_i32_0 = arith.constant 0 : i32
    %c0_i32_1 = arith.constant 0 : i32
    return %c0_i32, %c0_i32_0 : i32, i32
  }
  func.func @transform_16(%arg0: i32) -> (i32, i32) {
    %c0_i32 = arith.constant 0 : i32
    %c0_i32_0 = arith.constant 0 : i32
    %c0_i32_1 = arith.constant 0 : i32
    return %c0_i32, %c0_i32_0 : i32, i32
  }
  func.func @transform_17(%arg0: i32) -> i32 {
    %c0_i32 = arith.constant 0 : i32
    %c0_i32_0 = arith.constant 0 : i32
    return %c0_i32 : i32
  }
  func.func @transform_18(%arg0: i32) -> (i32, i32) {
    %c0_i32 = arith.constant 0 : i32
    %c0_i32_0 = arith.constant 0 : i32
    return %arg0, %c0_i32 : i32, i32
  }
  func.func @transform_19(%arg0: i32) -> (i32, i32) {
    %c0_i32 = arith.constant 0 : i32
    %c0_i32_0 = arith.constant 0 : i32
    return %arg0, %c0_i32 : i32, i32
  }
}

</mosaic_0001>

<llo_original>
// kernel: tpu_custom_call.1
$region0: #{tpu_custom_call.1}
  #allocation0 [shape = 'u32[]', space=smem, size = 0x4, offset = 0x4, fixed_abs, tag = 'smem constant byte address 0x4 - core index']
  #allocation1 [shape = 'u32[144,128]{1,0:T(1,128)}', space=vmem, size = 0x12000, scoped, tag = 'internal scratch']
  #allocation2 [shape = 'f32[1]{0:T(128)S(6)}', space=smem, size = 0x200, scoped, tag = 'scoped memory for tpu_custom_call.1']
  %s0 = inlined_call_operand.hbm [shape: f32[200,256], index: 0, kind: input, shape index: {}]
  %s1 = inlined_call_operand.hbm [shape: bf16[256,256], index: 1, kind: input, shape index: {}]
  %s2 = inlined_call_operand.vmem [shape: f32[1,256], index: 2, kind: input, shape index: {}]
  %s3 = inlined_call_operand.hbm [shape: bf16[256,256], index: 3, kind: input, shape index: {}]
  %s4 = inlined_call_operand.vmem [shape: f32[1,256], index: 4, kind: input, shape index: {}]
  %s5 = inlined_call_operand.hbm [shape: bf16[256,256], index: 5, kind: input, shape index: {}]
  %s6 = inlined_call_operand.vmem [shape: f32[1,256], index: 6, kind: input, shape index: {}]
  %s7 = inlined_call_operand.hbm [shape: bf16[256,256], index: 7, kind: input, shape index: {}]
  %s8 = inlined_call_operand.vmem [shape: f32[1,256], index: 8, kind: input, shape index: {}]
  %s9 = inlined_call_operand.hbm [shape: bf16[256,256], index: 9, kind: input, shape index: {}]
  %s10 = inlined_call_operand.vmem [shape: f32[1,256], index: 10, kind: input, shape index: {}]
  %s11 = inlined_call_operand.hbm [shape: bf16[256,256], index: 11, kind: input, shape index: {}]
  %s12 = inlined_call_operand.vmem [shape: f32[1,256], index: 12, kind: input, shape index: {}]
  %s13 = inlined_call_operand.hbm [shape: bf16[256,256], index: 13, kind: input, shape index: {}]
  %s14 = inlined_call_operand.vmem [shape: f32[1,256], index: 14, kind: input, shape index: {}]
  %s15 = inlined_call_operand.hbm [shape: bf16[256,256], index: 15, kind: input, shape index: {}]
  %s16 = inlined_call_operand.vmem [shape: f32[1,256], index: 16, kind: input, shape index: {}]
  %s17 = inlined_call_operand.<no memory space> [shape: f32[1], index: 17, kind: input, shape index: {}]
  %s18 = inlined_call_operand.hbm [shape: f32[200,256], index: 18, kind: output, shape index: {0}]
  %s19 = inlined_call_operand.hbm [shape: f32[200,256], index: 19, kind: output, shape index: {1}]
  %20 = xla_tuple %s18, %s19
  %s21 = sld [smem:[#allocation0]]
  $region126: #{tpu_custom_call.1} parent=0
    _
  %s23 = ssub.s32 1, %s21
  %s24 = scalar_select 0, %s23, %s21
  %25 = sst [smem:[#allocation2]] %s17
  $region1: #{tpu_custom_call.1} parent=0
    #allocation3 [shape = 'u8[204800]{0}', space=vmem, size = 0x32000, scoped, tag = 'input window, operand 0, single buffered']
    #allocation4 [shape = 's32[1]{0}', space=sflag, size = 0x4, scoped, tag = 'scoped memory for tpu_custom_call.1']
    #allocation5 [shape = 's32[1]{0}', space=sflag, size = 0x4, scoped, tag = 'scoped memory for tpu_custom_call.1']
    #allocation6 [shape = 'u8[131072]{0}', space=vmem, size = 0x20000, scoped, tag = 'input window, operand 1, single buffered']
    #allocation7 [shape = 's32[1]{0}', space=sflag, size = 0x4, scoped, tag = 'scoped memory for tpu_custom_call.1']
    #allocation8 [shape = 'u8[131072]{0}', space=vmem, size = 0x20000, scoped, tag = 'input window, operand 3, single buffered']
    #allocation9 [shape = 'u8[131072]{0}', space=vmem, size = 0x20000, scoped, tag = 'input window, operand 5, single buffered']
    #allocation10 [shape = 's32[1]{0}', space=sflag, size = 0x4, scoped, tag = 'scoped memory for tpu_custom_call.1']
    #allocation11 [shape = 'u8[131072]{0}', space=vmem, size = 0x20000, scoped, tag = 'input window, operand 7, single buffered']
    #allocation12 [shape = 'u8[131072]{0}', space=vmem, size = 0x20000, scoped, tag = 'input window, operand 9, single buffered']
    #allocation13 [shape = 's32[1]{0}', space=sflag, size = 0x4, scoped, tag = 'scoped memory for tpu_custom_call.1']
    #allocation14 [shape = 'u8[131072]{0}', space=vmem, size = 0x20000, scoped, tag = 'input window, operand 11, single buffered']
    #allocation15 [shape = 'u8[131072]{0}', space=vmem, size = 0x20000, scoped, tag = 'input window, operand 13, single buffered']
    #allocation16 [shape = 's32[1]{0}', space=sflag, size = 0x4, scoped, tag = 'scoped memory for tpu_custom_call.1']
    #allocation17 [shape = 'u8[131072]{0}', space=vmem, size = 0x20000, scoped, tag = 'input window, operand 15, single buffered']
    #allocation18 [shape = 'u8[204800]{0}', space=vmem, size = 0x32000, scoped, tag = 'output window, operand 0, single buffered']
    #allocation19 [shape = 'u8[204800]{0}', space=vmem, size = 0x32000, scoped, tag = 'output window, operand 1, single buffered']
    #allocation20 [shape = 's32[1]{0}', space=sflag, size = 0x4, scoped, tag = 'scoped memory for tpu_custom_call.1']
    %26 = vsyncpa [#allocation4], 0
    %27 = vsyncpa [#allocation7], 0
    %28 = vsyncpa [#allocation10], 0
    %29 = vsyncpa [#allocation13], 0
    %30 = vsyncpa [#allocation16], 0
    %31 = vsyncpa [#allocation5], 0
    %32 = vsyncpa [#allocation20], 0
    // Predicated region
    $region2: #{tpu_custom_call.1} parent=1 // pred_check
      _
    $region3: #{tpu_custom_call.1} parent=1 // pred_check_branch
      %34 = sbr.rel (0) target = $region5
    $region4: #{tpu_custom_call.1} parent=1 // pred_region
      %s36 = ssub.s32 6400, 6400
      %37 = vsyncadd [#allocation4], %s36
      %s38 = sshll.u32 [#allocation3], 4
      %s39 = int_to_ptr.vmem [resolvable:$true] %s38
      %44 = dma.hbm_to_vmem [thread:$0]  %s0, 6400, %s39, [#allocation4], 256, 256, 16
    $region5: #{tpu_custom_call.1} parent=1 // pred_fallthru
      _
    // Predicated region
    $region6: #{tpu_custom_call.1} parent=1 // pred_check
      _
    $region7: #{tpu_custom_call.1} parent=1 // pred_check_branch
      %46 = sbr.rel (0) target = $region9
    $region8: #{tpu_custom_call.1} parent=1 // pred_region
      %s48 = ssub.s32 4096, 4096
      %49 = vsyncadd [#allocation7], %s48
      %s50 = sshll.u32 [#allocation6], 4
      %s51 = int_to_ptr.vmem [resolvable:$true] %s50
      %56 = dma.hbm_to_vmem [thread:$0]  %s1, 4096, %s51, [#allocation7], 128, 128, 8
    $region9: #{tpu_custom_call.1} parent=1 // pred_fallthru
      _
    // Predicated region
    $region10: #{tpu_custom_call.1} parent=1 // pred_check
      _
    $region11: #{tpu_custom_call.1} parent=1 // pred_check_branch
      %58 = sbr.rel (0) target = $region13
    $region12: #{tpu_custom_call.1} parent=1 // pred_region
      _
    $region13: #{tpu_custom_call.1} parent=1 // pred_fallthru
      _
    // Predicated region
    $region14: #{tpu_custom_call.1} parent=1 // pred_check
      _
    $region15: #{tpu_custom_call.1} parent=1 // pred_check_branch
      %60 = sbr.rel (0) target = $region17
    $region16: #{tpu_custom_call.1} parent=1 // pred_region
      %s62 = ssub.s32 4096, 4096
      %63 = vsyncadd [#allocation7], %s62
      %s64 = sshll.u32 [#allocation8], 4
      %s65 = int_to_ptr.vmem [resolvable:$true] %s64
      %70 = dma.hbm_to_vmem [thread:$0]  %s3, 4096, %s65, [#allocation7], 128, 128, 8
    $region17: #{tpu_custom_call.1} parent=1 // pred_fallthru
      _
    // Predicated region
    $region18: #{tpu_custom_call.1} parent=1 // pred_check
      _
    $region19: #{tpu_custom_call.1} parent=1 // pred_check_branch
      %72 = sbr.rel (0) target = $region21
    $region20: #{tpu_custom_call.1} parent=1 // pred_region
      _
    $region21: #{tpu_custom_call.1} parent=1 // pred_fallthru
      _
    // Predicated region
    $region22: #{tpu_custom_call.1} parent=1 // pred_check
      _
    $region23: #{tpu_custom_call.1} parent=1 // pred_check_branch
      %74 = sbr.rel (0) target = $region25
    $region24: #{tpu_custom_call.1} parent=1 // pred_region
      %s76 = ssub.s32 4096, 4096
      %77 = vsyncadd [#allocation10], %s76
      %s78 = sshll.u32 [#allocation9], 4
      %s79 = int_to_ptr.vmem [resolvable:$true] %s78
      %84 = dma.hbm_to_vmem [thread:$0]  %s5, 4096, %s79, [#allocation10], 128, 128, 8
    $region25: #{tpu_custom_call.1} parent=1 // pred_fallthru
      _
    // Predicated region
    $region26: #{tpu_custom_call.1} parent=1 // pred_check
      _
    $region27: #{tpu_custom_call.1} parent=1 // pred_check_branch
      %86 = sbr.rel (0) target = $region29
    $region28: #{tpu_custom_call.1} parent=1 // pred_region
      _
    $region29: #{tpu_custom_call.1} parent=1 // pred_fallthru
      _
    // Predicated region
    $region30: #{tpu_custom_call.1} parent=1 // pred_check
      _
    $region31: #{tpu_custom_call.1} parent=1 // pred_check_branch
      %88 = sbr.rel (0) target = $region33
    $region32: #{tpu_custom_call.1} parent=1 // pred_region
      %s90 = ssub.s32 4096, 4096
      %91 = vsyncadd [#allocation10], %s90
      %s92 = sshll.u32 [#allocation11], 4
      %s93 = int_to_ptr.vmem [resolvable:$true] %s92
      %98 = dma.hbm_to_vmem [thread:$0]  %s7, 4096, %s93, [#allocation10], 128, 128, 8
    $region33: #{tpu_custom_call.1} parent=1 // pred_fallthru
      _
    // Predicated region
    $region34: #{tpu_custom_call.1} parent=1 // pred_check
      _
    $region35: #{tpu_custom_call.1} parent=1 // pred_check_branch
      %100 = sbr.rel (0) target = $region37
    $region36: #{tpu_custom_call.1} parent=1 // pred_region
      _
    $region37: #{tpu_custom_call.1} parent=1 // pred_fallthru
      _
    // Predicated region
    $region38: #{tpu_custom_call.1} parent=1 // pred_check
      _
    $region39: #{tpu_custom_call.1} parent=1 // pred_check_branch
      %102 = sbr.rel (0) target = $region41
    $region40: #{tpu_custom_call.1} parent=1 // pred_region
      %s104 = ssub.s32 4096, 4096
      %105 = vsyncadd [#allocation13], %s104
      %s106 = sshll.u32 [#allocation12], 4
      %s107 = int_to_ptr.vmem [resolvable:$true] %s106
      %112 = dma.hbm_to_vmem [thread:$0]  %s9, 4096, %s107, [#allocation13], 128, 128, 8
    $region41: #{tpu_custom_call.1} parent=1 // pred_fallthru
      _
    // Predicated region
    $region42: #{tpu_custom_call.1} parent=1 // pred_check
      _
    $region43: #{tpu_custom_call.1} parent=1 // pred_check_branch
      %114 = sbr.rel (0) target = $region45
    $region44: #{tpu_custom_call.1} parent=1 // pred_region
      _
    $region45: #{tpu_custom_call.1} parent=1 // pred_fallthru
      _
    // Predicated region
    $region46: #{tpu_custom_call.1} parent=1 // pred_check
      _
    $region47: #{tpu_custom_call.1} parent=1 // pred_check_branch
      %116 = sbr.rel (0) target = $region49
    $region48: #{tpu_custom_call.1} parent=1 // pred_region
      %s118 = ssub.s32 4096, 4096
      %119 = vsyncadd [#allocation13], %s118
      %s120 = sshll.u32 [#allocation14], 4
      %s121 = int_to_ptr.vmem [resolvable:$true] %s120
      %126 = dma.hbm_to_vmem [thread:$0]  %s11, 4096, %s121, [#allocation13], 128, 128, 8
    $region49: #{tpu_custom_call.1} parent=1 // pred_fallthru
      _
    // Predicated region
    $region50: #{tpu_custom_call.1} parent=1 // pred_check
      _
    $region51: #{tpu_custom_call.1} parent=1 // pred_check_branch
      %128 = sbr.rel (0) target = $region53
    $region52: #{tpu_custom_call.1} parent=1 // pred_region
      _
    $region53: #{tpu_custom_call.1} parent=1 // pred_fallthru
      _
    // Predicated region
    $region54: #{tpu_custom_call.1} parent=1 // pred_check
      _
    $region55: #{tpu_custom_call.1} parent=1 // pred_check_branch
      %130 = sbr.rel (0) target = $region57
    $region56: #{tpu_custom_call.1} parent=1 // pred_region
      %s132 = ssub.s32 4096, 4096
      %133 = vsyncadd [#allocation16], %s132
      %s134 = sshll.u32 [#allocation15], 4
      %s135 = int_to_ptr.vmem [resolvable:$true] %s134
      %140 = dma.hbm_to_vmem [thread:$0]  %s13, 4096, %s135, [#allocation16], 128, 128, 8
    $region57: #{tpu_custom_call.1} parent=1 // pred_fallthru
      _
    // Predicated region
    $region58: #{tpu_custom_call.1} parent=1 // pred_check
      _
    $region59: #{tpu_custom_call.1} parent=1 // pred_check_branch
      %142 = sbr.rel (0) target = $region61
    $region60: #{tpu_custom_call.1} parent=1 // pred_region
      _
    $region61: #{tpu_custom_call.1} parent=1 // pred_fallthru
      _
    // Predicated region
    $region62: #{tpu_custom_call.1} parent=1 // pred_check
      _
    $region63: #{tpu_custom_call.1} parent=1 // pred_check_branch
      %144 = sbr.rel (0) target = $region65
    $region64: #{tpu_custom_call.1} parent=1 // pred_region
      %s146 = ssub.s32 4096, 4096
      %147 = vsyncadd [#allocation16], %s146
      %s148 = sshll.u32 [#allocation17], 4
      %s149 = int_to_ptr.vmem [resolvable:$true] %s148
      %154 = dma.hbm_to_vmem [thread:$0]  %s15, 4096, %s149, [#allocation16], 128, 128, 8
    $region65: #{tpu_custom_call.1} parent=1 // pred_fallthru
      _
    // Predicated region
    $region66: #{tpu_custom_call.1} parent=1 // pred_check
      _
    $region67: #{tpu_custom_call.1} parent=1 // pred_check_branch
      %156 = sbr.rel (0) target = $region69
    $region68: #{tpu_custom_call.1} parent=1 // pred_region
      _
    $region69: #{tpu_custom_call.1} parent=1 // pred_fallthru
      _
    // Predicated region
    $region70: #{tpu_custom_call.1} parent=1 // pred_check
      _
    $region71: #{tpu_custom_call.1} parent=1 // pred_check_branch
      %158 = sbr.rel (0) target = $region73
    $region72: #{tpu_custom_call.1} parent=1 // pred_region
      _
    $region73: #{tpu_custom_call.1} parent=1 // pred_fallthru
      _
    // Predicated region
    $region74: #{tpu_custom_call.1} parent=1 // pred_check
      _
    $region75: #{tpu_custom_call.1} parent=1 // pred_check_branch
      %160 = sbr.rel (0) target = $region77
    $region76: #{tpu_custom_call.1} parent=1 // pred_region
      %161 = dma.done [#allocation4], 6400
    $region77: #{tpu_custom_call.1} parent=1 // pred_fallthru
      _
    // Predicated region
    $region78: #{tpu_custom_call.1} parent=1 // pred_check
      _
    $region79: #{tpu_custom_call.1} parent=1 // pred_check_branch
      %163 = sbr.rel (0) target = $region81
    $region80: #{tpu_custom_call.1} parent=1 // pred_region
      %164 = dma.done [#allocation7], 4096
    $region81: #{tpu_custom_call.1} parent=1 // pred_fallthru
      _
    // Predicated region
    $region82: #{tpu_custom_call.1} parent=1 // pred_check
      _
    $region83: #{tpu_custom_call.1} parent=1 // pred_check_branch
      %166 = sbr.rel (0) target = $region85
    $region84: #{tpu_custom_call.1} parent=1 // pred_region
      %167 = dma.done [#allocation7], 4096
    $region85: #{tpu_custom_call.1} parent=1 // pred_fallthru
      _
    // Predicated region
    $region86: #{tpu_custom_call.1} parent=1 // pred_check
      _
    $region87: #{tpu_custom_call.1} parent=1 // pred_check_branch
      %169 = sbr.rel (0) target = $region89
    $region88: #{tpu_custom_call.1} parent=1 // pred_region
      %170 = dma.done [#allocation10], 4096
    $region89: #{tpu_custom_call.1} parent=1 // pred_fallthru
      _
    // Predicated region
    $region90: #{tpu_custom_call.1} parent=1 // pred_check
      _
    $region91: #{tpu_custom_call.1} parent=1 // pred_check_branch
      %172 = sbr.rel (0) target = $region93
    $region92: #{tpu_custom_call.1} parent=1 // pred_region
      %173 = dma.done [#allocation10], 4096
    $region93: #{tpu_custom_call.1} parent=1 // pred_fallthru
      _
    // Predicated region
    $region94: #{tpu_custom_call.1} parent=1 // pred_check
      _
    $region95: #{tpu_custom_call.1} parent=1 // pred_check_branch
      %175 = sbr.rel (0) target = $region97
    $region96: #{tpu_custom_call.1} parent=1 // pred_region
      %176 = dma.done [#allocation13], 4096
    $region97: #{tpu_custom_call.1} parent=1 // pred_fallthru
      _
    // Predicated region
    $region98: #{tpu_custom_call.1} parent=1 // pred_check
      _
    $region99: #{tpu_custom_call.1} parent=1 // pred_check_branch
      %178 = sbr.rel (0) target = $region101
    $region100: #{tpu_custom_call.1} parent=1 // pred_region
      %179 = dma.done [#allocation13], 4096
    $region101: #{tpu_custom_call.1} parent=1 // pred_fallthru
      _
    // Predicated region
    $region102: #{tpu_custom_call.1} parent=1 // pred_check
      _
    $region103: #{tpu_custom_call.1} parent=1 // pred_check_branch
      %181 = sbr.rel (0) target = $region105
    $region104: #{tpu_custom_call.1} parent=1 // pred_region
      %182 = dma.done [#allocation16], 4096
    $region105: #{tpu_custom_call.1} parent=1 // pred_fallthru
      _
    // Predicated region
    $region106: #{tpu_custom_call.1} parent=1 // pred_check
      _
    $region107: #{tpu_custom_call.1} parent=1 // pred_check_branch
      %184 = sbr.rel (0) target = $region109
    $region108: #{tpu_custom_call.1} parent=1 // pred_region
      %185 = dma.done [#allocation16], 4096
    $region109: #{tpu_custom_call.1} parent=1 // pred_fallthru
      _
    %v186 = vld [vmem:[#allocation3] sm:$0xff]
    %v187 = vld [vmem:[#allocation3 + $0x8] sm:$0xff]
    %v188 = vld [vmem:[#allocation3 + $0x10] sm:$0xff]
    %v189 = vld [vmem:[#allocation3 + $0x18] sm:$0xff]
    %v190 = vld [vmem:[#allocation3 + $0x20] sm:$0xff]
    %v191 = vld [vmem:[#allocation3 + $0x28] sm:$0xff]
    %v192 = vld [vmem:[#allocation3 + $0x30] sm:$0xff]
    %v193 = vld [vmem:[#allocation3 + $0x38] sm:$0xff]
    %v194 = vld [vmem:[#allocation3 + $0x40] sm:$0xff]
    %v195 = vld [vmem:[#allocation3 + $0x48] sm:$0xff]
    %v196 = vld [vmem:[#allocation3 + $0x50] sm:$0xff]
    %v197 = vld [vmem:[#allocation3 + $0x58] sm:$0xff]
    %v198 = vld [vmem:[#allocation3 + $0x60] sm:$0xff]
    %v199 = vld [vmem:[#allocation3 + $0x68] sm:$0xff]
    %v200 = vld [vmem:[#allocation3 + $0x70] sm:$0xff]
    %v201 = vld [vmem:[#allocation3 + $0x78] sm:$0xff]
    %v202 = vld [vmem:[#allocation3 + $0x80] sm:$0xff]
    %v203 = vld [vmem:[#allocation3 + $0x88] sm:$0xff]
    %v204 = vld [vmem:[#allocation3 + $0x90] sm:$0xff]
    %v205 = vld [vmem:[#allocation3 + $0x98] sm:$0xff]
    %v206 = vld [vmem:[#allocation3 + $0xa0] sm:$0xff]
    %v207 = vld [vmem:[#allocation3 + $0xa8] sm:$0xff]
    %v208 = vld [vmem:[#allocation3 + $0xb0] sm:$0xff]
    %v209 = vld [vmem:[#allocation3 + $0xb8] sm:$0xff]
    %v210 = vld [vmem:[#allocation3 + $0xc0] sm:$0xff]
    %v211 = vld [vmem:[#allocation3 + $0xc8] sm:$0xff]
    %v212 = vld [vmem:[#allocation3 + $0xd0] sm:$0xff]
    %v213 = vld [vmem:[#allocation3 + $0xd8] sm:$0xff]
    %v214 = vld [vmem:[#allocation3 + $0xe0] sm:$0xff]
    %v215 = vld [vmem:[#allocation3 + $0xe8] sm:$0xff]
    %v216 = vld [vmem:[#allocation3 + $0xf0] sm:$0xff]
    %v217 = vld [vmem:[#allocation3 + $0xf8] sm:$0xff]
    %v218 = vld [vmem:[#allocation3 + $0x100] sm:$0xff]
    %v219 = vld [vmem:[#allocation3 + $0x108] sm:$0xff]
    %v220 = vld [vmem:[#allocation3 + $0x110] sm:$0xff]
    %v221 = vld [vmem:[#allocation3 + $0x118] sm:$0xff]
    %v222 = vld [vmem:[#allocation3 + $0x120] sm:$0xff]
    %v223 = vld [vmem:[#allocation3 + $0x128] sm:$0xff]
    %v224 = vld [vmem:[#allocation3 + $0x130] sm:$0xff]
    %v225 = vld [vmem:[#allocation3 + $0x138] sm:$0xff]
    %v226 = vld [vmem:[#allocation3 + $0x140] sm:$0xff]
    %v227 = vld [vmem:[#allocation3 + $0x148] sm:$0xff]
    %v228 = vld [vmem:[#allocation3 + $0x150] sm:$0xff]
    %v229 = vld [vmem:[#allocation3 + $0x158] sm:$0xff]
    %v230 = vld [vmem:[#allocation3 + $0x160] sm:$0xff]
    %v231 = vld [vmem:[#allocation3 + $0x168] sm:$0xff]
    %v232 = vld [vmem:[#allocation3 + $0x170] sm:$0xff]
    %v233 = vld [vmem:[#allocation3 + $0x178] sm:$0xff]
    %v234 = vld [vmem:[#allocation3 + $0x180] sm:$0xff]
    %v235 = vld [vmem:[#allocation3 + $0x188] sm:$0xff]
    %v236 = vpack.c.bf16 %v188, %v186
    %v237 = vpack.c.bf16 %v189, %v187
    %v238 = vpack.c.bf16 %v192, %v190
    %v239 = vpack.c.bf16 %v193, %v191
    %v240 = vpack.c.bf16 %v196, %v194
    %v241 = vpack.c.bf16 %v197, %v195
    %v242 = vpack.c.bf16 %v200, %v198
    %v243 = vpack.c.bf16 %v201, %v199
    %v244 = vpack.c.bf16 %v204, %v202
    %v245 = vpack.c.bf16 %v205, %v203
    %v246 = vpack.c.bf16 %v208, %v206
    %v247 = vpack.c.bf16 %v209, %v207
    %v248 = vpack.c.bf16 %v212, %v210
    %v249 = vpack.c.bf16 %v213, %v211
    %v250 = vpack.c.bf16 %v216, %v214
    %v251 = vpack.c.bf16 %v217, %v215
    %v252 = vpack.c.bf16 %v220, %v218
    %v253 = vpack.c.bf16 %v221, %v219
    %v254 = vpack.c.bf16 %v224, %v222
    %v255 = vpack.c.bf16 %v225, %v223
    %v256 = vpack.c.bf16 %v228, %v226
    %v257 = vpack.c.bf16 %v229, %v227
    %v258 = vpack.c.bf16 %v232, %v230
    %v259 = vpack.c.bf16 %v233, %v231
    %v260 = vpack.c.bf16 %v234, %v234
    %v261 = vpack.c.bf16 %v235, %v235
    %v262 = vld [vmem:[#allocation6] sm:$0xff]
    %v263 = vld [vmem:[#allocation6 + $0x8] sm:$0xff]
    %v264 = vld [vmem:[#allocation6 + $0x10] sm:$0xff]
    %v265 = vld [vmem:[#allocation6 + $0x18] sm:$0xff]
    %v266 = vld [vmem:[#allocation6 + $0x20] sm:$0xff]
    %v267 = vld [vmem:[#allocation6 + $0x28] sm:$0xff]
    %v268 = vld [vmem:[#allocation6 + $0x30] sm:$0xff]
    %v269 = vld [vmem:[#allocation6 + $0x38] sm:$0xff]
    %v270 = vld [vmem:[#allocation6 + $0x40] sm:$0xff]
    %v271 = vld [vmem:[#allocation6 + $0x48] sm:$0xff]
    %v272 = vld [vmem:[#allocation6 + $0x50] sm:$0xff]
    %v273 = vld [vmem:[#allocation6 + $0x58] sm:$0xff]
    %v274 = vld [vmem:[#allocation6 + $0x60] sm:$0xff]
    %v275 = vld [vmem:[#allocation6 + $0x68] sm:$0xff]
    %v276 = vld [vmem:[#allocation6 + $0x70] sm:$0xff]
    %v277 = vld [vmem:[#allocation6 + $0x78] sm:$0xff]
    %v278 = vld [vmem:[#allocation6 + $0x80] sm:$0xff]
    %v279 = vld [vmem:[#allocation6 + $0x88] sm:$0xff]
    %v280 = vld [vmem:[#allocation6 + $0x90] sm:$0xff]
    %v281 = vld [vmem:[#allocation6 + $0x98] sm:$0xff]
    %v282 = vld [vmem:[#allocation6 + $0xa0] sm:$0xff]
    %v283 = vld [vmem:[#allocation6 + $0xa8] sm:$0xff]
    %v284 = vld [vmem:[#allocation6 + $0xb0] sm:$0xff]
    %v285 = vld [vmem:[#allocation6 + $0xb8] sm:$0xff]
    %v286 = vld [vmem:[#allocation6 + $0xc0] sm:$0xff]
    %v287 = vld [vmem:[#allocation6 + $0xc8] sm:$0xff]
    %v288 = vld [vmem:[#allocation6 + $0xd0] sm:$0xff]
    %v289 = vld [vmem:[#allocation6 + $0xd8] sm:$0xff]
    %v290 = vld [vmem:[#allocation6 + $0xe0] sm:$0xff]
    %v291 = vld [vmem:[#allocation6 + $0xe8] sm:$0xff]
    %v292 = vld [vmem:[#allocation6 + $0xf0] sm:$0xff]
    %v293 = vld [vmem:[#allocation6 + $0xf8] sm:$0xff]
    %v294 = vld [vmem:[%s2] sm:$0x3]
    %v296 = vlaneseq
    %v297 = vshrl.u32 %v296, 7
    %v298 = vsub.s32 0, %v297
    %v299 = vrot.slane %v294, %v298
    %v300 = vlaneseq
    %v301 = vshrl.u32 %v300, 7
    %v302 = vsub.s32 1, %v301
    %v303 = vrot.slane %v294, %v302
    %v338 = vunpack.c.l.b16 %v262
    %v339 = vunpack.c.h.b16 %v262
    %v340 = vunpack.c.l.b16 %v263
    %v341 = vunpack.c.h.b16 %v263
    %v342 = vunpack.c.l.b16 %v264
    %v343 = vunpack.c.h.b16 %v264
    %v344 = vunpack.c.l.b16 %v265
    %v345 = vunpack.c.h.b16 %v265
    %v346 = vunpack.c.l.b16 %v266
    %v347 = vunpack.c.h.b16 %v266
    %v348 = vunpack.c.l.b16 %v267
    %v349 = vunpack.c.h.b16 %v267
    %v350 = vunpack.c.l.b16 %v268
    %v351 = vunpack.c.h.b16 %v268
    %v352 = vunpack.c.l.b16 %v269
    %v353 = vunpack.c.h.b16 %v269
    %v354 = vunpack.c.l.b16 %v270
    %v355 = vunpack.c.h.b16 %v270
    %v356 = vunpack.c.l.b16 %v271
    %v357 = vunpack.c.h.b16 %v271
    %v358 = vunpack.c.l.b16 %v272
    %v359 = vunpack.c.h.b16 %v272
    %v360 = vunpack.c.l.b16 %v273
    %v361 = vunpack.c.h.b16 %v273
    %v362 = vunpack.c.l.b16 %v274
    %v363 = vunpack.c.h.b16 %v274
    %v364 = vunpack.c.l.b16 %v275
    %v365 = vunpack.c.h.b16 %v275
    %v366 = vunpack.c.l.b16 %v276
    %v367 = vunpack.c.h.b16 %v276
    %v368 = vunpack.c.l.b16 %v277
    %v369 = vunpack.c.h.b16 %v277
    %v370 = vunpack.c.l.b16 %v278
    %v371 = vunpack.c.h.b16 %v278
    %v372 = vunpack.c.l.b16 %v279
    %v373 = vunpack.c.h.b16 %v279
    %v374 = vunpack.c.l.b16 %v280
    %v375 = vunpack.c.h.b16 %v280
    %v376 = vunpack.c.l.b16 %v281
    %v377 = vunpack.c.h.b16 %v281
    %v378 = vunpack.c.l.b16 %v282
    %v379 = vunpack.c.h.b16 %v282
    %v380 = vunpack.c.l.b16 %v283
    %v381 = vunpack.c.h.b16 %v283
    %v382 = vunpack.c.l.b16 %v284
    %v383 = vunpack.c.h.b16 %v284
    %v384 = vunpack.c.l.b16 %v285
    %v385 = vunpack.c.h.b16 %v285
    %v386 = vunpack.c.l.b16 %v286
    %v387 = vunpack.c.h.b16 %v286
    %v388 = vunpack.c.l.b16 %v287
    %v389 = vunpack.c.h.b16 %v287
    %v390 = vunpack.c.l.b16 %v288
    %v391 = vunpack.c.h.b16 %v288
    %v392 = vunpack.c.l.b16 %v289
    %v393 = vunpack.c.h.b16 %v289
    %v394 = vunpack.c.l.b16 %v290
    %v395 = vunpack.c.h.b16 %v290
    %v396 = vunpack.c.l.b16 %v291
    %v397 = vunpack.c.h.b16 %v291
    %v398 = vunpack.c.l.b16 %v292
    %v399 = vunpack.c.h.b16 %v292
    %v400 = vunpack.c.l.b16 %v293
    %v401 = vunpack.c.h.b16 %v293
    %v402 = vpack.c.b16 %v340, %v338
    %v403 = vpack.c.b16 %v341, %v339
    %v404 = vpack.c.b16 %v344, %v342
    %v405 = vpack.c.b16 %v345, %v343
    %v406 = vpack.c.b16 %v348, %v346
    %v407 = vpack.c.b16 %v349, %v347
    %v408 = vpack.c.b16 %v352, %v350
    %v409 = vpack.c.b16 %v353, %v351
    %v410 = vpack.c.b16 %v356, %v354
    %v411 = vpack.c.b16 %v357, %v355
    %v412 = vpack.c.b16 %v360, %v358
    %v413 = vpack.c.b16 %v361, %v359
    %v414 = vpack.c.b16 %v364, %v362
    %v415 = vpack.c.b16 %v365, %v363
    %v416 = vpack.c.b16 %v368, %v366
    %v417 = vpack.c.b16 %v369, %v367
    %v418 = vpack.c.b16 %v372, %v370
    %v419 = vpack.c.b16 %v373, %v371
    %v420 = vpack.c.b16 %v376, %v374
    %v421 = vpack.c.b16 %v377, %v375
    %v422 = vpack.c.b16 %v380, %v378
    %v423 = vpack.c.b16 %v381, %v379
    %v424 = vpack.c.b16 %v384, %v382
    %v425 = vpack.c.b16 %v385, %v383
    %v426 = vpack.c.b16 %v388, %v386
    %v427 = vpack.c.b16 %v389, %v387
    %v428 = vpack.c.b16 %v392, %v390
    %v429 = vpack.c.b16 %v393, %v391
    %v430 = vpack.c.b16 %v396, %v394
    %v431 = vpack.c.b16 %v397, %v395
    %v432 = vpack.c.b16 %v400, %v398
    %v433 = vpack.c.b16 %v401, %v399
    %466 = vmatprep.subr.bf16.mxu0 %v403
    %467 = vmatpush1.bf16.msra.mxu0 %v402
    %468 = vmatprep.subr.bf16.mxu0 %v405
    %469 = vmatpush1.bf16.msra.mxu0 %v404
    %470 = vmatprep.subr.bf16.mxu0 %v407
    %471 = vmatpush1.bf16.msra.mxu0 %v406
    %472 = vmatprep.subr.bf16.mxu0 %v409
    %473 = vmatpush1.bf16.msra.mxu0 %v408
    %474 = vmatprep.subr.bf16.mxu0 %v411
    %475 = vmatpush1.bf16.msra.mxu0 %v410
    %476 = vmatprep.subr.bf16.mxu0 %v413
    %477 = vmatpush1.bf16.msra.mxu0 %v412
    %478 = vmatprep.subr.bf16.mxu0 %v415
    %479 = vmatpush1.bf16.msra.mxu0 %v414
    %480 = vmatprep.subr.bf16.mxu0 %v417
    %481 = vmatpush1.bf16.msra.mxu0 %v416
    %482 = vmatprep.subr.bf16.mxu0 %v419
    %483 = vmatpush1.bf16.msra.mxu0 %v418
    %484 = vmatprep.subr.bf16.mxu0 %v421
    %485 = vmatpush1.bf16.msra.mxu0 %v420
    %486 = vmatprep.subr.bf16.mxu0 %v423
    %487 = vmatpush1.bf16.msra.mxu0 %v422
    %488 = vmatprep.subr.bf16.mxu0 %v425
    %489 = vmatpush1.bf16.msra.mxu0 %v424
    %490 = vmatprep.subr.bf16.mxu0 %v427
    %491 = vmatpush1.bf16.msra.mxu0 %v426
    %492 = vmatprep.subr.bf16.mxu0 %v429
    %493 = vmatpush1.bf16.msra.mxu0 %v428
    %494 = vmatprep.subr.bf16.mxu0 %v431
    %495 = vmatpush1.bf16.msra.mxu0 %v430
    %496 = vmatprep.subr.bf16.mxu0 %v433
    %497 = vmatpush1.bf16.msra.mxu0 %v432
    %498 = vmatprep.mubr.bf16.mxu0 %v237
    %499 = vmatmul.mubr.bf16.gmra.mrb[0].mxu0 %v236
    %v500 = vpop.f32.mrb[0].mxu0
    %v501 = vadd.f32 %v299, %v500
    %v502 = vpop.f32.mrb[0].mxu0
    %v503 = vadd.f32 %v303, %v502
    %v504 = vpop.f32.mrb[0].mxu0
    %v505 = vadd.f32 %v299, %v504
    %v506 = vpop.f32.mrb[0].mxu0
    %v507 = vadd.f32 %v303, %v506
    %508 = vmatprep.mubr.bf16.mxu0 %v239
    %509 = vmatmul.mubr.bf16.gmra.mrb[0].mxu0 %v238
    %v510 = vpop.f32.mrb[0].mxu0
    %v511 = vadd.f32 %v299, %v510
    %v512 = vpop.f32.mrb[0].mxu0
    %v513 = vadd.f32 %v303, %v512
    %v514 = vpop.f32.mrb[0].mxu0
    %v515 = vadd.f32 %v299, %v514
    %v516 = vpop.f32.mrb[0].mxu0
    %v517 = vadd.f32 %v303, %v516
    %518 = vmatprep.mubr.bf16.mxu0 %v241
    %519 = vmatmul.mubr.bf16.gmra.mrb[0].mxu0 %v240
    %v520 = vpop.f32.mrb[0].mxu0
    %v521 = vadd.f32 %v299, %v520
    %v522 = vpop.f32.mrb[0].mxu0
    %v523 = vadd.f32 %v303, %v522
    %v524 = vpop.f32.mrb[0].mxu0
    %v525 = vadd.f32 %v299, %v524
    %v526 = vpop.f32.mrb[0].mxu0
    %v527 = vadd.f32 %v303, %v526
    %528 = vmatprep.mubr.bf16.mxu0 %v243
    %529 = vmatmul.mubr.bf16.gmra.mrb[0].mxu0 %v242
    %v530 = vpop.f32.mrb[0].mxu0
    %v531 = vadd.f32 %v299, %v530
    %v532 = vpop.f32.mrb[0].mxu0
    %v533 = vadd.f32 %v303, %v532
    %v534 = vpop.f32.mrb[0].mxu0
    %v535 = vadd.f32 %v299, %v534
    %v536 = vpop.f32.mrb[0].mxu0
    %v537 = vadd.f32 %v303, %v536
    %538 = vmatprep.mubr.bf16.mxu0 %v245
    %539 = vmatmul.mubr.bf16.gmra.mrb[0].mxu0 %v244
    %v540 = vpop.f32.mrb[0].mxu0
    %v541 = vadd.f32 %v299, %v540
    %v542 = vpop.f32.mrb[0].mxu0
    %v543 = vadd.f32 %v303, %v542
    %v544 = vpop.f32.mrb[0].mxu0
    %v545 = vadd.f32 %v299, %v544
    %v546 = vpop.f32.mrb[0].mxu0
    %v547 = vadd.f32 %v303, %v546
    %548 = vmatprep.mubr.bf16.mxu0 %v247
    %549 = vmatmul.mubr.bf16.gmra.mrb[0].mxu0 %v246
    %v550 = vpop.f32.mrb[0].mxu0
    %v551 = vadd.f32 %v299, %v550
    %v552 = vpop.f32.mrb[0].mxu0
    %v553 = vadd.f32 %v303, %v552
    %v554 = vpop.f32.mrb[0].mxu0
    %v555 = vadd.f32 %v299, %v554
    %v556 = vpop.f32.mrb[0].mxu0
    %v557 = vadd.f32 %v303, %v556
    %558 = vmatprep.mubr.bf16.mxu0 %v249
    %559 = vmatmul.mubr.bf16.gmra.mrb[0].mxu0 %v248
    %v560 = vpop.f32.mrb[0].mxu0
    %v561 = vadd.f32 %v299, %v560
    %v562 = vpop.f32.mrb[0].mxu0
    %v563 = vadd.f32 %v303, %v562
    %v564 = vpop.f32.mrb[0].mxu0
    %v565 = vadd.f32 %v299, %v564
    %v566 = vpop.f32.mrb[0].mxu0
    %v567 = vadd.f32 %v303, %v566
    %568 = vmatprep.mubr.bf16.mxu0 %v251
    %569 = vmatmul.mubr.bf16.gmra.mrb[0].mxu0 %v250
    %v570 = vpop.f32.mrb[0].mxu0
    %v571 = vadd.f32 %v299, %v570
    %v572 = vpop.f32.mrb[0].mxu0
    %v573 = vadd.f32 %v303, %v572
    %v574 = vpop.f32.mrb[0].mxu0
    %v575 = vadd.f32 %v299, %v574
    %v576 = vpop.f32.mrb[0].mxu0
    %v577 = vadd.f32 %v303, %v576
    %578 = vmatprep.mubr.bf16.mxu0 %v253
    %579 = vmatmul.mubr.bf16.gmra.mrb[0].mxu0 %v252
    %v580 = vpop.f32.mrb[0].mxu0
    %v581 = vadd.f32 %v299, %v580
    %v582 = vpop.f32.mrb[0].mxu0
    %v583 = vadd.f32 %v303, %v582
    %v584 = vpop.f32.mrb[0].mxu0
    %v585 = vadd.f32 %v299, %v584
    %v586 = vpop.f32.mrb[0].mxu0
    %v587 = vadd.f32 %v303, %v586
    %588 = vmatprep.mubr.bf16.mxu0 %v255
    %589 = vmatmul.mubr.bf16.gmra.mrb[0].mxu0 %v254
    %v590 = vpop.f32.mrb[0].mxu0
    %v591 = vadd.f32 %v299, %v590
    %v592 = vpop.f32.mrb[0].mxu0
    %v593 = vadd.f32 %v303, %v592
    %v594 = vpop.f32.mrb[0].mxu0
    %v595 = vadd.f32 %v299, %v594
    %v596 = vpop.f32.mrb[0].mxu0
    %v597 = vadd.f32 %v303, %v596
    %598 = vmatprep.mubr.bf16.mxu0 %v257
    %599 = vmatmul.mubr.bf16.gmra.mrb[0].mxu0 %v256
    %v600 = vpop.f32.mrb[0].mxu0
    %v601 = vadd.f32 %v299, %v600
    %v602 = vpop.f32.mrb[0].mxu0
    %v603 = vadd.f32 %v303, %v602
    %v604 = vpop.f32.mrb[0].mxu0
    %v605 = vadd.f32 %v299, %v604
    %v606 = vpop.f32.mrb[0].mxu0
    %v607 = vadd.f32 %v303, %v606
    %608 = vmatprep.mubr.bf16.mxu0 %v259
    %609 = vmatmul.mubr.bf16.gmra.mrb[0].mxu0 %v258
    %v610 = vpop.f32.mrb[0].mxu0
    %v611 = vadd.f32 %v299, %v610
    %v612 = vpop.f32.mrb[0].mxu0
    %v613 = vadd.f32 %v303, %v612
    %v614 = vpop.f32.mrb[0].mxu0
    %v615 = vadd.f32 %v299, %v614
    %v616 = vpop.f32.mrb[0].mxu0
    %v617 = vadd.f32 %v303, %v616
    %618 = vmatprep.mubr.bf16.mxu0 %v261
    %619 = vmatmul.mubr.bf16.gmra.mrb[0].mxu0 %v260
    %v620 = vpop.f32.mrb[0].mxu0
    %v621 = vadd.f32 %v299, %v620
    %v622 = vpop.f32.mrb[0].mxu0
    %v623 = vadd.f32 %v303, %v622
    %v624 = vpop.f32.mrb[0].mxu0
    %v625 = vpop.f32.mrb[0].mxu0
    %626 = vdwg.mxu0
    %v627 = vtanh.pop %v501
    %v628 = vtanh.pop %v503
    %v629 = vtanh.pop %v505
    %v630 = vtanh.pop %v507
    %v631 = vtanh.pop %v511
    %v632 = vtanh.pop %v513
    %v633 = vtanh.pop %v515
    %v634 = vtanh.pop %v517
    %v635 = vtanh.pop %v521
    %v636 = vtanh.pop %v523
    %v637 = vtanh.pop %v525
    %v638 = vtanh.pop %v527
    %v639 = vtanh.pop %v531
    %v640 = vtanh.pop %v533
    %v641 = vtanh.pop %v535
    %v642 = vtanh.pop %v537
    %v643 = vtanh.pop %v541
    %v644 = vtanh.pop %v543
    %v645 = vtanh.pop %v545
    %v646 = vtanh.pop %v547
    %v647 = vtanh.pop %v551
    %v648 = vtanh.pop %v553
    %v649 = vtanh.pop %v555
    %v650 = vtanh.pop %v557
    %v651 = vtanh.pop %v561
    %v652 = vtanh.pop %v563
    %v653 = vtanh.pop %v565
    %v654 = vtanh.pop %v567
    %v655 = vtanh.pop %v571
    %v656 = vtanh.pop %v573
    %v657 = vtanh.pop %v575
    %v658 = vtanh.pop %v577
    %v659 = vtanh.pop %v581
    %v660 = vtanh.pop %v583
    %v661 = vtanh.pop %v585
    %v662 = vtanh.pop %v587
    %v663 = vtanh.pop %v591
    %v664 = vtanh.pop %v593
    %v665 = vtanh.pop %v595
    %v666 = vtanh.pop %v597
    %v667 = vtanh.pop %v601
    %v668 = vtanh.pop %v603
    %v669 = vtanh.pop %v605
    %v670 = vtanh.pop %v607
    %v671 = vtanh.pop %v611
    %v672 = vtanh.pop %v613
    %v673 = vtanh.pop %v615
    %v674 = vtanh.pop %v617
    %v675 = vtanh.pop %v621
    %v676 = vtanh.pop %v623
    %v677 = vpack.c.bf16 %v629, %v627
    %v678 = vpack.c.bf16 %v630, %v628
    %v679 = vpack.c.bf16 %v633, %v631
    %v680 = vpack.c.bf16 %v634, %v632
    %v681 = vpack.c.bf16 %v637, %v635
    %v682 = vpack.c.bf16 %v638, %v636
    %v683 = vpack.c.bf16 %v641, %v639
    %v684 = vpack.c.bf16 %v642, %v640
    %v685 = vpack.c.bf16 %v645, %v643
    %v686 = vpack.c.bf16 %v646, %v644
    %v687 = vpack.c.bf16 %v649, %v647
    %v688 = vpack.c.bf16 %v650, %v648
    %v689 = vpack.c.bf16 %v653, %v651
    %v690 = vpack.c.bf16 %v654, %v652
    %v691 = vpack.c.bf16 %v657, %v655
    %v692 = vpack.c.bf16 %v658, %v656
    %v693 = vpack.c.bf16 %v661, %v659
    %v694 = vpack.c.bf16 %v662, %v660
    %v695 = vpack.c.bf16 %v665, %v663
    %v696 = vpack.c.bf16 %v666, %v664
    %v697 = vpack.c.bf16 %v669, %v667
    %v698 = vpack.c.bf16 %v670, %v668
    %v699 = vpack.c.bf16 %v673, %v671
    %v700 = vpack.c.bf16 %v674, %v672
    %v701 = vpack.c.bf16 %v675, %v675
    %v702 = vpack.c.bf16 %v676, %v676
    %v703 = vld [vmem:[#allocation8] sm:$0xff]
    %v704 = vld [vmem:[#allocation8 + $0x8] sm:$0xff]
    %v705 = vld [vmem:[#allocation8 + $0x10] sm:$0xff]
    %v706 = vld [vmem:[#allocation8 + $0x18] sm:$0xff]
    %v707 = vld [vmem:[#allocation8 + $0x20] sm:$0xff]
    %v708 = vld [vmem:[#allocation8 + $0x28] sm:$0xff]
    %v709 = vld [vmem:[#allocation8 + $0x30] sm:$0xff]
    %v710 = vld [vmem:[#allocation8 + $0x38] sm:$0xff]
    %v711 = vld [vmem:[#allocation8 + $0x40] sm:$0xff]
    %v712 = vld [vmem:[#allocation8 + $0x48] sm:$0xff]
    %v713 = vld [vmem:[#allocation8 + $0x50] sm:$0xff]
    %v714 = vld [vmem:[#allocation8 + $0x58] sm:$0xff]
    %v715 = vld [vmem:[#allocation8 + $0x60] sm:$0xff]
    %v716 = vld [vmem:[#allocation8 + $0x68] sm:$0xff]
    %v717 = vld [vmem:[#allocation8 + $0x70] sm:$0xff]
    %v718 = vld [vmem:[#allocation8 + $0x78] sm:$0xff]
    %v719 = vld [vmem:[#allocation8 + $0x80] sm:$0xff]
    %v720 = vld [vmem:[#allocation8 + $0x88] sm:$0xff]
    %v721 = vld [vmem:[#allocation8 + $0x90] sm:$0xff]
    %v722 = vld [vmem:[#allocation8 + $0x98] sm:$0xff]
    %v723 = vld [vmem:[#allocation8 + $0xa0] sm:$0xff]
    %v724 = vld [vmem:[#allocation8 + $0xa8] sm:$0xff]
    %v725 = vld [vmem:[#allocation8 + $0xb0] sm:$0xff]
    %v726 = vld [vmem:[#allocation8 + $0xb8] sm:$0xff]
    %v727 = vld [vmem:[#allocation8 + $0xc0] sm:$0xff]
    %v728 = vld [vmem:[#allocation8 + $0xc8] sm:$0xff]
    %v729 = vld [vmem:[#allocation8 + $0xd0] sm:$0xff]
    %v730 = vld [vmem:[#allocation8 + $0xd8] sm:$0xff]
    %v731 = vld [vmem:[#allocation8 + $0xe0] sm:$0xff]
    %v732 = vld [vmem:[#allocation8 + $0xe8] sm:$0xff]
    %v733 = vld [vmem:[#allocation8 + $0xf0] sm:$0xff]
    %v734 = vld [vmem:[#allocation8 + $0xf8] sm:$0xff]
    %v735 = vld [vmem:[%s4] sm:$0x3]
    %v737 = vlaneseq
    %v738 = vshrl.u32 %v737, 7
    %v739 = vsub.s32 0, %v738
    %v740 = vrot.slane %v735, %v739
    %v741 = vlaneseq
    %v742 = vshrl.u32 %v741, 7
    %v743 = vsub.s32 1, %v742
    %v744 = vrot.slane %v735, %v743
    %v779 = vunpack.c.l.b16 %v703
    %v780 = vunpack.c.h.b16 %v703
    %v781 = vunpack.c.l.b16 %v704
    %v782 = vunpack.c.h.b16 %v704
    %v783 = vunpack.c.l.b16 %v705
    %v784 = vunpack.c.h.b16 %v705
    %v785 = vunpack.c.l.b16 %v706
    %v786 = vunpack.c.h.b16 %v706
    %v787 = vunpack.c.l.b16 %v707
    %v788 = vunpack.c.h.b16 %v707
    %v789 = vunpack.c.l.b16 %v708
    %v790 = vunpack.c.h.b16 %v708
    %v791 = vunpack.c.l.b16 %v709
    %v792 = vunpack.c.h.b16 %v709
    %v793 = vunpack.c.l.b16 %v710
    %v794 = vunpack.c.h.b16 %v710
    %v795 = vunpack.c.l.b16 %v711
    %v796 = vunpack.c.h.b16 %v711
    %v797 = vunpack.c.l.b16 %v712
    %v798 = vunpack.c.h.b16 %v712
    %v799 = vunpack.c.l.b16 %v713
    %v800 = vunpack.c.h.b16 %v713
    %v801 = vunpack.c.l.b16 %v714
    %v802 = vunpack.c.h.b16 %v714
    %v803 = vunpack.c.l.b16 %v715
    %v804 = vunpack.c.h.b16 %v715
    %v805 = vunpack.c.l.b16 %v716
    %v806 = vunpack.c.h.b16 %v716
    %v807 = vunpack.c.l.b16 %v717
    %v808 = vunpack.c.h.b16 %v717
    %v809 = vunpack.c.l.b16 %v718
    %v810 = vunpack.c.h.b16 %v718
    %v811 = vunpack.c.l.b16 %v719
    %v812 = vunpack.c.h.b16 %v719
    %v813 = vunpack.c.l.b16 %v720
    %v814 = vunpack.c.h.b16 %v720
    %v815 = vunpack.c.l.b16 %v721
    %v816 = vunpack.c.h.b16 %v721
    %v817 = vunpack.c.l.b16 %v722
    %v818 = vunpack.c.h.b16 %v722
    %v819 = vunpack.c.l.b16 %v723
    %v820 = vunpack.c.h.b16 %v723
    %v821 = vunpack.c.l.b16 %v724
    %v822 = vunpack.c.h.b16 %v724
    %v823 = vunpack.c.l.b16 %v725
    %v824 = vunpack.c.h.b16 %v725
    %v825 = vunpack.c.l.b16 %v726
    %v826 = vunpack.c.h.b16 %v726
    %v827 = vunpack.c.l.b16 %v727
    %v828 = vunpack.c.h.b16 %v727
    %v829 = vunpack.c.l.b16 %v728
    %v830 = vunpack.c.h.b16 %v728
    %v831 = vunpack.c.l.b16 %v729
    %v832 = vunpack.c.h.b16 %v729
    %v833 = vunpack.c.l.b16 %v730
    %v834 = vunpack.c.h.b16 %v730
    %v835 = vunpack.c.l.b16 %v731
    %v836 = vunpack.c.h.b16 %v731
    %v837 = vunpack.c.l.b16 %v732
    %v838 = vunpack.c.h.b16 %v732
    %v839 = vunpack.c.l.b16 %v733
    %v840 = vunpack.c.h.b16 %v733
    %v841 = vunpack.c.l.b16 %v734
    %v842 = vunpack.c.h.b16 %v734
    %v843 = vpack.c.b16 %v781, %v779
    %v844 = vpack.c.b16 %v782, %v780
    %v845 = vpack.c.b16 %v785, %v783
    %v846 = vpack.c.b16 %v786, %v784
    %v847 = vpack.c.b16 %v789, %v787
    %v848 = vpack.c.b16 %v790, %v788
    %v849 = vpack.c.b16 %v793, %v791
    %v850 = vpack.c.b16 %v794, %v792
    %v851 = vpack.c.b16 %v797, %v795
    %v852 = vpack.c.b16 %v798, %v796
    %v853 = vpack.c.b16 %v801, %v799
    %v854 = vpack.c.b16 %v802, %v800
    %v855 = vpack.c.b16 %v805, %v803
    %v856 = vpack.c.b16 %v806, %v804
    %v857 = vpack.c.b16 %v809, %v807
    %v858 = vpack.c.b16 %v810, %v808
    %v859 = vpack.c.b16 %v813, %v811
    %v860 = vpack.c.b16 %v814, %v812
    %v861 = vpack.c.b16 %v817, %v815
    %v862 = vpack.c.b16 %v818, %v816
    %v863 = vpack.c.b16 %v821, %v819
    %v864 = vpack.c.b16 %v822, %v820
    %v865 = vpack.c.b16 %v825, %v823
    %v866 = vpack.c.b16 %v826, %v824
    %v867 = vpack.c.b16 %v829, %v827
    %v868 = vpack.c.b16 %v830, %v828
    %v869 = vpack.c.b16 %v833, %v831
    %v870 = vpack.c.b16 %v834, %v832
    %v871 = vpack.c.b16 %v837, %v835
    %v872 = vpack.c.b16 %v838, %v836
    %v873 = vpack.c.b16 %v841, %v839
    %v874 = vpack.c.b16 %v842, %v840
    %907 = vmatprep.subr.bf16.mxu0 %v844
    %908 = vmatpush1.bf16.msra.mxu0 %v843
    %909 = vmatprep.subr.bf16.mxu0 %v846
    %910 = vmatpush1.bf16.msra.mxu0 %v845
    %911 = vmatprep.subr.bf16.mxu0 %v848
    %912 = vmatpush1.bf16.msra.mxu0 %v847
    %913 = vmatprep.subr.bf16.mxu0 %v850
    %914 = vmatpush1.bf16.msra.mxu0 %v849
    %915 = vmatprep.subr.bf16.mxu0 %v852
    %916 = vmatpush1.bf16.msra.mxu0 %v851
    %917 = vmatprep.subr.bf16.mxu0 %v854
    %918 = vmatpush1.bf16.msra.mxu0 %v853
    %919 = vmatprep.subr.bf16.mxu0 %v856
    %920 = vmatpush1.bf16.msra.mxu0 %v855
    %921 = vmatprep.subr.bf16.mxu0 %v858
    %922 = vmatpush1.bf16.msra.mxu0 %v857
    %923 = vmatprep.subr.bf16.mxu0 %v860
    %924 = vmatpush1.bf16.msra.mxu0 %v859
    %925 = vmatprep.subr.bf16.mxu0 %v862
    %926 = vmatpush1.bf16.msra.mxu0 %v861
    %927 = vmatprep.subr.bf16.mxu0 %v864
    %928 = vmatpush1.bf16.msra.mxu0 %v863
    %929 = vmatprep.subr.bf16.mxu0 %v866
    %930 = vmatpush1.bf16.msra.mxu0 %v865
    %931 = vmatprep.subr.bf16.mxu0 %v868
    %932 = vmatpush1.bf16.msra.mxu0 %v867
    %933 = vmatprep.subr.bf16.mxu0 %v870
    %934 = vmatpush1.bf16.msra.mxu0 %v869
    %935 = vmatprep.subr.bf16.mxu0 %v872
    %936 = vmatpush1.bf16.msra.mxu0 %v871
    %937 = vmatprep.subr.bf16.mxu0 %v874
    %938 = vmatpush1.bf16.msra.mxu0 %v873
    %939 = vmatprep.mubr.bf16.mxu0 %v678
    %940 = vmatmul.mubr.bf16.gmra.mrb[0].mxu0 %v677
    %v941 = vpop.f32.mrb[0].mxu0
    %v942 = vadd.f32 %v740, %v941
    %v943 = vpop.f32.mrb[0].mxu0
    %v944 = vadd.f32 %v744, %v943
    %v945 = vpop.f32.mrb[0].mxu0
    %v946 = vadd.f32 %v740, %v945
    %v947 = vpop.f32.mrb[0].mxu0
    %v948 = vadd.f32 %v744, %v947
    %949 = vmatprep.mubr.bf16.mxu0 %v680
    %950 = vmatmul.mubr.bf16.gmra.mrb[0].mxu0 %v679
    %v951 = vpop.f32.mrb[0].mxu0
    %v952 = vadd.f32 %v740, %v951
    %v953 = vpop.f32.mrb[0].mxu0
    %v954 = vadd.f32 %v744, %v953
    %v955 = vpop.f32.mrb[0].mxu0
    %v956 = vadd.f32 %v740, %v955
    %v957 = vpop.f32.mrb[0].mxu0
    %v958 = vadd.f32 %v744, %v957
    %959 = vmatprep.mubr.bf16.mxu0 %v682
    %960 = vmatmul.mubr.bf16.gmra.mrb[0].mxu0 %v681
    %v961 = vpop.f32.mrb[0].mxu0
    %v962 = vadd.f32 %v740, %v961
    %v963 = vpop.f32.mrb[0].mxu0
    %v964 = vadd.f32 %v744, %v963
    %v965 = vpop.f32.mrb[0].mxu0
    %v966 = vadd.f32 %v740, %v965
    %v967 = vpop.f32.mrb[0].mxu0
    %v968 = vadd.f32 %v744, %v967
    %969 = vmatprep.mubr.bf16.mxu0 %v684
    %970 = vmatmul.mubr.bf16.gmra.mrb[0].mxu0 %v683
    %v971 = vpop.f32.mrb[0].mxu0
    %v972 = vadd.f32 %v740, %v971
    %v973 = vpop.f32.mrb[0].mxu0
    %v974 = vadd.f32 %v744, %v973
    %v975 = vpop.f32.mrb[0].mxu0
    %v976 = vadd.f32 %v740, %v975
    %v977 = vpop.f32.mrb[0].mxu0
    %v978 = vadd.f32 %v744, %v977
    %979 = vmatprep.mubr.bf16.mxu0 %v686
    %980 = vmatmul.mubr.bf16.gmra.mrb[0].mxu0 %v685
    %v981 = vpop.f32.mrb[0].mxu0
    %v982 = vadd.f32 %v740, %v981
    %v983 = vpop.f32.mrb[0].mxu0
    %v984 = vadd.f32 %v744, %v983
    %v985 = vpop.f32.mrb[0].mxu0
    %v986 = vadd.f32 %v740, %v985
    %v987 = vpop.f32.mrb[0].mxu0
    %v988 = vadd.f32 %v744, %v987
    %989 = vmatprep.mubr.bf16.mxu0 %v688
    %990 = vmatmul.mubr.bf16.gmra.mrb[0].mxu0 %v687
    %v991 = vpop.f32.mrb[0].mxu0
    %v992 = vadd.f32 %v740, %v991
    %v993 = vpop.f32.mrb[0].mxu0
    %v994 = vadd.f32 %v744, %v993
    %v995 = vpop.f32.mrb[0].mxu0
    %v996 = vadd.f32 %v740, %v995
    %v997 = vpop.f32.mrb[0].mxu0
    %v998 = vadd.f32 %v744, %v997
    %999 = vmatprep.mubr.bf16.mxu0 %v690
    %1000 = vmatmul.mubr.bf16.gmra.mrb[0].mxu0 %v689
    %v1001 = vpop.f32.mrb[0].mxu0
    %v1002 = vadd.f32 %v740, %v1001
    %v1003 = vpop.f32.mrb[0].mxu0
    %v1004 = vadd.f32 %v744, %v1003
    %v1005 = vpop.f32.mrb[0].mxu0
    %v1006 = vadd.f32 %v740, %v1005
    %v1007 = vpop.f32.mrb[0].mxu0
    %v1008 = vadd.f32 %v744, %v1007
    %1009 = vmatprep.mubr.bf16.mxu0 %v692
    %1010 = vmatmul.mubr.bf16.gmra.mrb[0].mxu0 %v691
    %v1011 = vpop.f32.mrb[0].mxu0
    %v1012 = vadd.f32 %v740, %v1011
    %v1013 = vpop.f32.mrb[0].mxu0
    %v1014 = vadd.f32 %v744, %v1013
    %v1015 = vpop.f32.mrb[0].mxu0
    %v1016 = vadd.f32 %v740, %v1015
    %v1017 = vpop.f32.mrb[0].mxu0
    %v1018 = vadd.f32 %v744, %v1017
    %1019 = vmatprep.mubr.bf16.mxu0 %v694
    %1020 = vmatmul.mubr.bf16.gmra.mrb[0].mxu0 %v693
    %v1021 = vpop.f32.mrb[0].mxu0
    %v1022 = vadd.f32 %v740, %v1021
    %v1023 = vpop.f32.mrb[0].mxu0
    %v1024 = vadd.f32 %v744, %v1023
    %v1025 = vpop.f32.mrb[0].mxu0
    %v1026 = vadd.f32 %v740, %v1025
    %v1027 = vpop.f32.mrb[0].mxu0
    %v1028 = vadd.f32 %v744, %v1027
    %1029 = vmatprep.mubr.bf16.mxu0 %v696
    %1030 = vmatmul.mubr.bf16.gmra.mrb[0].mxu0 %v695
    %v1031 = vpop.f32.mrb[0].mxu0
    %v1032 = vadd.f32 %v740, %v1031
    %v1033 = vpop.f32.mrb[0].mxu0
    %v1034 = vadd.f32 %v744, %v1033
    %v1035 = vpop.f32.mrb[0].mxu0
    %v1036 = vadd.f32 %v740, %v1035
    %v1037 = vpop.f32.mrb[0].mxu0
    %v1038 = vadd.f32 %v744, %v1037
    %1039 = vmatprep.mubr.bf16.mxu0 %v698
    %1040 = vmatmul.mubr.bf16.gmra.mrb[0].mxu0 %v697
    %v1041 = vpop.f32.mrb[0].mxu0
    %v1042 = vadd.f32 %v740, %v1041
    %v1043 = vpop.f32.mrb[0].mxu0
    %v1044 = vadd.f32 %v744, %v1043
    %v1045 = vpop.f32.mrb[0].mxu0
    %v1046 = vadd.f32 %v740, %v1045
    %v1047 = vpop.f32.mrb[0].mxu0
    %v1048 = vadd.f32 %v744, %v1047
    %1049 = vmatprep.mubr.bf16.mxu0 %v700
    %1050 = vmatmul.mubr.bf16.gmra.mrb[0].mxu0 %v699
    %v1051 = vpop.f32.mrb[0].mxu0
    %v1052 = vadd.f32 %v740, %v1051
    %v1053 = vpop.f32.mrb[0].mxu0
    %v1054 = vadd.f32 %v744, %v1053
    %v1055 = vpop.f32.mrb[0].mxu0
    %v1056 = vadd.f32 %v740, %v1055
    %v1057 = vpop.f32.mrb[0].mxu0
    %v1058 = vadd.f32 %v744, %v1057
    %1059 = vmatprep.mubr.bf16.mxu0 %v702
    %1060 = vmatmul.mubr.bf16.gmra.mrb[0].mxu0 %v701
    %v1061 = vpop.f32.mrb[0].mxu0
    %v1062 = vadd.f32 %v740, %v1061
    %v1063 = vpop.f32.mrb[0].mxu0
    %v1064 = vadd.f32 %v744, %v1063
    %v1065 = vpop.f32.mrb[0].mxu0
    %v1066 = vpop.f32.mrb[0].mxu0
    %1067 = vdwg.mxu0
    %v1068 = vtanh.pop %v942
    %v1069 = vtanh.pop %v944
    %v1070 = vtanh.pop %v946
    %v1071 = vtanh.pop %v948
    %v1072 = vtanh.pop %v952
    %v1073 = vtanh.pop %v954
    %v1074 = vtanh.pop %v956
    %v1075 = vtanh.pop %v958
    %v1076 = vtanh.pop %v962
    %v1077 = vtanh.pop %v964
    %v1078 = vtanh.pop %v966
    %v1079 = vtanh.pop %v968
    %v1080 = vtanh.pop %v972
    %v1081 = vtanh.pop %v974
    %v1082 = vtanh.pop %v976
    %v1083 = vtanh.pop %v978
    %v1084 = vtanh.pop %v982
    %v1085 = vtanh.pop %v984
    %v1086 = vtanh.pop %v986
    %v1087 = vtanh.pop %v988
    %v1088 = vtanh.pop %v992
    %v1089 = vtanh.pop %v994
    %v1090 = vtanh.pop %v996
    %v1091 = vtanh.pop %v998
    %v1092 = vtanh.pop %v1002
    %v1093 = vtanh.pop %v1004
    %v1094 = vtanh.pop %v1006
    %v1095 = vtanh.pop %v1008
    %v1096 = vtanh.pop %v1012
    %v1097 = vtanh.pop %v1014
    %v1098 = vtanh.pop %v1016
    %v1099 = vtanh.pop %v1018
    %v1100 = vtanh.pop %v1022
    %v1101 = vtanh.pop %v1024
    %v1102 = vtanh.pop %v1026
    %v1103 = vtanh.pop %v1028
    %v1104 = vtanh.pop %v1032
    %v1105 = vtanh.pop %v1034
    %v1106 = vtanh.pop %v1036
    %v1107 = vtanh.pop %v1038
    %v1108 = vtanh.pop %v1042
    %v1109 = vtanh.pop %v1044
    %v1110 = vtanh.pop %v1046
    %v1111 = vtanh.pop %v1048
    %v1112 = vtanh.pop %v1052
    %v1113 = vtanh.pop %v1054
    %v1114 = vtanh.pop %v1056
    %v1115 = vtanh.pop %v1058
    %v1116 = vtanh.pop %v1062
    %v1117 = vtanh.pop %v1064
    %v1118 = vpack.c.bf16 %v1070, %v1068
    %v1119 = vpack.c.bf16 %v1071, %v1069
    %v1120 = vpack.c.bf16 %v1074, %v1072
    %v1121 = vpack.c.bf16 %v1075, %v1073
    %v1122 = vpack.c.bf16 %v1078, %v1076
    %v1123 = vpack.c.bf16 %v1079, %v1077
    %v1124 = vpack.c.bf16 %v1082, %v1080
    %v1125 = vpack.c.bf16 %v1083, %v1081
    %v1126 = vpack.c.bf16 %v1086, %v1084
    %v1127 = vpack.c.bf16 %v1087, %v1085
    %v1128 = vpack.c.bf16 %v1090, %v1088
    %v1129 = vpack.c.bf16 %v1091, %v1089
    %v1130 = vpack.c.bf16 %v1094, %v1092
    %v1131 = vpack.c.bf16 %v1095, %v1093
    %v1132 = vpack.c.bf16 %v1098, %v1096
    %v1133 = vpack.c.bf16 %v1099, %v1097
    %v1134 = vpack.c.bf16 %v1102, %v1100
    %v1135 = vpack.c.bf16 %v1103, %v1101
    %v1136 = vpack.c.bf16 %v1106, %v1104
    %v1137 = vpack.c.bf16 %v1107, %v1105
    %v1138 = vpack.c.bf16 %v1110, %v1108
    %v1139 = vpack.c.bf16 %v1111, %v1109
    %v1140 = vpack.c.bf16 %v1114, %v1112
    %v1141 = vpack.c.bf16 %v1115, %v1113
    %v1142 = vpack.c.bf16 %v1116, %v1116
    %v1143 = vpack.c.bf16 %v1117, %v1117
    %v1144 = vld [vmem:[#allocation9] sm:$0xff]
    %v1145 = vld [vmem:[#allocation9 + $0x8] sm:$0xff]
    %v1146 = vld [vmem:[#allocation9 + $0x10] sm:$0xff]
    %v1147 = vld [vmem:[#allocation9 + $0x18] sm:$0xff]
    %v1148 = vld [vmem:[#allocation9 + $0x20] sm:$0xff]
    %v1149 = vld [vmem:[#allocation9 + $0x28] sm:$0xff]
    %v1150 = vld [vmem:[#allocation9 + $0x30] sm:$0xff]
    %v1151 = vld [vmem:[#allocation9 + $0x38] sm:$0xff]
    %v1152 = vld [vmem:[#allocation9 + $0x40] sm:$0xff]
    %v1153 = vld [vmem:[#allocation9 + $0x48] sm:$0xff]
    %v1154 = vld [vmem:[#allocation9 + $0x50] sm:$0xff]
    %v1155 = vld [vmem:[#allocation9 + $0x58] sm:$0xff]
    %v1156 = vld [vmem:[#allocation9 + $0x60] sm:$0xff]
    %v1157 = vld [vmem:[#allocation9 + $0x68] sm:$0xff]
    %v1158 = vld [vmem:[#allocation9 + $0x70] sm:$0xff]
    %v1159 = vld [vmem:[#allocation9 + $0x78] sm:$0xff]
    %v1160 = vld [vmem:[#allocation9 + $0x80] sm:$0xff]
    %v1161 = vld [vmem:[#allocation9 + $0x88] sm:$0xff]
    %v1162 = vld [vmem:[#allocation9 + $0x90] sm:$0xff]
    %v1163 = vld [vmem:[#allocation9 + $0x98] sm:$0xff]
    %v1164 = vld [vmem:[#allocation9 + $0xa0] sm:$0xff]
    %v1165 = vld [vmem:[#allocation9 + $0xa8] sm:$0xff]
    %v1166 = vld [vmem:[#allocation9 + $0xb0] sm:$0xff]
    %v1167 = vld [vmem:[#allocation9 + $0xb8] sm:$0xff]
    %v1168 = vld [vmem:[#allocation9 + $0xc0] sm:$0xff]
    %v1169 = vld [vmem:[#allocation9 + $0xc8] sm:$0xff]
    %v1170 = vld [vmem:[#allocation9 + $0xd0] sm:$0xff]
    %v1171 = vld [vmem:[#allocation9 + $0xd8] sm:$0xff]
    %v1172 = vld [vmem:[#allocation9 + $0xe0] sm:$0xff]
    %v1173 = vld [vmem:[#allocation9 + $0xe8] sm:$0xff]
    %v1174 = vld [vmem:[#allocation9 + $0xf0] sm:$0xff]
    %v1175 = vld [vmem:[#allocation9 + $0xf8] sm:$0xff]
    %v1176 = vld [vmem:[%s6] sm:$0x3]
    %v1178 = vlaneseq
    %v1179 = vshrl.u32 %v1178, 7
    %v1180 = vsub.s32 0, %v1179
    %v1181 = vrot.slane %v1176, %v1180
    %v1182 = vlaneseq
    %v1183 = vshrl.u32 %v1182, 7
    %v1184 = vsub.s32 1, %v1183
    %v1185 = vrot.slane %v1176, %v1184
    %v1220 = vunpack.c.l.b16 %v1144
    %v1221 = vunpack.c.h.b16 %v1144
    %v1222 = vunpack.c.l.b16 %v1145
    %v1223 = vunpack.c.h.b16 %v1145
    %v1224 = vunpack.c.l.b16 %v1146
    %v1225 = vunpack.c.h.b16 %v1146
    %v1226 = vunpack.c.l.b16 %v1147
    %v1227 = vunpack.c.h.b16 %v1147
    %v1228 = vunpack.c.l.b16 %v1148
    %v1229 = vunpack.c.h.b16 %v1148
    %v1230 = vunpack.c.l.b16 %v1149
    %v1231 = vunpack.c.h.b16 %v1149
    %v1232 = vunpack.c.l.b16 %v1150
    %v1233 = vunpack.c.h.b16 %v1150
    %v1234 = vunpack.c.l.b16 %v1151
    %v1235 = vunpack.c.h.b16 %v1151
    %v1236 = vunpack.c.l.b16 %v1152
    %v1237 = vunpack.c.h.b16 %v1152
    %v1238 = vunpack.c.l.b16 %v1153
    %v1239 = vunpack.c.h.b16 %v1153
    %v1240 = vunpack.c.l.b16 %v1154
    %v1241 = vunpack.c.h.b16 %v1154
    %v1242 = vunpack.c.l.b16 %v1155
    %v1243 = vunpack.c.h.b16 %v1155
    %v1244 = vunpack.c.l.b16 %v1156
    %v1245 = vunpack.c.h.b16 %v1156
    %v1246 = vunpack.c.l.b16 %v1157
    %v1247 = vunpack.c.h.b16 %v1157
    %v1248 = vunpack.c.l.b16 %v1158
    %v1249 = vunpack.c.h.b16 %v1158
    %v1250 = vunpack.c.l.b16 %v1159
    %v1251 = vunpack.c.h.b16 %v1159
    %v1252 = vunpack.c.l.b16 %v1160
    %v1253 = vunpack.c.h.b16 %v1160
    %v1254 = vunpack.c.l.b16 %v1161
    %v1255 = vunpack.c.h.b16 %v1161
    %v1256 = vunpack.c.l.b16 %v1162
    %v1257 = vunpack.c.h.b16 %v1162
    %v1258 = vunpack.c.l.b16 %v1163
    %v1259 = vunpack.c.h.b16 %v1163
    %v1260 = vunpack.c.l.b16 %v1164
    %v1261 = vunpack.c.h.b16 %v1164
    %v1262 = vunpack.c.l.b16 %v1165
    %v1263 = vunpack.c.h.b16 %v1165
    %v1264 = vunpack.c.l.b16 %v1166
    %v1265 = vunpack.c.h.b16 %v1166
    %v1266 = vunpack.c.l.b16 %v1167
    %v1267 = vunpack.c.h.b16 %v1167
    %v1268 = vunpack.c.l.b16 %v1168
    %v1269 = vunpack.c.h.b16 %v1168
    %v1270 = vunpack.c.l.b16 %v1169
    %v1271 = vunpack.c.h.b16 %v1169
    %v1272 = vunpack.c.l.b16 %v1170
    %v1273 = vunpack.c.h.b16 %v1170
    %v1274 = vunpack.c.l.b16 %v1171
    %v1275 = vunpack.c.h.b16 %v1171
    %v1276 = vunpack.c.l.b16 %v1172
    %v1277 = vunpack.c.h.b16 %v1172
    %v1278 = vunpack.c.l.b16 %v1173
    %v1279 = vunpack.c.h.b16 %v1173
    %v1280 = vunpack.c.l.b16 %v1174
    %v1281 = vunpack.c.h.b16 %v1174
    %v1282 = vunpack.c.l.b16 %v1175
    %v1283 = vunpack.c.h.b16 %v1175
    %v1284 = vpack.c.b16 %v1222, %v1220
    %v1285 = vpack.c.b16 %v1223, %v1221
    %v1286 = vpack.c.b16 %v1226, %v1224
    %v1287 = vpack.c.b16 %v1227, %v1225
    %v1288 = vpack.c.b16 %v1230, %v1228
    %v1289 = vpack.c.b16 %v1231, %v1229
    %v1290 = vpack.c.b16 %v1234, %v1232
    %v1291 = vpack.c.b16 %v1235, %v1233
    %v1292 = vpack.c.b16 %v1238, %v1236
    %v1293 = vpack.c.b16 %v1239, %v1237
    %v1294 = vpack.c.b16 %v1242, %v1240
    %v1295 = vpack.c.b16 %v1243, %v1241
    %v1296 = vpack.c.b16 %v1246, %v1244
    %v1297 = vpack.c.b16 %v1247, %v1245
    %v1298 = vpack.c.b16 %v1250, %v1248
    %v1299 = vpack.c.b16 %v1251, %v1249
    %v1300 = vpack.c.b16 %v1254, %v1252
    %v1301 = vpack.c.b16 %v1255, %v1253
    %v1302 = vpack.c.b16 %v1258, %v1256
    %v1303 = vpack.c.b16 %v1259, %v1257
    %v1304 = vpack.c.b16 %v1262, %v1260
    %v1305 = vpack.c.b16 %v1263, %v1261
    %v1306 = vpack.c.b16 %v1266, %v1264
    %v1307 = vpack.c.b16 %v1267, %v1265
    %v1308 = vpack.c.b16 %v1270, %v1268
    %v1309 = vpack.c.b16 %v1271, %v1269
    %v1310 = vpack.c.b16 %v1274, %v1272
    %v1311 = vpack.c.b16 %v1275, %v1273
    %v1312 = vpack.c.b16 %v1278, %v1276
    %v1313 = vpack.c.b16 %v1279, %v1277
    %v1314 = vpack.c.b16 %v1282, %v1280
    %v1315 = vpack.c.b16 %v1283, %v1281
    %1348 = vmatprep.subr.bf16.mxu0 %v1285
    %1349 = vmatpush1.bf16.msra.mxu0 %v1284
    %1350 = vmatprep.subr.bf16.mxu0 %v1287
    %1351 = vmatpush1.bf16.msra.mxu0 %v1286
    %1352 = vmatprep.subr.bf16.mxu0 %v1289
    %1353 = vmatpush1.bf16.msra.mxu0 %v1288
    %1354 = vmatprep.subr.bf16.mxu0 %v1291
    %1355 = vmatpush1.bf16.msra.mxu0 %v1290
    %1356 = vmatprep.subr.bf16.mxu0 %v1293
    %1357 = vmatpush1.bf16.msra.mxu0 %v1292
    %1358 = vmatprep.subr.bf16.mxu0 %v1295
    %1359 = vmatpush1.bf16.msra.mxu0 %v1294
    %1360 = vmatprep.subr.bf16.mxu0 %v1297
    %1361 = vmatpush1.bf16.msra.mxu0 %v1296
    %1362 = vmatprep.subr.bf16.mxu0 %v1299
    %1363 = vmatpush1.bf16.msra.mxu0 %v1298
    %1364 = vmatprep.subr.bf16.mxu0 %v1301
    %1365 = vmatpush1.bf16.msra.mxu0 %v1300
    %1366 = vmatprep.subr.bf16.mxu0 %v1303
    %1367 = vmatpush1.bf16.msra.mxu0 %v1302
    %1368 = vmatprep.subr.bf16.mxu0 %v1305
    %1369 = vmatpush1.bf16.msra.mxu0 %v1304
    %1370 = vmatprep.subr.bf16.mxu0 %v1307
    %1371 = vmatpush1.bf16.msra.mxu0 %v1306
    %1372 = vmatprep.subr.bf16.mxu0 %v1309
    %1373 = vmatpush1.bf16.msra.mxu0 %v1308
    %1374 = vmatprep.subr.bf16.mxu0 %v1311
    %1375 = vmatpush1.bf16.msra.mxu0 %v1310
    %1376 = vmatprep.subr.bf16.mxu0 %v1313
    %1377 = vmatpush1.bf16.msra.mxu0 %v1312
    %1378 = vmatprep.subr.bf16.mxu0 %v1315
    %1379 = vmatpush1.bf16.msra.mxu0 %v1314
    %1380 = vmatprep.mubr.bf16.mxu0 %v1119
    %1381 = vmatmul.mubr.bf16.gmra.mrb[0].mxu0 %v1118
    %v1382 = vpop.f32.mrb[0].mxu0
    %v1383 = vadd.f32 %v1181, %v1382
    %v1384 = vpop.f32.mrb[0].mxu0
    %v1385 = vadd.f32 %v1185, %v1384
    %v1386 = vpop.f32.mrb[0].mxu0
    %v1387 = vadd.f32 %v1181, %v1386
    %v1388 = vpop.f32.mrb[0].mxu0
    %v1389 = vadd.f32 %v1185, %v1388
    %1390 = vmatprep.mubr.bf16.mxu0 %v1121
    %1391 = vmatmul.mubr.bf16.gmra.mrb[0].mxu0 %v1120
    %v1392 = vpop.f32.mrb[0].mxu0
    %v1393 = vadd.f32 %v1181, %v1392
    %v1394 = vpop.f32.mrb[0].mxu0
    %v1395 = vadd.f32 %v1185, %v1394
    %v1396 = vpop.f32.mrb[0].mxu0
    %v1397 = vadd.f32 %v1181, %v1396
    %v1398 = vpop.f32.mrb[0].mxu0
    %v1399 = vadd.f32 %v1185, %v1398
    %1400 = vmatprep.mubr.bf16.mxu0 %v1123
    %1401 = vmatmul.mubr.bf16.gmra.mrb[0].mxu0 %v1122
    %v1402 = vpop.f32.mrb[0].mxu0
    %v1403 = vadd.f32 %v1181, %v1402
    %v1404 = vpop.f32.mrb[0].mxu0
    %v1405 = vadd.f32 %v1185, %v1404
    %v1406 = vpop.f32.mrb[0].mxu0
    %v1407 = vadd.f32 %v1181, %v1406
    %v1408 = vpop.f32.mrb[0].mxu0
    %v1409 = vadd.f32 %v1185, %v1408
    %1410 = vmatprep.mubr.bf16.mxu0 %v1125
    %1411 = vmatmul.mubr.bf16.gmra.mrb[0].mxu0 %v1124
    %v1412 = vpop.f32.mrb[0].mxu0
    %v1413 = vadd.f32 %v1181, %v1412
    %v1414 = vpop.f32.mrb[0].mxu0
    %v1415 = vadd.f32 %v1185, %v1414
    %v1416 = vpop.f32.mrb[0].mxu0
    %v1417 = vadd.f32 %v1181, %v1416
    %v1418 = vpop.f32.mrb[0].mxu0
    %v1419 = vadd.f32 %v1185, %v1418
    %1420 = vmatprep.mubr.bf16.mxu0 %v1127
    %1421 = vmatmul.mubr.bf16.gmra.mrb[0].mxu0 %v1126
    %v1422 = vpop.f32.mrb[0].mxu0
    %v1423 = vadd.f32 %v1181, %v1422
    %v1424 = vpop.f32.mrb[0].mxu0
    %v1425 = vadd.f32 %v1185, %v1424
    %v1426 = vpop.f32.mrb[0].mxu0
    %v1427 = vadd.f32 %v1181, %v1426
    %v1428 = vpop.f32.mrb[0].mxu0
    %v1429 = vadd.f32 %v1185, %v1428
    %1430 = vmatprep.mubr.bf16.mxu0 %v1129
    %1431 = vmatmul.mubr.bf16.gmra.mrb[0].mxu0 %v1128
    %v1432 = vpop.f32.mrb[0].mxu0
    %v1433 = vadd.f32 %v1181, %v1432
    %v1434 = vpop.f32.mrb[0].mxu0
    %v1435 = vadd.f32 %v1185, %v1434
    %v1436 = vpop.f32.mrb[0].mxu0
    %v1437 = vadd.f32 %v1181, %v1436
    %v1438 = vpop.f32.mrb[0].mxu0
    %v1439 = vadd.f32 %v1185, %v1438
    %1440 = vmatprep.mubr.bf16.mxu0 %v1131
    %1441 = vmatmul.mubr.bf16.gmra.mrb[0].mxu0 %v1130
    %v1442 = vpop.f32.mrb[0].mxu0
    %v1443 = vadd.f32 %v1181, %v1442
    %v1444 = vpop.f32.mrb[0].mxu0
    %v1445 = vadd.f32 %v1185, %v1444
    %v1446 = vpop.f32.mrb[0].mxu0
    %v1447 = vadd.f32 %v1181, %v1446
    %v1448 = vpop.f32.mrb[0].mxu0
    %v1449 = vadd.f32 %v1185, %v1448
    %1450 = vmatprep.mubr.bf16.mxu0 %v1133
    %1451 = vmatmul.mubr.bf16.gmra.mrb[0].mxu0 %v1132
    %v1452 = vpop.f32.mrb[0].mxu0
    %v1453 = vadd.f32 %v1181, %v1452
    %v1454 = vpop.f32.mrb[0].mxu0
    %v1455 = vadd.f32 %v1185, %v1454
    %v1456 = vpop.f32.mrb[0].mxu0
    %v1457 = vadd.f32 %v1181, %v1456
    %v1458 = vpop.f32.mrb[0].mxu0
    %v1459 = vadd.f32 %v1185, %v1458
    %1460 = vmatprep.mubr.bf16.mxu0 %v1135
    %1461 = vmatmul.mubr.bf16.gmra.mrb[0].mxu0 %v1134
    %v1462 = vpop.f32.mrb[0].mxu0
    %v1463 = vadd.f32 %v1181, %v1462
    %v1464 = vpop.f32.mrb[0].mxu0
    %v1465 = vadd.f32 %v1185, %v1464
    %v1466 = vpop.f32.mrb[0].mxu0
    %v1467 = vadd.f32 %v1181, %v1466
    %v1468 = vpop.f32.mrb[0].mxu0
    %v1469 = vadd.f32 %v1185, %v1468
    %1470 = vmatprep.mubr.bf16.mxu0 %v1137
    %1471 = vmatmul.mubr.bf16.gmra.mrb[0].mxu0 %v1136
    %v1472 = vpop.f32.mrb[0].mxu0
    %v1473 = vadd.f32 %v1181, %v1472
    %v1474 = vpop.f32.mrb[0].mxu0
    %v1475 = vadd.f32 %v1185, %v1474
    %v1476 = vpop.f32.mrb[0].mxu0
    %v1477 = vadd.f32 %v1181, %v1476
    %v1478 = vpop.f32.mrb[0].mxu0
    %v1479 = vadd.f32 %v1185, %v1478
    %1480 = vmatprep.mubr.bf16.mxu0 %v1139
    %1481 = vmatmul.mubr.bf16.gmra.mrb[0].mxu0 %v1138
    %v1482 = vpop.f32.mrb[0].mxu0
    %v1483 = vadd.f32 %v1181, %v1482
    %v1484 = vpop.f32.mrb[0].mxu0
    %v1485 = vadd.f32 %v1185, %v1484
    %v1486 = vpop.f32.mrb[0].mxu0
    %v1487 = vadd.f32 %v1181, %v1486
    %v1488 = vpop.f32.mrb[0].mxu0
    %v1489 = vadd.f32 %v1185, %v1488
    %1490 = vmatprep.mubr.bf16.mxu0 %v1141
    %1491 = vmatmul.mubr.bf16.gmra.mrb[0].mxu0 %v1140
    %v1492 = vpop.f32.mrb[0].mxu0
    %v1493 = vadd.f32 %v1181, %v1492
    %v1494 = vpop.f32.mrb[0].mxu0
    %v1495 = vadd.f32 %v1185, %v1494
    %v1496 = vpop.f32.mrb[0].mxu0
    %v1497 = vadd.f32 %v1181, %v1496
    %v1498 = vpop.f32.mrb[0].mxu0
    %v1499 = vadd.f32 %v1185, %v1498
    %1500 = vmatprep.mubr.bf16.mxu0 %v1143
    %1501 = vmatmul.mubr.bf16.gmra.mrb[0].mxu0 %v1142
    %v1502 = vpop.f32.mrb[0].mxu0
    %v1503 = vadd.f32 %v1181, %v1502
    %v1504 = vpop.f32.mrb[0].mxu0
    %v1505 = vadd.f32 %v1185, %v1504
    %v1506 = vpop.f32.mrb[0].mxu0
    %v1507 = vpop.f32.mrb[0].mxu0
    %1508 = vdwg.mxu0
    %v1509 = vtanh.pop %v1383
    %v1510 = vtanh.pop %v1385
    %v1511 = vtanh.pop %v1387
    %v1512 = vtanh.pop %v1389
    %v1513 = vtanh.pop %v1393
    %v1514 = vtanh.pop %v1395
    %v1515 = vtanh.pop %v1397
    %v1516 = vtanh.pop %v1399
    %v1517 = vtanh.pop %v1403
    %v1518 = vtanh.pop %v1405
    %v1519 = vtanh.pop %v1407
    %v1520 = vtanh.pop %v1409
    %v1521 = vtanh.pop %v1413
    %v1522 = vtanh.pop %v1415
    %v1523 = vtanh.pop %v1417
    %v1524 = vtanh.pop %v1419
    %v1525 = vtanh.pop %v1423
    %v1526 = vtanh.pop %v1425
    %v1527 = vtanh.pop %v1427
    %v1528 = vtanh.pop %v1429
    %v1529 = vtanh.pop %v1433
    %v1530 = vtanh.pop %v1435
    %v1531 = vtanh.pop %v1437
    %v1532 = vtanh.pop %v1439
    %v1533 = vtanh.pop %v1443
    %v1534 = vtanh.pop %v1445
    %v1535 = vtanh.pop %v1447
    %v1536 = vtanh.pop %v1449
    %v1537 = vtanh.pop %v1453
    %v1538 = vtanh.pop %v1455
    %v1539 = vtanh.pop %v1457
    %v1540 = vtanh.pop %v1459
    %v1541 = vtanh.pop %v1463
    %v1542 = vtanh.pop %v1465
    %v1543 = vtanh.pop %v1467
    %v1544 = vtanh.pop %v1469
    %v1545 = vtanh.pop %v1473
    %v1546 = vtanh.pop %v1475
    %v1547 = vtanh.pop %v1477
    %v1548 = vtanh.pop %v1479
    %v1549 = vtanh.pop %v1483
    %v1550 = vtanh.pop %v1485
    %v1551 = vtanh.pop %v1487
    %v1552 = vtanh.pop %v1489
    %v1553 = vtanh.pop %v1493
    %v1554 = vtanh.pop %v1495
    %v1555 = vtanh.pop %v1497
    %v1556 = vtanh.pop %v1499
    %v1557 = vtanh.pop %v1503
    %v1558 = vtanh.pop %v1505
    %v1559 = vpack.c.bf16 %v1511, %v1509
    %v1560 = vpack.c.bf16 %v1512, %v1510
    %v1561 = vpack.c.bf16 %v1515, %v1513
    %v1562 = vpack.c.bf16 %v1516, %v1514
    %v1563 = vpack.c.bf16 %v1519, %v1517
    %v1564 = vpack.c.bf16 %v1520, %v1518
    %v1565 = vpack.c.bf16 %v1523, %v1521
    %v1566 = vpack.c.bf16 %v1524, %v1522
    %v1567 = vpack.c.bf16 %v1527, %v1525
    %v1568 = vpack.c.bf16 %v1528, %v1526
    %v1569 = vpack.c.bf16 %v1531, %v1529
    %v1570 = vpack.c.bf16 %v1532, %v1530
    %v1571 = vpack.c.bf16 %v1535, %v1533
    %v1572 = vpack.c.bf16 %v1536, %v1534
    %v1573 = vpack.c.bf16 %v1539, %v1537
    %v1574 = vpack.c.bf16 %v1540, %v1538
    %v1575 = vpack.c.bf16 %v1543, %v1541
    %v1576 = vpack.c.bf16 %v1544, %v1542
    %v1577 = vpack.c.bf16 %v1547, %v1545
    %v1578 = vpack.c.bf16 %v1548, %v1546
    %v1579 = vpack.c.bf16 %v1551, %v1549
    %v1580 = vpack.c.bf16 %v1552, %v1550
    %v1581 = vpack.c.bf16 %v1555, %v1553
    %v1582 = vpack.c.bf16 %v1556, %v1554
    %v1583 = vpack.c.bf16 %v1557, %v1557
    %v1584 = vpack.c.bf16 %v1558, %v1558
    %v1585 = vld [vmem:[#allocation11] sm:$0xff]
    %v1586 = vld [vmem:[#allocation11 + $0x8] sm:$0xff]
    %v1587 = vld [vmem:[#allocation11 + $0x10] sm:$0xff]
    %v1588 = vld [vmem:[#allocation11 + $0x18] sm:$0xff]
    %v1589 = vld [vmem:[#allocation11 + $0x20] sm:$0xff]
    %v1590 = vld [vmem:[#allocation11 + $0x28] sm:$0xff]
    %v1591 = vld [vmem:[#allocation11 + $0x30] sm:$0xff]
    %v1592 = vld [vmem:[#allocation11 + $0x38] sm:$0xff]
    %v1593 = vld [vmem:[#allocation11 + $0x40] sm:$0xff]
    %v1594 = vld [vmem:[#allocation11 + $0x48] sm:$0xff]
    %v1595 = vld [vmem:[#allocation11 + $0x50] sm:$0xff]
    %v1596 = vld [vmem:[#allocation11 + $0x58] sm:$0xff]
    %v1597 = vld [vmem:[#allocation11 + $0x60] sm:$0xff]
    %v1598 = vld [vmem:[#allocation11 + $0x68] sm:$0xff]
    %v1599 = vld [vmem:[#allocation11 + $0x70] sm:$0xff]
    %v1600 = vld [vmem:[#allocation11 + $0x78] sm:$0xff]
    %v1601 = vld [vmem:[#allocation11 + $0x80] sm:$0xff]
    %v1602 = vld [vmem:[#allocation11 + $0x88] sm:$0xff]
    %v1603 = vld [vmem:[#allocation11 + $0x90] sm:$0xff]
    %v1604 = vld [vmem:[#allocation11 + $0x98] sm:$0xff]
    %v1605 = vld [vmem:[#allocation11 + $0xa0] sm:$0xff]
    %v1606 = vld [vmem:[#allocation11 + $0xa8] sm:$0xff]
    %v1607 = vld [vmem:[#allocation11 + $0xb0] sm:$0xff]
    %v1608 = vld [vmem:[#allocation11 + $0xb8] sm:$0xff]
    %v1609 = vld [vmem:[#allocation11 + $0xc0] sm:$0xff]
    %v1610 = vld [vmem:[#allocation11 + $0xc8] sm:$0xff]
    %v1611 = vld [vmem:[#allocation11 + $0xd0] sm:$0xff]
    %v1612 = vld [vmem:[#allocation11 + $0xd8] sm:$0xff]
    %v1613 = vld [vmem:[#allocation11 + $0xe0] sm:$0xff]
    %v1614 = vld [vmem:[#allocation11 + $0xe8] sm:$0xff]
    %v1615 = vld [vmem:[#allocation11 + $0xf0] sm:$0xff]
    %v1616 = vld [vmem:[#allocation11 + $0xf8] sm:$0xff]
    %v1617 = vld [vmem:[%s8] sm:$0x3]
    %v1619 = vlaneseq
    %v1620 = vshrl.u32 %v1619, 7
    %v1621 = vsub.s32 0, %v1620
    %v1622 = vrot.slane %v1617, %v1621
    %v1623 = vlaneseq
    %v1624 = vshrl.u32 %v1623, 7
    %v1625 = vsub.s32 1, %v1624
    %v1626 = vrot.slane %v1617, %v1625
    %v1661 = vunpack.c.l.b16 %v1585
    %v1662 = vunpack.c.h.b16 %v1585
    %v1663 = vunpack.c.l.b16 %v1586
    %v1664 = vunpack.c.h.b16 %v1586
    %v1665 = vunpack.c.l.b16 %v1587
    %v1666 = vunpack.c.h.b16 %v1587
    %v1667 = vunpack.c.l.b16 %v1588
    %v1668 = vunpack.c.h.b16 %v1588
    %v1669 = vunpack.c.l.b16 %v1589
    %v1670 = vunpack.c.h.b16 %v1589
    %v1671 = vunpack.c.l.b16 %v1590
    %v1672 = vunpack.c.h.b16 %v1590
    %v1673 = vunpack.c.l.b16 %v1591
    %v1674 = vunpack.c.h.b16 %v1591
    %v1675 = vunpack.c.l.b16 %v1592
    %v1676 = vunpack.c.h.b16 %v1592
    %v1677 = vunpack.c.l.b16 %v1593
    %v1678 = vunpack.c.h.b16 %v1593
    %v1679 = vunpack.c.l.b16 %v1594
    %v1680 = vunpack.c.h.b16 %v1594
    %v1681 = vunpack.c.l.b16 %v1595
    %v1682 = vunpack.c.h.b16 %v1595
    %v1683 = vunpack.c.l.b16 %v1596
    %v1684 = vunpack.c.h.b16 %v1596
    %v1685 = vunpack.c.l.b16 %v1597
    %v1686 = vunpack.c.h.b16 %v1597
    %v1687 = vunpack.c.l.b16 %v1598
    %v1688 = vunpack.c.h.b16 %v1598
    %v1689 = vunpack.c.l.b16 %v1599
    %v1690 = vunpack.c.h.b16 %v1599
    %v1691 = vunpack.c.l.b16 %v1600
    %v1692 = vunpack.c.h.b16 %v1600
    %v1693 = vunpack.c.l.b16 %v1601
    %v1694 = vunpack.c.h.b16 %v1601
    %v1695 = vunpack.c.l.b16 %v1602
    %v1696 = vunpack.c.h.b16 %v1602
    %v1697 = vunpack.c.l.b16 %v1603
    %v1698 = vunpack.c.h.b16 %v1603
    %v1699 = vunpack.c.l.b16 %v1604
    %v1700 = vunpack.c.h.b16 %v1604
    %v1701 = vunpack.c.l.b16 %v1605
    %v1702 = vunpack.c.h.b16 %v1605
    %v1703 = vunpack.c.l.b16 %v1606
    %v1704 = vunpack.c.h.b16 %v1606
    %v1705 = vunpack.c.l.b16 %v1607
    %v1706 = vunpack.c.h.b16 %v1607
    %v1707 = vunpack.c.l.b16 %v1608
    %v1708 = vunpack.c.h.b16 %v1608
    %v1709 = vunpack.c.l.b16 %v1609
    %v1710 = vunpack.c.h.b16 %v1609
    %v1711 = vunpack.c.l.b16 %v1610
    %v1712 = vunpack.c.h.b16 %v1610
    %v1713 = vunpack.c.l.b16 %v1611
    %v1714 = vunpack.c.h.b16 %v1611
    %v1715 = vunpack.c.l.b16 %v1612
    %v1716 = vunpack.c.h.b16 %v1612
    %v1717 = vunpack.c.l.b16 %v1613
    %v1718 = vunpack.c.h.b16 %v1613
    %v1719 = vunpack.c.l.b16 %v1614
    %v1720 = vunpack.c.h.b16 %v1614
    %v1721 = vunpack.c.l.b16 %v1615
    %v1722 = vunpack.c.h.b16 %v1615
    %v1723 = vunpack.c.l.b16 %v1616
    %v1724 = vunpack.c.h.b16 %v1616
    %v1725 = vpack.c.b16 %v1663, %v1661
    %v1726 = vpack.c.b16 %v1664, %v1662
    %v1727 = vpack.c.b16 %v1667, %v1665
    %v1728 = vpack.c.b16 %v1668, %v1666
    %v1729 = vpack.c.b16 %v1671, %v1669
    %v1730 = vpack.c.b16 %v1672, %v1670
    %v1731 = vpack.c.b16 %v1675, %v1673
    %v1732 = vpack.c.b16 %v1676, %v1674
    %v1733 = vpack.c.b16 %v1679, %v1677
    %v1734 = vpack.c.b16 %v1680, %v1678
    %v1735 = vpack.c.b16 %v1683, %v1681
    %v1736 = vpack.c.b16 %v1684, %v1682
    %v1737 = vpack.c.b16 %v1687, %v1685
    %v1738 = vpack.c.b16 %v1688, %v1686
    %v1739 = vpack.c.b16 %v1691, %v1689
    %v1740 = vpack.c.b16 %v1692, %v1690
    %v1741 = vpack.c.b16 %v1695, %v1693
    %v1742 = vpack.c.b16 %v1696, %v1694
    %v1743 = vpack.c.b16 %v1699, %v1697
    %v1744 = vpack.c.b16 %v1700, %v1698
    %v1745 = vpack.c.b16 %v1703, %v1701
    %v1746 = vpack.c.b16 %v1704, %v1702
    %v1747 = vpack.c.b16 %v1707, %v1705
    %v1748 = vpack.c.b16 %v1708, %v1706
    %v1749 = vpack.c.b16 %v1711, %v1709
    %v1750 = vpack.c.b16 %v1712, %v1710
    %v1751 = vpack.c.b16 %v1715, %v1713
    %v1752 = vpack.c.b16 %v1716, %v1714
    %v1753 = vpack.c.b16 %v1719, %v1717
    %v1754 = vpack.c.b16 %v1720, %v1718
    %v1755 = vpack.c.b16 %v1723, %v1721
    %v1756 = vpack.c.b16 %v1724, %v1722
    %1789 = vmatprep.subr.bf16.mxu0 %v1726
    %1790 = vmatpush1.bf16.msra.mxu0 %v1725
    %1791 = vmatprep.subr.bf16.mxu0 %v1728
    %1792 = vmatpush1.bf16.msra.mxu0 %v1727
    %1793 = vmatprep.subr.bf16.mxu0 %v1730
    %1794 = vmatpush1.bf16.msra.mxu0 %v1729
    %1795 = vmatprep.subr.bf16.mxu0 %v1732
    %1796 = vmatpush1.bf16.msra.mxu0 %v1731
    %1797 = vmatprep.subr.bf16.mxu0 %v1734
    %1798 = vmatpush1.bf16.msra.mxu0 %v1733
    %1799 = vmatprep.subr.bf16.mxu0 %v1736
    %1800 = vmatpush1.bf16.msra.mxu0 %v1735
    %1801 = vmatprep.subr.bf16.mxu0 %v1738
    %1802 = vmatpush1.bf16.msra.mxu0 %v1737
    %1803 = vmatprep.subr.bf16.mxu0 %v1740
    %1804 = vmatpush1.bf16.msra.mxu0 %v1739
    %1805 = vmatprep.subr.bf16.mxu0 %v1742
    %1806 = vmatpush1.bf16.msra.mxu0 %v1741
    %1807 = vmatprep.subr.bf16.mxu0 %v1744
    %1808 = vmatpush1.bf16.msra.mxu0 %v1743
    %1809 = vmatprep.subr.bf16.mxu0 %v1746
    %1810 = vmatpush1.bf16.msra.mxu0 %v1745
    %1811 = vmatprep.subr.bf16.mxu0 %v1748
    %1812 = vmatpush1.bf16.msra.mxu0 %v1747
    %1813 = vmatprep.subr.bf16.mxu0 %v1750
    %1814 = vmatpush1.bf16.msra.mxu0 %v1749
    %1815 = vmatprep.subr.bf16.mxu0 %v1752
    %1816 = vmatpush1.bf16.msra.mxu0 %v1751
    %1817 = vmatprep.subr.bf16.mxu0 %v1754
    %1818 = vmatpush1.bf16.msra.mxu0 %v1753
    %1819 = vmatprep.subr.bf16.mxu0 %v1756
    %1820 = vmatpush1.bf16.msra.mxu0 %v1755
    %1821 = vmatprep.mubr.bf16.mxu0 %v1560
    %1822 = vmatmul.mubr.bf16.gmra.mrb[0].mxu0 %v1559
    %v1823 = vpop.f32.mrb[0].mxu0
    %v1824 = vadd.f32 %v1622, %v1823
    %v1825 = vpop.f32.mrb[0].mxu0
    %v1826 = vadd.f32 %v1626, %v1825
    %v1827 = vpop.f32.mrb[0].mxu0
    %v1828 = vadd.f32 %v1622, %v1827
    %v1829 = vpop.f32.mrb[0].mxu0
    %v1830 = vadd.f32 %v1626, %v1829
    %1831 = vmatprep.mubr.bf16.mxu0 %v1562
    %1832 = vmatmul.mubr.bf16.gmra.mrb[0].mxu0 %v1561
    %v1833 = vpop.f32.mrb[0].mxu0
    %v1834 = vadd.f32 %v1622, %v1833
    %v1835 = vpop.f32.mrb[0].mxu0
    %v1836 = vadd.f32 %v1626, %v1835
    %v1837 = vpop.f32.mrb[0].mxu0
    %v1838 = vadd.f32 %v1622, %v1837
    %v1839 = vpop.f32.mrb[0].mxu0
    %v1840 = vadd.f32 %v1626, %v1839
    %1841 = vmatprep.mubr.bf16.mxu0 %v1564
    %1842 = vmatmul.mubr.bf16.gmra.mrb[0].mxu0 %v1563
    %v1843 = vpop.f32.mrb[0].mxu0
    %v1844 = vadd.f32 %v1622, %v1843
    %v1845 = vpop.f32.mrb[0].mxu0
    %v1846 = vadd.f32 %v1626, %v1845
    %v1847 = vpop.f32.mrb[0].mxu0
    %v1848 = vadd.f32 %v1622, %v1847
    %v1849 = vpop.f32.mrb[0].mxu0
    %v1850 = vadd.f32 %v1626, %v1849
    %1851 = vmatprep.mubr.bf16.mxu0 %v1566
    %1852 = vmatmul.mubr.bf16.gmra.mrb[0].mxu0 %v1565
    %v1853 = vpop.f32.mrb[0].mxu0
    %v1854 = vadd.f32 %v1622, %v1853
    %v1855 = vpop.f32.mrb[0].mxu0
    %v1856 = vadd.f32 %v1626, %v1855
    %v1857 = vpop.f32.mrb[0].mxu0
    %v1858 = vadd.f32 %v1622, %v1857
    %v1859 = vpop.f32.mrb[0].mxu0
    %v1860 = vadd.f32 %v1626, %v1859
    %1861 = vmatprep.mubr.bf16.mxu0 %v1568
    %1862 = vmatmul.mubr.bf16.gmra.mrb[0].mxu0 %v1567
    %v1863 = vpop.f32.mrb[0].mxu0
    %v1864 = vadd.f32 %v1622, %v1863
    %v1865 = vpop.f32.mrb[0].mxu0
    %v1866 = vadd.f32 %v1626, %v1865
    %v1867 = vpop.f32.mrb[0].mxu0
    %v1868 = vadd.f32 %v1622, %v1867
    %v1869 = vpop.f32.mrb[0].mxu0
    %v1870 = vadd.f32 %v1626, %v1869
    %1871 = vmatprep.mubr.bf16.mxu0 %v1570
    %1872 = vmatmul.mubr.bf16.gmra.mrb[0].mxu0 %v1569
    %v1873 = vpop.f32.mrb[0].mxu0
    %v1874 = vadd.f32 %v1622, %v1873
    %v1875 = vpop.f32.mrb[0].mxu0
    %v1876 = vadd.f32 %v1626, %v1875
    %v1877 = vpop.f32.mrb[0].mxu0
    %v1878 = vadd.f32 %v1622, %v1877
    %v1879 = vpop.f32.mrb[0].mxu0
    %v1880 = vadd.f32 %v1626, %v1879
    %1881 = vmatprep.mubr.bf16.mxu0 %v1572
    %1882 = vmatmul.mubr.bf16.gmra.mrb[0].mxu0 %v1571
    %v1883 = vpop.f32.mrb[0].mxu0
    %v1884 = vadd.f32 %v1622, %v1883
    %v1885 = vpop.f32.mrb[0].mxu0
    %v1886 = vadd.f32 %v1626, %v1885
    %v1887 = vpop.f32.mrb[0].mxu0
    %v1888 = vadd.f32 %v1622, %v1887
    %v1889 = vpop.f32.mrb[0].mxu0
    %v1890 = vadd.f32 %v1626, %v1889
    %1891 = vmatprep.mubr.bf16.mxu0 %v1574
    %1892 = vmatmul.mubr.bf16.gmra.mrb[0].mxu0 %v1573
    %v1893 = vpop.f32.mrb[0].mxu0
    %v1894 = vadd.f32 %v1622, %v1893
    %v1895 = vpop.f32.mrb[0].mxu0
    %v1896 = vadd.f32 %v1626, %v1895
    %v1897 = vpop.f32.mrb[0].mxu0
    %v1898 = vadd.f32 %v1622, %v1897
    %v1899 = vpop.f32.mrb[0].mxu0
    %v1900 = vadd.f32 %v1626, %v1899
    %1901 = vmatprep.mubr.bf16.mxu0 %v1576
    %1902 = vmatmul.mubr.bf16.gmra.mrb[0].mxu0 %v1575
    %v1903 = vpop.f32.mrb[0].mxu0
    %v1904 = vadd.f32 %v1622, %v1903
    %v1905 = vpop.f32.mrb[0].mxu0
    %v1906 = vadd.f32 %v1626, %v1905
    %v1907 = vpop.f32.mrb[0].mxu0
    %v1908 = vadd.f32 %v1622, %v1907
    %v1909 = vpop.f32.mrb[0].mxu0
    %v1910 = vadd.f32 %v1626, %v1909
    %1911 = vmatprep.mubr.bf16.mxu0 %v1578
    %1912 = vmatmul.mubr.bf16.gmra.mrb[0].mxu0 %v1577
    %v1913 = vpop.f32.mrb[0].mxu0
    %v1914 = vadd.f32 %v1622, %v1913
    %v1915 = vpop.f32.mrb[0].mxu0
    %v1916 = vadd.f32 %v1626, %v1915
    %v1917 = vpop.f32.mrb[0].mxu0
    %v1918 = vadd.f32 %v1622, %v1917
    %v1919 = vpop.f32.mrb[0].mxu0
    %v1920 = vadd.f32 %v1626, %v1919
    %1921 = vmatprep.mubr.bf16.mxu0 %v1580
    %1922 = vmatmul.mubr.bf16.gmra.mrb[0].mxu0 %v1579
    %v1923 = vpop.f32.mrb[0].mxu0
    %v1924 = vadd.f32 %v1622, %v1923
    %v1925 = vpop.f32.mrb[0].mxu0
    %v1926 = vadd.f32 %v1626, %v1925
    %v1927 = vpop.f32.mrb[0].mxu0
    %v1928 = vadd.f32 %v1622, %v1927
    %v1929 = vpop.f32.mrb[0].mxu0
    %v1930 = vadd.f32 %v1626, %v1929
    %1931 = vmatprep.mubr.bf16.mxu0 %v1582
    %1932 = vmatmul.mubr.bf16.gmra.mrb[0].mxu0 %v1581
    %v1933 = vpop.f32.mrb[0].mxu0
    %v1934 = vadd.f32 %v1622, %v1933
    %v1935 = vpop.f32.mrb[0].mxu0
    %v1936 = vadd.f32 %v1626, %v1935
    %v1937 = vpop.f32.mrb[0].mxu0
    %v1938 = vadd.f32 %v1622, %v1937
    %v1939 = vpop.f32.mrb[0].mxu0
    %v1940 = vadd.f32 %v1626, %v1939
    %1941 = vmatprep.mubr.bf16.mxu0 %v1584
    %1942 = vmatmul.mubr.bf16.gmra.mrb[0].mxu0 %v1583
    %v1943 = vpop.f32.mrb[0].mxu0
    %v1944 = vadd.f32 %v1622, %v1943
    %v1945 = vpop.f32.mrb[0].mxu0
    %v1946 = vadd.f32 %v1626, %v1945
    %v1947 = vpop.f32.mrb[0].mxu0
    %v1948 = vpop.f32.mrb[0].mxu0
    %1949 = vdwg.mxu0
    %v1950 = vtanh.pop %v1824
    %v1951 = vtanh.pop %v1826
    %v1952 = vtanh.pop %v1828
    %v1953 = vtanh.pop %v1830
    %v1954 = vtanh.pop %v1834
    %v1955 = vtanh.pop %v1836
    %v1956 = vtanh.pop %v1838
    %v1957 = vtanh.pop %v1840
    %v1958 = vtanh.pop %v1844
    %v1959 = vtanh.pop %v1846
    %v1960 = vtanh.pop %v1848
    %v1961 = vtanh.pop %v1850
    %v1962 = vtanh.pop %v1854
    %v1963 = vtanh.pop %v1856
    %v1964 = vtanh.pop %v1858
    %v1965 = vtanh.pop %v1860
    %v1966 = vtanh.pop %v1864
    %v1967 = vtanh.pop %v1866
    %v1968 = vtanh.pop %v1868
    %v1969 = vtanh.pop %v1870
    %v1970 = vtanh.pop %v1874
    %v1971 = vtanh.pop %v1876
    %v1972 = vtanh.pop %v1878
    %v1973 = vtanh.pop %v1880
    %v1974 = vtanh.pop %v1884
    %v1975 = vtanh.pop %v1886
    %v1976 = vtanh.pop %v1888
    %v1977 = vtanh.pop %v1890
    %v1978 = vtanh.pop %v1894
    %v1979 = vtanh.pop %v1896
    %v1980 = vtanh.pop %v1898
    %v1981 = vtanh.pop %v1900
    %v1982 = vtanh.pop %v1904
    %v1983 = vtanh.pop %v1906
    %v1984 = vtanh.pop %v1908
    %v1985 = vtanh.pop %v1910
    %v1986 = vtanh.pop %v1914
    %v1987 = vtanh.pop %v1916
    %v1988 = vtanh.pop %v1918
    %v1989 = vtanh.pop %v1920
    %v1990 = vtanh.pop %v1924
    %v1991 = vtanh.pop %v1926
    %v1992 = vtanh.pop %v1928
    %v1993 = vtanh.pop %v1930
    %v1994 = vtanh.pop %v1934
    %v1995 = vtanh.pop %v1936
    %v1996 = vtanh.pop %v1938
    %v1997 = vtanh.pop %v1940
    %v1998 = vtanh.pop %v1944
    %v1999 = vtanh.pop %v1946
    %v2000 = vpack.c.bf16 %v1952, %v1950
    %v2001 = vpack.c.bf16 %v1953, %v1951
    %v2002 = vpack.c.bf16 %v1956, %v1954
    %v2003 = vpack.c.bf16 %v1957, %v1955
    %v2004 = vpack.c.bf16 %v1960, %v1958
    %v2005 = vpack.c.bf16 %v1961, %v1959
    %v2006 = vpack.c.bf16 %v1964, %v1962
    %v2007 = vpack.c.bf16 %v1965, %v1963
    %v2008 = vpack.c.bf16 %v1968, %v1966
    %v2009 = vpack.c.bf16 %v1969, %v1967
    %v2010 = vpack.c.bf16 %v1972, %v1970
    %v2011 = vpack.c.bf16 %v1973, %v1971
    %v2012 = vpack.c.bf16 %v1976, %v1974
    %v2013 = vpack.c.bf16 %v1977, %v1975
    %v2014 = vpack.c.bf16 %v1980, %v1978
    %v2015 = vpack.c.bf16 %v1981, %v1979
    %v2016 = vpack.c.bf16 %v1984, %v1982
    %v2017 = vpack.c.bf16 %v1985, %v1983
    %v2018 = vpack.c.bf16 %v1988, %v1986
    %v2019 = vpack.c.bf16 %v1989, %v1987
    %v2020 = vpack.c.bf16 %v1992, %v1990
    %v2021 = vpack.c.bf16 %v1993, %v1991
    %v2022 = vpack.c.bf16 %v1996, %v1994
    %v2023 = vpack.c.bf16 %v1997, %v1995
    %v2024 = vpack.c.bf16 %v1998, %v1998
    %v2025 = vpack.c.bf16 %v1999, %v1999
    %v2026 = vld [vmem:[#allocation12] sm:$0xff]
    %v2027 = vld [vmem:[#allocation12 + $0x8] sm:$0xff]
    %v2028 = vld [vmem:[#allocation12 + $0x10] sm:$0xff]
    %v2029 = vld [vmem:[#allocation12 + $0x18] sm:$0xff]
    %v2030 = vld [vmem:[#allocation12 + $0x20] sm:$0xff]
    %v2031 = vld [vmem:[#allocation12 + $0x28] sm:$0xff]
    %v2032 = vld [vmem:[#allocation12 + $0x30] sm:$0xff]
    %v2033 = vld [vmem:[#allocation12 + $0x38] sm:$0xff]
    %v2034 = vld [vmem:[#allocation12 + $0x40] sm:$0xff]
    %v2035 = vld [vmem:[#allocation12 + $0x48] sm:$0xff]
    %v2036 = vld [vmem:[#allocation12 + $0x50] sm:$0xff]
    %v2037 = vld [vmem:[#allocation12 + $0x58] sm:$0xff]
    %v2038 = vld [vmem:[#allocation12 + $0x60] sm:$0xff]
    %v2039 = vld [vmem:[#allocation12 + $0x68] sm:$0xff]
    %v2040 = vld [vmem:[#allocation12 + $0x70] sm:$0xff]
    %v2041 = vld [vmem:[#allocation12 + $0x78] sm:$0xff]
    %v2042 = vld [vmem:[#allocation12 + $0x80] sm:$0xff]
    %v2043 = vld [vmem:[#allocation12 + $0x88] sm:$0xff]
    %v2044 = vld [vmem:[#allocation12 + $0x90] sm:$0xff]
    %v2045 = vld [vmem:[#allocation12 + $0x98] sm:$0xff]
    %v2046 = vld [vmem:[#allocation12 + $0xa0] sm:$0xff]
    %v2047 = vld [vmem:[#allocation12 + $0xa8] sm:$0xff]
    %v2048 = vld [vmem:[#allocation12 + $0xb0] sm:$0xff]
    %v2049 = vld [vmem:[#allocation12 + $0xb8] sm:$0xff]
    %v2050 = vld [vmem:[#allocation12 + $0xc0] sm:$0xff]
    %v2051 = vld [vmem:[#allocation12 + $0xc8] sm:$0xff]
    %v2052 = vld [vmem:[#allocation12 + $0xd0] sm:$0xff]
    %v2053 = vld [vmem:[#allocation12 + $0xd8] sm:$0xff]
    %v2054 = vld [vmem:[#allocation12 + $0xe0] sm:$0xff]
    %v2055 = vld [vmem:[#allocation12 + $0xe8] sm:$0xff]
    %v2056 = vld [vmem:[#allocation12 + $0xf0] sm:$0xff]
    %v2057 = vld [vmem:[#allocation12 + $0xf8] sm:$0xff]
    %v2058 = vld [vmem:[%s10] sm:$0x3]
    %v2060 = vlaneseq
    %v2061 = vshrl.u32 %v2060, 7
    %v2062 = vsub.s32 0, %v2061
    %v2063 = vrot.slane %v2058, %v2062
    %v2064 = vlaneseq
    %v2065 = vshrl.u32 %v2064, 7
    %v2066 = vsub.s32 1, %v2065
    %v2067 = vrot.slane %v2058, %v2066
    %v2102 = vunpack.c.l.b16 %v2026
    %v2103 = vunpack.c.h.b16 %v2026
    %v2104 = vunpack.c.l.b16 %v2027
    %v2105 = vunpack.c.h.b16 %v2027
    %v2106 = vunpack.c.l.b16 %v2028
    %v2107 = vunpack.c.h.b16 %v2028
    %v2108 = vunpack.c.l.b16 %v2029
    %v2109 = vunpack.c.h.b16 %v2029
    %v2110 = vunpack.c.l.b16 %v2030
    %v2111 = vunpack.c.h.b16 %v2030
    %v2112 = vunpack.c.l.b16 %v2031
    %v2113 = vunpack.c.h.b16 %v2031
    %v2114 = vunpack.c.l.b16 %v2032
    %v2115 = vunpack.c.h.b16 %v2032
    %v2116 = vunpack.c.l.b16 %v2033
    %v2117 = vunpack.c.h.b16 %v2033
    %v2118 = vunpack.c.l.b16 %v2034
    %v2119 = vunpack.c.h.b16 %v2034
    %v2120 = vunpack.c.l.b16 %v2035
    %v2121 = vunpack.c.h.b16 %v2035
    %v2122 = vunpack.c.l.b16 %v2036
    %v2123 = vunpack.c.h.b16 %v2036
    %v2124 = vunpack.c.l.b16 %v2037
    %v2125 = vunpack.c.h.b16 %v2037
    %v2126 = vunpack.c.l.b16 %v2038
    %v2127 = vunpack.c.h.b16 %v2038
    %v2128 = vunpack.c.l.b16 %v2039
    %v2129 = vunpack.c.h.b16 %v2039
    %v2130 = vunpack.c.l.b16 %v2040
    %v2131 = vunpack.c.h.b16 %v2040
    %v2132 = vunpack.c.l.b16 %v2041
    %v2133 = vunpack.c.h.b16 %v2041
    %v2134 = vunpack.c.l.b16 %v2042
    %v2135 = vunpack.c.h.b16 %v2042
    %v2136 = vunpack.c.l.b16 %v2043
    %v2137 = vunpack.c.h.b16 %v2043
    %v2138 = vunpack.c.l.b16 %v2044
    %v2139 = vunpack.c.h.b16 %v2044
    %v2140 = vunpack.c.l.b16 %v2045
    %v2141 = vunpack.c.h.b16 %v2045
    %v2142 = vunpack.c.l.b16 %v2046
    %v2143 = vunpack.c.h.b16 %v2046
    %v2144 = vunpack.c.l.b16 %v2047
    %v2145 = vunpack.c.h.b16 %v2047
    %v2146 = vunpack.c.l.b16 %v2048
    %v2147 = vunpack.c.h.b16 %v2048
    %v2148 = vunpack.c.l.b16 %v2049
    %v2149 = vunpack.c.h.b16 %v2049
    %v2150 = vunpack.c.l.b16 %v2050
    %v2151 = vunpack.c.h.b16 %v2050
    %v2152 = vunpack.c.l.b16 %v2051
    %v2153 = vunpack.c.h.b16 %v2051
    %v2154 = vunpack.c.l.b16 %v2052
    %v2155 = vunpack.c.h.b16 %v2052
    %v2156 = vunpack.c.l.b16 %v2053
    %v2157 = vunpack.c.h.b16 %v2053
    %v2158 = vunpack.c.l.b16 %v2054
    %v2159 = vunpack.c.h.b16 %v2054
    %v2160 = vunpack.c.l.b16 %v2055
    %v2161 = vunpack.c.h.b16 %v2055
    %v2162 = vunpack.c.l.b16 %v2056
    %v2163 = vunpack.c.h.b16 %v2056
    %v2164 = vunpack.c.l.b16 %v2057
    %v2165 = vunpack.c.h.b16 %v2057
    %v2166 = vpack.c.b16 %v2104, %v2102
    %v2167 = vpack.c.b16 %v2105, %v2103
    %v2168 = vpack.c.b16 %v2108, %v2106
    %v2169 = vpack.c.b16 %v2109, %v2107
    %v2170 = vpack.c.b16 %v2112, %v2110
    %v2171 = vpack.c.b16 %v2113, %v2111
    %v2172 = vpack.c.b16 %v2116, %v2114
    %v2173 = vpack.c.b16 %v2117, %v2115
    %v2174 = vpack.c.b16 %v2120, %v2118
    %v2175 = vpack.c.b16 %v2121, %v2119
    %v2176 = vpack.c.b16 %v2124, %v2122
    %v2177 = vpack.c.b16 %v2125, %v2123
    %v2178 = vpack.c.b16 %v2128, %v2126
    %v2179 = vpack.c.b16 %v2129, %v2127
    %v2180 = vpack.c.b16 %v2132, %v2130
    %v2181 = vpack.c.b16 %v2133, %v2131
    %v2182 = vpack.c.b16 %v2136, %v2134
    %v2183 = vpack.c.b16 %v2137, %v2135
    %v2184 = vpack.c.b16 %v2140, %v2138
    %v2185 = vpack.c.b16 %v2141, %v2139
    %v2186 = vpack.c.b16 %v2144, %v2142
    %v2187 = vpack.c.b16 %v2145, %v2143
    %v2188 = vpack.c.b16 %v2148, %v2146
    %v2189 = vpack.c.b16 %v2149, %v2147
    %v2190 = vpack.c.b16 %v2152, %v2150
    %v2191 = vpack.c.b16 %v2153, %v2151
    %v2192 = vpack.c.b16 %v2156, %v2154
    %v2193 = vpack.c.b16 %v2157, %v2155
    %v2194 = vpack.c.b16 %v2160, %v2158
    %v2195 = vpack.c.b16 %v2161, %v2159
    %v2196 = vpack.c.b16 %v2164, %v2162
    %v2197 = vpack.c.b16 %v2165, %v2163
    %2230 = vmatprep.subr.bf16.mxu0 %v2167
    %2231 = vmatpush1.bf16.msra.mxu0 %v2166
    %2232 = vmatprep.subr.bf16.mxu0 %v2169
    %2233 = vmatpush1.bf16.msra.mxu0 %v2168
    %2234 = vmatprep.subr.bf16.mxu0 %v2171
    %2235 = vmatpush1.bf16.msra.mxu0 %v2170
    %2236 = vmatprep.subr.bf16.mxu0 %v2173
    %2237 = vmatpush1.bf16.msra.mxu0 %v2172
    %2238 = vmatprep.subr.bf16.mxu0 %v2175
    %2239 = vmatpush1.bf16.msra.mxu0 %v2174
    %2240 = vmatprep.subr.bf16.mxu0 %v2177
    %2241 = vmatpush1.bf16.msra.mxu0 %v2176
    %2242 = vmatprep.subr.bf16.mxu0 %v2179
    %2243 = vmatpush1.bf16.msra.mxu0 %v2178
    %2244 = vmatprep.subr.bf16.mxu0 %v2181
    %2245 = vmatpush1.bf16.msra.mxu0 %v2180
    %2246 = vmatprep.subr.bf16.mxu0 %v2183
    %2247 = vmatpush1.bf16.msra.mxu0 %v2182
    %2248 = vmatprep.subr.bf16.mxu0 %v2185
    %2249 = vmatpush1.bf16.msra.mxu0 %v2184
    %2250 = vmatprep.subr.bf16.mxu0 %v2187
    %2251 = vmatpush1.bf16.msra.mxu0 %v2186
    %2252 = vmatprep.subr.bf16.mxu0 %v2189
    %2253 = vmatpush1.bf16.msra.mxu0 %v2188
    %2254 = vmatprep.subr.bf16.mxu0 %v2191
    %2255 = vmatpush1.bf16.msra.mxu0 %v2190
    %2256 = vmatprep.subr.bf16.mxu0 %v2193
    %2257 = vmatpush1.bf16.msra.mxu0 %v2192
    %2258 = vmatprep.subr.bf16.mxu0 %v2195
    %2259 = vmatpush1.bf16.msra.mxu0 %v2194
    %2260 = vmatprep.subr.bf16.mxu0 %v2197
    %2261 = vmatpush1.bf16.msra.mxu0 %v2196
    %2262 = vmatprep.mubr.bf16.mxu0 %v2001
    %2263 = vmatmul.mubr.bf16.gmra.mrb[0].mxu0 %v2000
    %v2264 = vpop.f32.mrb[0].mxu0
    %v2265 = vadd.f32 %v2063, %v2264
    %v2266 = vpop.f32.mrb[0].mxu0
    %v2267 = vadd.f32 %v2067, %v2266
    %v2268 = vpop.f32.mrb[0].mxu0
    %v2269 = vadd.f32 %v2063, %v2268
    %v2270 = vpop.f32.mrb[0].mxu0
    %v2271 = vadd.f32 %v2067, %v2270
    %2272 = vmatprep.mubr.bf16.mxu0 %v2003
    %2273 = vmatmul.mubr.bf16.gmra.mrb[0].mxu0 %v2002
    %v2274 = vpop.f32.mrb[0].mxu0
    %v2275 = vadd.f32 %v2063, %v2274
    %v2276 = vpop.f32.mrb[0].mxu0
    %v2277 = vadd.f32 %v2067, %v2276
    %v2278 = vpop.f32.mrb[0].mxu0
    %v2279 = vadd.f32 %v2063, %v2278
    %v2280 = vpop.f32.mrb[0].mxu0
    %v2281 = vadd.f32 %v2067, %v2280
    %2282 = vmatprep.mubr.bf16.mxu0 %v2005
    %2283 = vmatmul.mubr.bf16.gmra.mrb[0].mxu0 %v2004
    %v2284 = vpop.f32.mrb[0].mxu0
    %v2285 = vadd.f32 %v2063, %v2284
    %v2286 = vpop.f32.mrb[0].mxu0
    %v2287 = vadd.f32 %v2067, %v2286
    %v2288 = vpop.f32.mrb[0].mxu0
    %v2289 = vadd.f32 %v2063, %v2288
    %v2290 = vpop.f32.mrb[0].mxu0
    %v2291 = vadd.f32 %v2067, %v2290
    %2292 = vmatprep.mubr.bf16.mxu0 %v2007
    %2293 = vmatmul.mubr.bf16.gmra.mrb[0].mxu0 %v2006
    %v2294 = vpop.f32.mrb[0].mxu0
    %v2295 = vadd.f32 %v2063, %v2294
    %v2296 = vpop.f32.mrb[0].mxu0
    %v2297 = vadd.f32 %v2067, %v2296
    %v2298 = vpop.f32.mrb[0].mxu0
    %v2299 = vadd.f32 %v2063, %v2298
    %v2300 = vpop.f32.mrb[0].mxu0
    %v2301 = vadd.f32 %v2067, %v2300
    %2302 = vmatprep.mubr.bf16.mxu0 %v2009
    %2303 = vmatmul.mubr.bf16.gmra.mrb[0].mxu0 %v2008
    %v2304 = vpop.f32.mrb[0].mxu0
    %v2305 = vadd.f32 %v2063, %v2304
    %v2306 = vpop.f32.mrb[0].mxu0
    %v2307 = vadd.f32 %v2067, %v2306
    %v2308 = vpop.f32.mrb[0].mxu0
    %v2309 = vadd.f32 %v2063, %v2308
    %v2310 = vpop.f32.mrb[0].mxu0
    %v2311 = vadd.f32 %v2067, %v2310
    %2312 = vmatprep.mubr.bf16.mxu0 %v2011
    %2313 = vmatmul.mubr.bf16.gmra.mrb[0].mxu0 %v2010
    %v2314 = vpop.f32.mrb[0].mxu0
    %v2315 = vadd.f32 %v2063, %v2314
    %v2316 = vpop.f32.mrb[0].mxu0
    %v2317 = vadd.f32 %v2067, %v2316
    %v2318 = vpop.f32.mrb[0].mxu0
    %v2319 = vadd.f32 %v2063, %v2318
    %v2320 = vpop.f32.mrb[0].mxu0
    %v2321 = vadd.f32 %v2067, %v2320
    %2322 = vmatprep.mubr.bf16.mxu0 %v2013
    %2323 = vmatmul.mubr.bf16.gmra.mrb[0].mxu0 %v2012
    %v2324 = vpop.f32.mrb[0].mxu0
    %v2325 = vadd.f32 %v2063, %v2324
    %v2326 = vpop.f32.mrb[0].mxu0
    %v2327 = vadd.f32 %v2067, %v2326
    %v2328 = vpop.f32.mrb[0].mxu0
    %v2329 = vadd.f32 %v2063, %v2328
    %v2330 = vpop.f32.mrb[0].mxu0
    %v2331 = vadd.f32 %v2067, %v2330
    %2332 = vmatprep.mubr.bf16.mxu0 %v2015
    %2333 = vmatmul.mubr.bf16.gmra.mrb[0].mxu0 %v2014
    %v2334 = vpop.f32.mrb[0].mxu0
    %v2335 = vadd.f32 %v2063, %v2334
    %v2336 = vpop.f32.mrb[0].mxu0
    %v2337 = vadd.f32 %v2067, %v2336
    %v2338 = vpop.f32.mrb[0].mxu0
    %v2339 = vadd.f32 %v2063, %v2338
    %v2340 = vpop.f32.mrb[0].mxu0
    %v2341 = vadd.f32 %v2067, %v2340
    %2342 = vmatprep.mubr.bf16.mxu0 %v2017
    %2343 = vmatmul.mubr.bf16.gmra.mrb[0].mxu0 %v2016
    %v2344 = vpop.f32.mrb[0].mxu0
    %v2345 = vadd.f32 %v2063, %v2344
    %v2346 = vpop.f32.mrb[0].mxu0
    %v2347 = vadd.f32 %v2067, %v2346
    %v2348 = vpop.f32.mrb[0].mxu0
    %v2349 = vadd.f32 %v2063, %v2348
    %v2350 = vpop.f32.mrb[0].mxu0
    %v2351 = vadd.f32 %v2067, %v2350
    %2352 = vmatprep.mubr.bf16.mxu0 %v2019
    %2353 = vmatmul.mubr.bf16.gmra.mrb[0].mxu0 %v2018
    %v2354 = vpop.f32.mrb[0].mxu0
    %v2355 = vadd.f32 %v2063, %v2354
    %v2356 = vpop.f32.mrb[0].mxu0
    %v2357 = vadd.f32 %v2067, %v2356
    %v2358 = vpop.f32.mrb[0].mxu0
    %v2359 = vadd.f32 %v2063, %v2358
    %v2360 = vpop.f32.mrb[0].mxu0
    %v2361 = vadd.f32 %v2067, %v2360
    %2362 = vmatprep.mubr.bf16.mxu0 %v2021
    %2363 = vmatmul.mubr.bf16.gmra.mrb[0].mxu0 %v2020
    %v2364 = vpop.f32.mrb[0].mxu0
    %v2365 = vadd.f32 %v2063, %v2364
    %v2366 = vpop.f32.mrb[0].mxu0
    %v2367 = vadd.f32 %v2067, %v2366
    %v2368 = vpop.f32.mrb[0].mxu0
    %v2369 = vadd.f32 %v2063, %v2368
    %v2370 = vpop.f32.mrb[0].mxu0
    %v2371 = vadd.f32 %v2067, %v2370
    %2372 = vmatprep.mubr.bf16.mxu0 %v2023
    %2373 = vmatmul.mubr.bf16.gmra.mrb[0].mxu0 %v2022
    %v2374 = vpop.f32.mrb[0].mxu0
    %v2375 = vadd.f32 %v2063, %v2374
    %v2376 = vpop.f32.mrb[0].mxu0
    %v2377 = vadd.f32 %v2067, %v2376
    %v2378 = vpop.f32.mrb[0].mxu0
    %v2379 = vadd.f32 %v2063, %v2378
    %v2380 = vpop.f32.mrb[0].mxu0
    %v2381 = vadd.f32 %v2067, %v2380
    %2382 = vmatprep.mubr.bf16.mxu0 %v2025
    %2383 = vmatmul.mubr.bf16.gmra.mrb[0].mxu0 %v2024
    %v2384 = vpop.f32.mrb[0].mxu0
    %v2385 = vadd.f32 %v2063, %v2384
    %v2386 = vpop.f32.mrb[0].mxu0
    %v2387 = vadd.f32 %v2067, %v2386
    %v2388 = vpop.f32.mrb[0].mxu0
    %v2389 = vpop.f32.mrb[0].mxu0
    %2390 = vdwg.mxu0
    %s2391 = sld [smem:[#allocation2]]
    %s2392 = sand.u32 2147483647, %s2391
    %v2393 = vmul.f32 %v2265, %v2265
    %v2394 = vmul.f32 %v2269, %v2269
    %v2395 = vmul.f32 %v2275, %v2275
    %v2396 = vmul.f32 %v2279, %v2279
    %v2397 = vmul.f32 %v2285, %v2285
    %v2398 = vmul.f32 %v2289, %v2289
    %v2399 = vmul.f32 %v2295, %v2295
    %v2400 = vmul.f32 %v2299, %v2299
    %v2401 = vmul.f32 %v2305, %v2305
    %v2402 = vmul.f32 %v2309, %v2309
    %v2403 = vmul.f32 %v2315, %v2315
    %v2404 = vmul.f32 %v2319, %v2319
    %v2405 = vmul.f32 %v2325, %v2325
    %v2406 = vmul.f32 %v2329, %v2329
    %v2407 = vmul.f32 %v2335, %v2335
    %v2408 = vmul.f32 %v2339, %v2339
    %v2409 = vmul.f32 %v2345, %v2345
    %v2410 = vmul.f32 %v2349, %v2349
    %v2411 = vmul.f32 %v2355, %v2355
    %v2412 = vmul.f32 %v2359, %v2359
    %v2413 = vmul.f32 %v2365, %v2365
    %v2414 = vmul.f32 %v2369, %v2369
    %v2415 = vmul.f32 %v2375, %v2375
    %v2416 = vmul.f32 %v2379, %v2379
    %v2417 = vmul.f32 %v2385, %v2385
    %v2418 = vmul.f32 %v2267, %v2267
    %v2419 = vmul.f32 %v2271, %v2271
    %v2420 = vmul.f32 %v2277, %v2277
    %v2421 = vmul.f32 %v2281, %v2281
    %v2422 = vmul.f32 %v2287, %v2287
    %v2423 = vmul.f32 %v2291, %v2291
    %v2424 = vmul.f32 %v2297, %v2297
    %v2425 = vmul.f32 %v2301, %v2301
    %v2426 = vmul.f32 %v2307, %v2307
    %v2427 = vmul.f32 %v2311, %v2311
    %v2428 = vmul.f32 %v2317, %v2317
    %v2429 = vmul.f32 %v2321, %v2321
    %v2430 = vmul.f32 %v2327, %v2327
    %v2431 = vmul.f32 %v2331, %v2331
    %v2432 = vmul.f32 %v2337, %v2337
    %v2433 = vmul.f32 %v2341, %v2341
    %v2434 = vmul.f32 %v2347, %v2347
    %v2435 = vmul.f32 %v2351, %v2351
    %v2436 = vmul.f32 %v2357, %v2357
    %v2437 = vmul.f32 %v2361, %v2361
    %v2438 = vmul.f32 %v2367, %v2367
    %v2439 = vmul.f32 %v2371, %v2371
    %v2440 = vmul.f32 %v2377, %v2377
    %v2441 = vmul.f32 %v2381, %v2381
    %v2442 = vmul.f32 %v2387, %v2387
    %v2443 = vadd.f32 %v2393, %v2418
    %v2444 = vadd.f32 %v2394, %v2419
    %v2445 = vadd.f32 %v2395, %v2420
    %v2446 = vadd.f32 %v2396, %v2421
    %v2447 = vadd.f32 %v2397, %v2422
    %v2448 = vadd.f32 %v2398, %v2423
    %v2449 = vadd.f32 %v2399, %v2424
    %v2450 = vadd.f32 %v2400, %v2425
    %v2451 = vadd.f32 %v2401, %v2426
    %v2452 = vadd.f32 %v2402, %v2427
    %v2453 = vadd.f32 %v2403, %v2428
    %v2454 = vadd.f32 %v2404, %v2429
    %v2455 = vadd.f32 %v2405, %v2430
    %v2456 = vadd.f32 %v2406, %v2431
    %v2457 = vadd.f32 %v2407, %v2432
    %v2458 = vadd.f32 %v2408, %v2433
    %v2459 = vadd.f32 %v2409, %v2434
    %v2460 = vadd.f32 %v2410, %v2435
    %v2461 = vadd.f32 %v2411, %v2436
    %v2462 = vadd.f32 %v2412, %v2437
    %v2463 = vadd.f32 %v2413, %v2438
    %v2464 = vadd.f32 %v2414, %v2439
    %v2465 = vadd.f32 %v2415, %v2440
    %v2466 = vadd.f32 %v2416, %v2441
    %v2467 = vadd.f32 %v2417, %v2442
    %vm2468 = vcmp.gt.f32.partialorder %v2443, 0.0
    %vm2469 = vcmp.gt.f32.partialorder %v2444, 0.0
    %vm2470 = vcmp.gt.f32.partialorder %v2445, 0.0
    %vm2471 = vcmp.gt.f32.partialorder %v2446, 0.0
    %vm2472 = vcmp.gt.f32.partialorder %v2447, 0.0
    %vm2473 = vcmp.gt.f32.partialorder %v2448, 0.0
    %vm2474 = vcmp.gt.f32.partialorder %v2449, 0.0
    %vm2475 = vcmp.gt.f32.partialorder %v2450, 0.0
    %vm2476 = vcmp.gt.f32.partialorder %v2451, 0.0
    %vm2477 = vcmp.gt.f32.partialorder %v2452, 0.0
    %vm2478 = vcmp.gt.f32.partialorder %v2453, 0.0
    %vm2479 = vcmp.gt.f32.partialorder %v2454, 0.0
    %vm2480 = vcmp.gt.f32.partialorder %v2455, 0.0
    %vm2481 = vcmp.gt.f32.partialorder %v2456, 0.0
    %vm2482 = vcmp.gt.f32.partialorder %v2457, 0.0
    %vm2483 = vcmp.gt.f32.partialorder %v2458, 0.0
    %vm2484 = vcmp.gt.f32.partialorder %v2459, 0.0
    %vm2485 = vcmp.gt.f32.partialorder %v2460, 0.0
    %vm2486 = vcmp.gt.f32.partialorder %v2461, 0.0
    %vm2487 = vcmp.gt.f32.partialorder %v2462, 0.0
    %vm2488 = vcmp.gt.f32.partialorder %v2463, 0.0
    %vm2489 = vcmp.gt.f32.partialorder %v2464, 0.0
    %vm2490 = vcmp.gt.f32.partialorder %v2465, 0.0
    %vm2491 = vcmp.gt.f32.partialorder %v2466, 0.0
    %vm2492 = vcmp.gt.f32.partialorder %v2467, 0.0
    %v2493 = vsel %vm2468, %v2443, 1.0
    %v2494 = vsel %vm2469, %v2444, 1.0
    %v2495 = vsel %vm2470, %v2445, 1.0
    %v2496 = vsel %vm2471, %v2446, 1.0
    %v2497 = vsel %vm2472, %v2447, 1.0
    %v2498 = vsel %vm2473, %v2448, 1.0
    %v2499 = vsel %vm2474, %v2449, 1.0
    %v2500 = vsel %vm2475, %v2450, 1.0
    %v2501 = vsel %vm2476, %v2451, 1.0
    %v2502 = vsel %vm2477, %v2452, 1.0
    %v2503 = vsel %vm2478, %v2453, 1.0
    %v2504 = vsel %vm2479, %v2454, 1.0
    %v2505 = vsel %vm2480, %v2455, 1.0
    %v2506 = vsel %vm2481, %v2456, 1.0
    %v2507 = vsel %vm2482, %v2457, 1.0
    %v2508 = vsel %vm2483, %v2458, 1.0
    %v2509 = vsel %vm2484, %v2459, 1.0
    %v2510 = vsel %vm2485, %v2460, 1.0
    %v2511 = vsel %vm2486, %v2461, 1.0
    %v2512 = vsel %vm2487, %v2462, 1.0
    %v2513 = vsel %vm2488, %v2463, 1.0
    %v2514 = vsel %vm2489, %v2464, 1.0
    %v2515 = vsel %vm2490, %v2465, 1.0
    %v2516 = vsel %vm2491, %v2466, 1.0
    %v2517 = vsel %vm2492, %v2467, 1.0
    %v2518 = vrsqrt.pop %v2493
    %v2519 = vrsqrt.pop %v2494
    %v2520 = vrsqrt.pop %v2495
    %v2521 = vrsqrt.pop %v2496
    %v2522 = vrsqrt.pop %v2497
    %v2523 = vrsqrt.pop %v2498
    %v2524 = vrsqrt.pop %v2499
    %v2525 = vrsqrt.pop %v2500
    %v2526 = vrsqrt.pop %v2501
    %v2527 = vrsqrt.pop %v2502
    %v2528 = vrsqrt.pop %v2503
    %v2529 = vrsqrt.pop %v2504
    %v2530 = vrsqrt.pop %v2505
    %v2531 = vrsqrt.pop %v2506
    %v2532 = vrsqrt.pop %v2507
    %v2533 = vrsqrt.pop %v2508
    %v2534 = vrsqrt.pop %v2509
    %v2535 = vrsqrt.pop %v2510
    %v2536 = vrsqrt.pop %v2511
    %v2537 = vrsqrt.pop %v2512
    %v2538 = vrsqrt.pop %v2513
    %v2539 = vrsqrt.pop %v2514
    %v2540 = vrsqrt.pop %v2515
    %v2541 = vrsqrt.pop %v2516
    %v2542 = vrsqrt.pop %v2517
    %v2543 = vstv %s2392
    %v2544 = vmul.f32 %v2543, %v2518
    %v2545 = vmul.f32 %v2543, %v2519
    %v2546 = vmul.f32 %v2543, %v2520
    %v2547 = vmul.f32 %v2543, %v2521
    %v2548 = vmul.f32 %v2543, %v2522
    %v2549 = vmul.f32 %v2543, %v2523
    %v2550 = vmul.f32 %v2543, %v2524
    %v2551 = vmul.f32 %v2543, %v2525
    %v2552 = vmul.f32 %v2543, %v2526
    %v2553 = vmul.f32 %v2543, %v2527
    %v2554 = vmul.f32 %v2543, %v2528
    %v2555 = vmul.f32 %v2543, %v2529
    %v2556 = vmul.f32 %v2543, %v2530
    %v2557 = vmul.f32 %v2543, %v2531
    %v2558 = vmul.f32 %v2543, %v2532
    %v2559 = vmul.f32 %v2543, %v2533
    %v2560 = vmul.f32 %v2543, %v2534
    %v2561 = vmul.f32 %v2543, %v2535
    %v2562 = vmul.f32 %v2543, %v2536
    %v2563 = vmul.f32 %v2543, %v2537
    %v2564 = vmul.f32 %v2543, %v2538
    %v2565 = vmul.f32 %v2543, %v2539
    %v2566 = vmul.f32 %v2543, %v2540
    %v2567 = vmul.f32 %v2543, %v2541
    %v2568 = vmul.f32 %v2543, %v2542
    %v2569 = vsub.f32 1.0, %v2544
    %v2570 = vsub.f32 1.0, %v2545
    %v2571 = vsub.f32 1.0, %v2546
    %v2572 = vsub.f32 1.0, %v2547
    %v2573 = vsub.f32 1.0, %v2548
    %v2574 = vsub.f32 1.0, %v2549
    %v2575 = vsub.f32 1.0, %v2550
    %v2576 = vsub.f32 1.0, %v2551
    %v2577 = vsub.f32 1.0, %v2552
    %v2578 = vsub.f32 1.0, %v2553
    %v2579 = vsub.f32 1.0, %v2554
    %v2580 = vsub.f32 1.0, %v2555
    %v2581 = vsub.f32 1.0, %v2556
    %v2582 = vsub.f32 1.0, %v2557
    %v2583 = vsub.f32 1.0, %v2558
    %v2584 = vsub.f32 1.0, %v2559
    %v2585 = vsub.f32 1.0, %v2560
    %v2586 = vsub.f32 1.0, %v2561
    %v2587 = vsub.f32 1.0, %v2562
    %v2588 = vsub.f32 1.0, %v2563
    %v2589 = vsub.f32 1.0, %v2564
    %v2590 = vsub.f32 1.0, %v2565
    %v2591 = vsub.f32 1.0, %v2566
    %v2592 = vsub.f32 1.0, %v2567
    %v2593 = vsub.f32 1.0, %v2568
    %v2594 = vmax.f32 %v2569, 0.0
    %v2595 = vmax.f32 %v2570, 0.0
    %v2596 = vmax.f32 %v2571, 0.0
    %v2597 = vmax.f32 %v2572, 0.0
    %v2598 = vmax.f32 %v2573, 0.0
    %v2599 = vmax.f32 %v2574, 0.0
    %v2600 = vmax.f32 %v2575, 0.0
    %v2601 = vmax.f32 %v2576, 0.0
    %v2602 = vmax.f32 %v2577, 0.0
    %v2603 = vmax.f32 %v2578, 0.0
    %v2604 = vmax.f32 %v2579, 0.0
    %v2605 = vmax.f32 %v2580, 0.0
    %v2606 = vmax.f32 %v2581, 0.0
    %v2607 = vmax.f32 %v2582, 0.0
    %v2608 = vmax.f32 %v2583, 0.0
    %v2609 = vmax.f32 %v2584, 0.0
    %v2610 = vmax.f32 %v2585, 0.0
    %v2611 = vmax.f32 %v2586, 0.0
    %v2612 = vmax.f32 %v2587, 0.0
    %v2613 = vmax.f32 %v2588, 0.0
    %v2614 = vmax.f32 %v2589, 0.0
    %v2615 = vmax.f32 %v2590, 0.0
    %v2616 = vmax.f32 %v2591, 0.0
    %v2617 = vmax.f32 %v2592, 0.0
    %v2618 = vmax.f32 %v2593, 0.0
    %v2619 = vsel %vm2468, %v2594, 0.0
    %v2620 = vsel %vm2469, %v2595, 0.0
    %v2621 = vsel %vm2470, %v2596, 0.0
    %v2622 = vsel %vm2471, %v2597, 0.0
    %v2623 = vsel %vm2472, %v2598, 0.0
    %v2624 = vsel %vm2473, %v2599, 0.0
    %v2625 = vsel %vm2474, %v2600, 0.0
    %v2626 = vsel %vm2475, %v2601, 0.0
    %v2627 = vsel %vm2476, %v2602, 0.0
    %v2628 = vsel %vm2477, %v2603, 0.0
    %v2629 = vsel %vm2478, %v2604, 0.0
    %v2630 = vsel %vm2479, %v2605, 0.0
    %v2631 = vsel %vm2480, %v2606, 0.0
    %v2632 = vsel %vm2481, %v2607, 0.0
    %v2633 = vsel %vm2482, %v2608, 0.0
    %v2634 = vsel %vm2483, %v2609, 0.0
    %v2635 = vsel %vm2484, %v2610, 0.0
    %v2636 = vsel %vm2485, %v2611, 0.0
    %v2637 = vsel %vm2486, %v2612, 0.0
    %v2638 = vsel %vm2487, %v2613, 0.0
    %v2639 = vsel %vm2488, %v2614, 0.0
    %v2640 = vsel %vm2489, %v2615, 0.0
    %v2641 = vsel %vm2490, %v2616, 0.0
    %v2642 = vsel %vm2491, %v2617, 0.0
    %v2643 = vsel %vm2492, %v2618, 0.0
    %v2644 = vmul.f32 %v2265, %v2619
    %v2645 = vmul.f32 %v2269, %v2620
    %v2646 = vmul.f32 %v2275, %v2621
    %v2647 = vmul.f32 %v2279, %v2622
    %v2648 = vmul.f32 %v2285, %v2623
    %v2649 = vmul.f32 %v2289, %v2624
    %v2650 = vmul.f32 %v2295, %v2625
    %v2651 = vmul.f32 %v2299, %v2626
    %v2652 = vmul.f32 %v2305, %v2627
    %v2653 = vmul.f32 %v2309, %v2628
    %v2654 = vmul.f32 %v2315, %v2629
    %v2655 = vmul.f32 %v2319, %v2630
    %v2656 = vmul.f32 %v2325, %v2631
    %v2657 = vmul.f32 %v2329, %v2632
    %v2658 = vmul.f32 %v2335, %v2633
    %v2659 = vmul.f32 %v2339, %v2634
    %v2660 = vmul.f32 %v2345, %v2635
    %v2661 = vmul.f32 %v2349, %v2636
    %v2662 = vmul.f32 %v2355, %v2637
    %v2663 = vmul.f32 %v2359, %v2638
    %v2664 = vmul.f32 %v2365, %v2639
    %v2665 = vmul.f32 %v2369, %v2640
    %v2666 = vmul.f32 %v2375, %v2641
    %v2667 = vmul.f32 %v2379, %v2642
    %v2668 = vmul.f32 %v2385, %v2643
    %2669 = vst [vmem:[#allocation19] sm:$0xff] %v2644
    %2670 = vst [vmem:[#allocation19 + $0x10] sm:$0xff] %v2645
    %2671 = vst [vmem:[#allocation19 + $0x20] sm:$0xff] %v2646
    %2672 = vst [vmem:[#allocation19 + $0x30] sm:$0xff] %v2647
    %2673 = vst [vmem:[#allocation19 + $0x40] sm:$0xff] %v2648
    %2674 = vst [vmem:[#allocation19 + $0x50] sm:$0xff] %v2649
    %2675 = vst [vmem:[#allocation19 + $0x60] sm:$0xff] %v2650
    %2676 = vst [vmem:[#allocation19 + $0x70] sm:$0xff] %v2651
    %2677 = vst [vmem:[#allocation19 + $0x80] sm:$0xff] %v2652
    %2678 = vst [vmem:[#allocation19 + $0x90] sm:$0xff] %v2653
    %2679 = vst [vmem:[#allocation19 + $0xa0] sm:$0xff] %v2654
    %2680 = vst [vmem:[#allocation19 + $0xb0] sm:$0xff] %v2655
    %2681 = vst [vmem:[#allocation19 + $0xc0] sm:$0xff] %v2656
    %2682 = vst [vmem:[#allocation19 + $0xd0] sm:$0xff] %v2657
    %2683 = vst [vmem:[#allocation19 + $0xe0] sm:$0xff] %v2658
    %2684 = vst [vmem:[#allocation19 + $0xf0] sm:$0xff] %v2659
    %2685 = vst [vmem:[#allocation19 + $0x100] sm:$0xff] %v2660
    %2686 = vst [vmem:[#allocation19 + $0x110] sm:$0xff] %v2661
    %2687 = vst [vmem:[#allocation19 + $0x120] sm:$0xff] %v2662
    %2688 = vst [vmem:[#allocation19 + $0x130] sm:$0xff] %v2663
    %2689 = vst [vmem:[#allocation19 + $0x140] sm:$0xff] %v2664
    %2690 = vst [vmem:[#allocation19 + $0x150] sm:$0xff] %v2665
    %2691 = vst [vmem:[#allocation19 + $0x160] sm:$0xff] %v2666
    %2692 = vst [vmem:[#allocation19 + $0x170] sm:$0xff] %v2667
    %2693 = vst [vmem:[#allocation19 + $0x180] sm:$0xff] %v2668
    %v2694 = vmul.f32 %v2267, %v2619
    %v2695 = vmul.f32 %v2271, %v2620
    %v2696 = vmul.f32 %v2277, %v2621
    %v2697 = vmul.f32 %v2281, %v2622
    %v2698 = vmul.f32 %v2287, %v2623
    %v2699 = vmul.f32 %v2291, %v2624
    %v2700 = vmul.f32 %v2297, %v2625
    %v2701 = vmul.f32 %v2301, %v2626
    %v2702 = vmul.f32 %v2307, %v2627
    %v2703 = vmul.f32 %v2311, %v2628
    %v2704 = vmul.f32 %v2317, %v2629
    %v2705 = vmul.f32 %v2321, %v2630
    %v2706 = vmul.f32 %v2327, %v2631
    %v2707 = vmul.f32 %v2331, %v2632
    %v2708 = vmul.f32 %v2337, %v2633
    %v2709 = vmul.f32 %v2341, %v2634
    %v2710 = vmul.f32 %v2347, %v2635
    %v2711 = vmul.f32 %v2351, %v2636
    %v2712 = vmul.f32 %v2357, %v2637
    %v2713 = vmul.f32 %v2361, %v2638
    %v2714 = vmul.f32 %v2367, %v2639
    %v2715 = vmul.f32 %v2371, %v2640
    %v2716 = vmul.f32 %v2377, %v2641
    %v2717 = vmul.f32 %v2381, %v2642
    %v2718 = vmul.f32 %v2387, %v2643
    %2719 = vst [vmem:[#allocation19 + $0x8] sm:$0xff] %v2694
    %2720 = vst [vmem:[#allocation19 + $0x18] sm:$0xff] %v2695
    %2721 = vst [vmem:[#allocation19 + $0x28] sm:$0xff] %v2696
    %2722 = vst [vmem:[#allocation19 + $0x38] sm:$0xff] %v2697
    %2723 = vst [vmem:[#allocation19 + $0x48] sm:$0xff] %v2698
    %2724 = vst [vmem:[#allocation19 + $0x58] sm:$0xff] %v2699
    %2725 = vst [vmem:[#allocation19 + $0x68] sm:$0xff] %v2700
    %2726 = vst [vmem:[#allocation19 + $0x78] sm:$0xff] %v2701
    %2727 = vst [vmem:[#allocation19 + $0x88] sm:$0xff] %v2702
    %2728 = vst [vmem:[#allocation19 + $0x98] sm:$0xff] %v2703
    %2729 = vst [vmem:[#allocation19 + $0xa8] sm:$0xff] %v2704
    %2730 = vst [vmem:[#allocation19 + $0xb8] sm:$0xff] %v2705
    %2731 = vst [vmem:[#allocation19 + $0xc8] sm:$0xff] %v2706
    %2732 = vst [vmem:[#allocation19 + $0xd8] sm:$0xff] %v2707
    %2733 = vst [vmem:[#allocation19 + $0xe8] sm:$0xff] %v2708
    %2734 = vst [vmem:[#allocation19 + $0xf8] sm:$0xff] %v2709
    %2735 = vst [vmem:[#allocation19 + $0x108] sm:$0xff] %v2710
    %2736 = vst [vmem:[#allocation19 + $0x118] sm:$0xff] %v2711
    %2737 = vst [vmem:[#allocation19 + $0x128] sm:$0xff] %v2712
    %2738 = vst [vmem:[#allocation19 + $0x138] sm:$0xff] %v2713
    %2739 = vst [vmem:[#allocation19 + $0x148] sm:$0xff] %v2714
    %2740 = vst [vmem:[#allocation19 + $0x158] sm:$0xff] %v2715
    %2741 = vst [vmem:[#allocation19 + $0x168] sm:$0xff] %v2716
    %2742 = vst [vmem:[#allocation19 + $0x178] sm:$0xff] %v2717
    %2743 = vst [vmem:[#allocation19 + $0x188] sm:$0xff] %v2718
    %v2744 = vld [vmem:[#allocation19] sm:$0xff]
    %v2745 = vld [vmem:[#allocation19 + $0x8] sm:$0xff]
    %v2746 = vld [vmem:[#allocation19 + $0x10] sm:$0xff]
    %v2747 = vld [vmem:[#allocation19 + $0x18] sm:$0xff]
    %v2748 = vld [vmem:[#allocation19 + $0x20] sm:$0xff]
    %v2749 = vld [vmem:[#allocation19 + $0x28] sm:$0xff]
    %v2750 = vld [vmem:[#allocation19 + $0x30] sm:$0xff]
    %v2751 = vld [vmem:[#allocation19 + $0x38] sm:$0xff]
    %v2752 = vld [vmem:[#allocation19 + $0x40] sm:$0xff]
    %v2753 = vld [vmem:[#allocation19 + $0x48] sm:$0xff]
    %v2754 = vld [vmem:[#allocation19 + $0x50] sm:$0xff]
    %v2755 = vld [vmem:[#allocation19 + $0x58] sm:$0xff]
    %v2756 = vld [vmem:[#allocation19 + $0x60] sm:$0xff]
    %v2757 = vld [vmem:[#allocation19 + $0x68] sm:$0xff]
    %v2758 = vld [vmem:[#allocation19 + $0x70] sm:$0xff]
    %v2759 = vld [vmem:[#allocation19 + $0x78] sm:$0xff]
    %v2760 = vld [vmem:[#allocation19 + $0x80] sm:$0xff]
    %v2761 = vld [vmem:[#allocation19 + $0x88] sm:$0xff]
    %v2762 = vld [vmem:[#allocation19 + $0x90] sm:$0xff]
    %v2763 = vld [vmem:[#allocation19 + $0x98] sm:$0xff]
    %v2764 = vld [vmem:[#allocation19 + $0xa0] sm:$0xff]
    %v2765 = vld [vmem:[#allocation19 + $0xa8] sm:$0xff]
    %v2766 = vld [vmem:[#allocation19 + $0xb0] sm:$0xff]
    %v2767 = vld [vmem:[#allocation19 + $0xb8] sm:$0xff]
    %v2768 = vld [vmem:[#allocation19 + $0xc0] sm:$0xff]
    %v2769 = vld [vmem:[#allocation19 + $0xc8] sm:$0xff]
    %v2770 = vld [vmem:[#allocation19 + $0xd0] sm:$0xff]
    %v2771 = vld [vmem:[#allocation19 + $0xd8] sm:$0xff]
    %v2772 = vld [vmem:[#allocation19 + $0xe0] sm:$0xff]
    %v2773 = vld [vmem:[#allocation19 + $0xe8] sm:$0xff]
    %v2774 = vld [vmem:[#allocation19 + $0xf0] sm:$0xff]
    %v2775 = vld [vmem:[#allocation19 + $0xf8] sm:$0xff]
    %v2776 = vld [vmem:[#allocation19 + $0x100] sm:$0xff]
    %v2777 = vld [vmem:[#allocation19 + $0x108] sm:$0xff]
    %v2778 = vld [vmem:[#allocation19 + $0x110] sm:$0xff]
    %v2779 = vld [vmem:[#allocation19 + $0x118] sm:$0xff]
    %v2780 = vld [vmem:[#allocation19 + $0x120] sm:$0xff]
    %v2781 = vld [vmem:[#allocation19 + $0x128] sm:$0xff]
    %v2782 = vld [vmem:[#allocation19 + $0x130] sm:$0xff]
    %v2783 = vld [vmem:[#allocation19 + $0x138] sm:$0xff]
    %v2784 = vld [vmem:[#allocation19 + $0x140] sm:$0xff]
    %v2785 = vld [vmem:[#allocation19 + $0x148] sm:$0xff]
    %v2786 = vld [vmem:[#allocation19 + $0x150] sm:$0xff]
    %v2787 = vld [vmem:[#allocation19 + $0x158] sm:$0xff]
    %v2788 = vld [vmem:[#allocation19 + $0x160] sm:$0xff]
    %v2789 = vld [vmem:[#allocation19 + $0x168] sm:$0xff]
    %v2790 = vld [vmem:[#allocation19 + $0x170] sm:$0xff]
    %v2791 = vld [vmem:[#allocation19 + $0x178] sm:$0xff]
    %v2792 = vld [vmem:[#allocation19 + $0x180] sm:$0xff]
    %v2793 = vld [vmem:[#allocation19 + $0x188] sm:$0xff]
    %v2794 = vpack.c.bf16 %v2746, %v2744
    %v2795 = vpack.c.bf16 %v2747, %v2745
    %v2796 = vpack.c.bf16 %v2750, %v2748
    %v2797 = vpack.c.bf16 %v2751, %v2749
    %v2798 = vpack.c.bf16 %v2754, %v2752
    %v2799 = vpack.c.bf16 %v2755, %v2753
    %v2800 = vpack.c.bf16 %v2758, %v2756
    %v2801 = vpack.c.bf16 %v2759, %v2757
    %v2802 = vpack.c.bf16 %v2762, %v2760
    %v2803 = vpack.c.bf16 %v2763, %v2761
    %v2804 = vpack.c.bf16 %v2766, %v2764
    %v2805 = vpack.c.bf16 %v2767, %v2765
    %v2806 = vpack.c.bf16 %v2770, %v2768
    %v2807 = vpack.c.bf16 %v2771, %v2769
    %v2808 = vpack.c.bf16 %v2774, %v2772
    %v2809 = vpack.c.bf16 %v2775, %v2773
    %v2810 = vpack.c.bf16 %v2778, %v2776
    %v2811 = vpack.c.bf16 %v2779, %v2777
    %v2812 = vpack.c.bf16 %v2782, %v2780
    %v2813 = vpack.c.bf16 %v2783, %v2781
    %v2814 = vpack.c.bf16 %v2786, %v2784
    %v2815 = vpack.c.bf16 %v2787, %v2785
    %v2816 = vpack.c.bf16 %v2790, %v2788
    %v2817 = vpack.c.bf16 %v2791, %v2789
    %v2818 = vpack.c.bf16 %v2792, %v2792
    %v2819 = vpack.c.bf16 %v2793, %v2793
    %v2820 = vld [vmem:[#allocation14] sm:$0xff]
    %v2821 = vld [vmem:[#allocation14 + $0x8] sm:$0xff]
    %v2822 = vld [vmem:[#allocation14 + $0x10] sm:$0xff]
    %v2823 = vld [vmem:[#allocation14 + $0x18] sm:$0xff]
    %v2824 = vld [vmem:[#allocation14 + $0x20] sm:$0xff]
    %v2825 = vld [vmem:[#allocation14 + $0x28] sm:$0xff]
    %v2826 = vld [vmem:[#allocation14 + $0x30] sm:$0xff]
    %v2827 = vld [vmem:[#allocation14 + $0x38] sm:$0xff]
    %v2828 = vld [vmem:[#allocation14 + $0x40] sm:$0xff]
    %v2829 = vld [vmem:[#allocation14 + $0x48] sm:$0xff]
    %v2830 = vld [vmem:[#allocation14 + $0x50] sm:$0xff]
    %v2831 = vld [vmem:[#allocation14 + $0x58] sm:$0xff]
    %v2832 = vld [vmem:[#allocation14 + $0x60] sm:$0xff]
    %v2833 = vld [vmem:[#allocation14 + $0x68] sm:$0xff]
    %v2834 = vld [vmem:[#allocation14 + $0x70] sm:$0xff]
    %v2835 = vld [vmem:[#allocation14 + $0x78] sm:$0xff]
    %v2836 = vld [vmem:[#allocation14 + $0x80] sm:$0xff]
    %v2837 = vld [vmem:[#allocation14 + $0x88] sm:$0xff]
    %v2838 = vld [vmem:[#allocation14 + $0x90] sm:$0xff]
    %v2839 = vld [vmem:[#allocation14 + $0x98] sm:$0xff]
    %v2840 = vld [vmem:[#allocation14 + $0xa0] sm:$0xff]
    %v2841 = vld [vmem:[#allocation14 + $0xa8] sm:$0xff]
    %v2842 = vld [vmem:[#allocation14 + $0xb0] sm:$0xff]
    %v2843 = vld [vmem:[#allocation14 + $0xb8] sm:$0xff]
    %v2844 = vld [vmem:[#allocation14 + $0xc0] sm:$0xff]
    %v2845 = vld [vmem:[#allocation14 + $0xc8] sm:$0xff]
    %v2846 = vld [vmem:[#allocation14 + $0xd0] sm:$0xff]
    %v2847 = vld [vmem:[#allocation14 + $0xd8] sm:$0xff]
    %v2848 = vld [vmem:[#allocation14 + $0xe0] sm:$0xff]
    %v2849 = vld [vmem:[#allocation14 + $0xe8] sm:$0xff]
    %v2850 = vld [vmem:[#allocation14 + $0xf0] sm:$0xff]
    %v2851 = vld [vmem:[#allocation14 + $0xf8] sm:$0xff]
    %v2852 = vld [vmem:[%s12] sm:$0x3]
    %v2854 = vlaneseq
    %v2855 = vshrl.u32 %v2854, 7
    %v2856 = vsub.s32 0, %v2855
    %v2857 = vrot.slane %v2852, %v2856
    %v2858 = vlaneseq
    %v2859 = vshrl.u32 %v2858, 7
    %v2860 = vsub.s32 1, %v2859
    %v2861 = vrot.slane %v2852, %v2860
    %v2896 = vunpack.c.l.b16 %v2820
    %v2897 = vunpack.c.h.b16 %v2820
    %v2898 = vunpack.c.l.b16 %v2821
    %v2899 = vunpack.c.h.b16 %v2821
    %v2900 = vunpack.c.l.b16 %v2822
    %v2901 = vunpack.c.h.b16 %v2822
    %v2902 = vunpack.c.l.b16 %v2823
    %v2903 = vunpack.c.h.b16 %v2823
    %v2904 = vunpack.c.l.b16 %v2824
    %v2905 = vunpack.c.h.b16 %v2824
    %v2906 = vunpack.c.l.b16 %v2825
    %v2907 = vunpack.c.h.b16 %v2825
    %v2908 = vunpack.c.l.b16 %v2826
    %v2909 = vunpack.c.h.b16 %v2826
    %v2910 = vunpack.c.l.b16 %v2827
    %v2911 = vunpack.c.h.b16 %v2827
    %v2912 = vunpack.c.l.b16 %v2828
    %v2913 = vunpack.c.h.b16 %v2828
    %v2914 = vunpack.c.l.b16 %v2829
    %v2915 = vunpack.c.h.b16 %v2829
    %v2916 = vunpack.c.l.b16 %v2830
    %v2917 = vunpack.c.h.b16 %v2830
    %v2918 = vunpack.c.l.b16 %v2831
    %v2919 = vunpack.c.h.b16 %v2831
    %v2920 = vunpack.c.l.b16 %v2832
    %v2921 = vunpack.c.h.b16 %v2832
    %v2922 = vunpack.c.l.b16 %v2833
    %v2923 = vunpack.c.h.b16 %v2833
    %v2924 = vunpack.c.l.b16 %v2834
    %v2925 = vunpack.c.h.b16 %v2834
    %v2926 = vunpack.c.l.b16 %v2835
    %v2927 = vunpack.c.h.b16 %v2835
    %v2928 = vunpack.c.l.b16 %v2836
    %v2929 = vunpack.c.h.b16 %v2836
    %v2930 = vunpack.c.l.b16 %v2837
    %v2931 = vunpack.c.h.b16 %v2837
    %v2932 = vunpack.c.l.b16 %v2838
    %v2933 = vunpack.c.h.b16 %v2838
    %v2934 = vunpack.c.l.b16 %v2839
    %v2935 = vunpack.c.h.b16 %v2839
    %v2936 = vunpack.c.l.b16 %v2840
    %v2937 = vunpack.c.h.b16 %v2840
    %v2938 = vunpack.c.l.b16 %v2841
    %v2939 = vunpack.c.h.b16 %v2841
    %v2940 = vunpack.c.l.b16 %v2842
    %v2941 = vunpack.c.h.b16 %v2842
    %v2942 = vunpack.c.l.b16 %v2843
    %v2943 = vunpack.c.h.b16 %v2843
    %v2944 = vunpack.c.l.b16 %v2844
    %v2945 = vunpack.c.h.b16 %v2844
    %v2946 = vunpack.c.l.b16 %v2845
    %v2947 = vunpack.c.h.b16 %v2845
    %v2948 = vunpack.c.l.b16 %v2846
    %v2949 = vunpack.c.h.b16 %v2846
    %v2950 = vunpack.c.l.b16 %v2847
    %v2951 = vunpack.c.h.b16 %v2847
    %v2952 = vunpack.c.l.b16 %v2848
    %v2953 = vunpack.c.h.b16 %v2848
    %v2954 = vunpack.c.l.b16 %v2849
    %v2955 = vunpack.c.h.b16 %v2849
    %v2956 = vunpack.c.l.b16 %v2850
    %v2957 = vunpack.c.h.b16 %v2850
    %v2958 = vunpack.c.l.b16 %v2851
    %v2959 = vunpack.c.h.b16 %v2851
    %v2960 = vpack.c.b16 %v2898, %v2896
    %v2961 = vpack.c.b16 %v2899, %v2897
    %v2962 = vpack.c.b16 %v2902, %v2900
    %v2963 = vpack.c.b16 %v2903, %v2901
    %v2964 = vpack.c.b16 %v2906, %v2904
    %v2965 = vpack.c.b16 %v2907, %v2905
    %v2966 = vpack.c.b16 %v2910, %v2908
    %v2967 = vpack.c.b16 %v2911, %v2909
    %v2968 = vpack.c.b16 %v2914, %v2912
    %v2969 = vpack.c.b16 %v2915, %v2913
    %v2970 = vpack.c.b16 %v2918, %v2916
    %v2971 = vpack.c.b16 %v2919, %v2917
    %v2972 = vpack.c.b16 %v2922, %v2920
    %v2973 = vpack.c.b16 %v2923, %v2921
    %v2974 = vpack.c.b16 %v2926, %v2924
    %v2975 = vpack.c.b16 %v2927, %v2925
    %v2976 = vpack.c.b16 %v2930, %v2928
    %v2977 = vpack.c.b16 %v2931, %v2929
    %v2978 = vpack.c.b16 %v2934, %v2932
    %v2979 = vpack.c.b16 %v2935, %v2933
    %v2980 = vpack.c.b16 %v2938, %v2936
    %v2981 = vpack.c.b16 %v2939, %v2937
    %v2982 = vpack.c.b16 %v2942, %v2940
    %v2983 = vpack.c.b16 %v2943, %v2941
    %v2984 = vpack.c.b16 %v2946, %v2944
    %v2985 = vpack.c.b16 %v2947, %v2945
    %v2986 = vpack.c.b16 %v2950, %v2948
    %v2987 = vpack.c.b16 %v2951, %v2949
    %v2988 = vpack.c.b16 %v2954, %v2952
    %v2989 = vpack.c.b16 %v2955, %v2953
    %v2990 = vpack.c.b16 %v2958, %v2956
    %v2991 = vpack.c.b16 %v2959, %v2957
    %3024 = vmatprep.subr.bf16.mxu0 %v2961
    %3025 = vmatpush1.bf16.msra.mxu0 %v2960
    %3026 = vmatprep.subr.bf16.mxu0 %v2963
    %3027 = vmatpush1.bf16.msra.mxu0 %v2962
    %3028 = vmatprep.subr.bf16.mxu0 %v2965
    %3029 = vmatpush1.bf16.msra.mxu0 %v2964
    %3030 = vmatprep.subr.bf16.mxu0 %v2967
    %3031 = vmatpush1.bf16.msra.mxu0 %v2966
    %3032 = vmatprep.subr.bf16.mxu0 %v2969
    %3033 = vmatpush1.bf16.msra.mxu0 %v2968
    %3034 = vmatprep.subr.bf16.mxu0 %v2971
    %3035 = vmatpush1.bf16.msra.mxu0 %v2970
    %3036 = vmatprep.subr.bf16.mxu0 %v2973
    %3037 = vmatpush1.bf16.msra.mxu0 %v2972
    %3038 = vmatprep.subr.bf16.mxu0 %v2975
    %3039 = vmatpush1.bf16.msra.mxu0 %v2974
    %3040 = vmatprep.subr.bf16.mxu0 %v2977
    %3041 = vmatpush1.bf16.msra.mxu0 %v2976
    %3042 = vmatprep.subr.bf16.mxu0 %v2979
    %3043 = vmatpush1.bf16.msra.mxu0 %v2978
    %3044 = vmatprep.subr.bf16.mxu0 %v2981
    %3045 = vmatpush1.bf16.msra.mxu0 %v2980
    %3046 = vmatprep.subr.bf16.mxu0 %v2983
    %3047 = vmatpush1.bf16.msra.mxu0 %v2982
    %3048 = vmatprep.subr.bf16.mxu0 %v2985
    %3049 = vmatpush1.bf16.msra.mxu0 %v2984
    %3050 = vmatprep.subr.bf16.mxu0 %v2987
    %3051 = vmatpush1.bf16.msra.mxu0 %v2986
    %3052 = vmatprep.subr.bf16.mxu0 %v2989
    %3053 = vmatpush1.bf16.msra.mxu0 %v2988
    %3054 = vmatprep.subr.bf16.mxu0 %v2991
    %3055 = vmatpush1.bf16.msra.mxu0 %v2990
    %3056 = vmatprep.mubr.bf16.mxu0 %v2795
    %3057 = vmatmul.mubr.bf16.gmra.mrb[0].mxu0 %v2794
    %v3058 = vpop.f32.mrb[0].mxu0
    %v3059 = vadd.f32 %v2857, %v3058
    %v3060 = vpop.f32.mrb[0].mxu0
    %v3061 = vadd.f32 %v2861, %v3060
    %v3062 = vpop.f32.mrb[0].mxu0
    %v3063 = vadd.f32 %v2857, %v3062
    %v3064 = vpop.f32.mrb[0].mxu0
    %v3065 = vadd.f32 %v2861, %v3064
    %3066 = vmatprep.mubr.bf16.mxu0 %v2797
    %3067 = vmatmul.mubr.bf16.gmra.mrb[0].mxu0 %v2796
    %v3068 = vpop.f32.mrb[0].mxu0
    %v3069 = vadd.f32 %v2857, %v3068
    %v3070 = vpop.f32.mrb[0].mxu0
    %v3071 = vadd.f32 %v2861, %v3070
    %v3072 = vpop.f32.mrb[0].mxu0
    %v3073 = vadd.f32 %v2857, %v3072
    %v3074 = vpop.f32.mrb[0].mxu0
    %v3075 = vadd.f32 %v2861, %v3074
    %3076 = vmatprep.mubr.bf16.mxu0 %v2799
    %3077 = vmatmul.mubr.bf16.gmra.mrb[0].mxu0 %v2798
    %v3078 = vpop.f32.mrb[0].mxu0
    %v3079 = vadd.f32 %v2857, %v3078
    %v3080 = vpop.f32.mrb[0].mxu0
    %v3081 = vadd.f32 %v2861, %v3080
    %v3082 = vpop.f32.mrb[0].mxu0
    %v3083 = vadd.f32 %v2857, %v3082
    %v3084 = vpop.f32.mrb[0].mxu0
    %v3085 = vadd.f32 %v2861, %v3084
    %3086 = vmatprep.mubr.bf16.mxu0 %v2801
    %3087 = vmatmul.mubr.bf16.gmra.mrb[0].mxu0 %v2800
    %v3088 = vpop.f32.mrb[0].mxu0
    %v3089 = vadd.f32 %v2857, %v3088
    %v3090 = vpop.f32.mrb[0].mxu0
    %v3091 = vadd.f32 %v2861, %v3090
    %v3092 = vpop.f32.mrb[0].mxu0
    %v3093 = vadd.f32 %v2857, %v3092
    %v3094 = vpop.f32.mrb[0].mxu0
    %v3095 = vadd.f32 %v2861, %v3094
    %3096 = vmatprep.mubr.bf16.mxu0 %v2803
    %3097 = vmatmul.mubr.bf16.gmra.mrb[0].mxu0 %v2802
    %v3098 = vpop.f32.mrb[0].mxu0
    %v3099 = vadd.f32 %v2857, %v3098
    %v3100 = vpop.f32.mrb[0].mxu0
    %v3101 = vadd.f32 %v2861, %v3100
    %v3102 = vpop.f32.mrb[0].mxu0
    %v3103 = vadd.f32 %v2857, %v3102
    %v3104 = vpop.f32.mrb[0].mxu0
    %v3105 = vadd.f32 %v2861, %v3104
    %3106 = vmatprep.mubr.bf16.mxu0 %v2805
    %3107 = vmatmul.mubr.bf16.gmra.mrb[0].mxu0 %v2804
    %v3108 = vpop.f32.mrb[0].mxu0
    %v3109 = vadd.f32 %v2857, %v3108
    %v3110 = vpop.f32.mrb[0].mxu0
    %v3111 = vadd.f32 %v2861, %v3110
    %v3112 = vpop.f32.mrb[0].mxu0
    %v3113 = vadd.f32 %v2857, %v3112
    %v3114 = vpop.f32.mrb[0].mxu0
    %v3115 = vadd.f32 %v2861, %v3114
    %3116 = vmatprep.mubr.bf16.mxu0 %v2807
    %3117 = vmatmul.mubr.bf16.gmra.mrb[0].mxu0 %v2806
    %v3118 = vpop.f32.mrb[0].mxu0
    %v3119 = vadd.f32 %v2857, %v3118
    %v3120 = vpop.f32.mrb[0].mxu0
    %v3121 = vadd.f32 %v2861, %v3120
    %v3122 = vpop.f32.mrb[0].mxu0
    %v3123 = vadd.f32 %v2857, %v3122
    %v3124 = vpop.f32.mrb[0].mxu0
    %v3125 = vadd.f32 %v2861, %v3124
    %3126 = vmatprep.mubr.bf16.mxu0 %v2809
    %3127 = vmatmul.mubr.bf16.gmra.mrb[0].mxu0 %v2808
    %v3128 = vpop.f32.mrb[0].mxu0
    %v3129 = vadd.f32 %v2857, %v3128
    %v3130 = vpop.f32.mrb[0].mxu0
    %v3131 = vadd.f32 %v2861, %v3130
    %v3132 = vpop.f32.mrb[0].mxu0
    %v3133 = vadd.f32 %v2857, %v3132
    %v3134 = vpop.f32.mrb[0].mxu0
    %v3135 = vadd.f32 %v2861, %v3134
    %3136 = vmatprep.mubr.bf16.mxu0 %v2811
    %3137 = vmatmul.mubr.bf16.gmra.mrb[0].mxu0 %v2810
    %v3138 = vpop.f32.mrb[0].mxu0
    %v3139 = vadd.f32 %v2857, %v3138
    %v3140 = vpop.f32.mrb[0].mxu0
    %v3141 = vadd.f32 %v2861, %v3140
    %v3142 = vpop.f32.mrb[0].mxu0
    %v3143 = vadd.f32 %v2857, %v3142
    %v3144 = vpop.f32.mrb[0].mxu0
    %v3145 = vadd.f32 %v2861, %v3144
    %3146 = vmatprep.mubr.bf16.mxu0 %v2813
    %3147 = vmatmul.mubr.bf16.gmra.mrb[0].mxu0 %v2812
    %v3148 = vpop.f32.mrb[0].mxu0
    %v3149 = vadd.f32 %v2857, %v3148
    %v3150 = vpop.f32.mrb[0].mxu0
    %v3151 = vadd.f32 %v2861, %v3150
    %v3152 = vpop.f32.mrb[0].mxu0
    %v3153 = vadd.f32 %v2857, %v3152
    %v3154 = vpop.f32.mrb[0].mxu0
    %v3155 = vadd.f32 %v2861, %v3154
    %3156 = vmatprep.mubr.bf16.mxu0 %v2815
    %3157 = vmatmul.mubr.bf16.gmra.mrb[0].mxu0 %v2814
    %v3158 = vpop.f32.mrb[0].mxu0
    %v3159 = vadd.f32 %v2857, %v3158
    %v3160 = vpop.f32.mrb[0].mxu0
    %v3161 = vadd.f32 %v2861, %v3160
    %v3162 = vpop.f32.mrb[0].mxu0
    %v3163 = vadd.f32 %v2857, %v3162
    %v3164 = vpop.f32.mrb[0].mxu0
    %v3165 = vadd.f32 %v2861, %v3164
    %3166 = vmatprep.mubr.bf16.mxu0 %v2817
    %3167 = vmatmul.mubr.bf16.gmra.mrb[0].mxu0 %v2816
    %v3168 = vpop.f32.mrb[0].mxu0
    %v3169 = vadd.f32 %v2857, %v3168
    %v3170 = vpop.f32.mrb[0].mxu0
    %v3171 = vadd.f32 %v2861, %v3170
    %v3172 = vpop.f32.mrb[0].mxu0
    %v3173 = vadd.f32 %v2857, %v3172
    %v3174 = vpop.f32.mrb[0].mxu0
    %v3175 = vadd.f32 %v2861, %v3174
    %3176 = vmatprep.mubr.bf16.mxu0 %v2819
    %3177 = vmatmul.mubr.bf16.gmra.mrb[0].mxu0 %v2818
    %v3178 = vpop.f32.mrb[0].mxu0
    %v3179 = vadd.f32 %v2857, %v3178
    %v3180 = vpop.f32.mrb[0].mxu0
    %v3181 = vadd.f32 %v2861, %v3180
    %v3182 = vpop.f32.mrb[0].mxu0
    %v3183 = vpop.f32.mrb[0].mxu0
    %3184 = vdwg.mxu0
    %v3185 = vtanh.pop %v3059
    %v3186 = vtanh.pop %v3061
    %v3187 = vtanh.pop %v3063
    %v3188 = vtanh.pop %v3065
    %v3189 = vtanh.pop %v3069
    %v3190 = vtanh.pop %v3071
    %v3191 = vtanh.pop %v3073
    %v3192 = vtanh.pop %v3075
    %v3193 = vtanh.pop %v3079
    %v3194 = vtanh.pop %v3081
    %v3195 = vtanh.pop %v3083
    %v3196 = vtanh.pop %v3085
    %v3197 = vtanh.pop %v3089
    %v3198 = vtanh.pop %v3091
    %v3199 = vtanh.pop %v3093
    %v3200 = vtanh.pop %v3095
    %v3201 = vtanh.pop %v3099
    %v3202 = vtanh.pop %v3101
    %v3203 = vtanh.pop %v3103
    %v3204 = vtanh.pop %v3105
    %v3205 = vtanh.pop %v3109
    %v3206 = vtanh.pop %v3111
    %v3207 = vtanh.pop %v3113
    %v3208 = vtanh.pop %v3115
    %v3209 = vtanh.pop %v3119
    %v3210 = vtanh.pop %v3121
    %v3211 = vtanh.pop %v3123
    %v3212 = vtanh.pop %v3125
    %v3213 = vtanh.pop %v3129
    %v3214 = vtanh.pop %v3131
    %v3215 = vtanh.pop %v3133
    %v3216 = vtanh.pop %v3135
    %v3217 = vtanh.pop %v3139
    %v3218 = vtanh.pop %v3141
    %v3219 = vtanh.pop %v3143
    %v3220 = vtanh.pop %v3145
    %v3221 = vtanh.pop %v3149
    %v3222 = vtanh.pop %v3151
    %v3223 = vtanh.pop %v3153
    %v3224 = vtanh.pop %v3155
    %v3225 = vtanh.pop %v3159
    %v3226 = vtanh.pop %v3161
    %v3227 = vtanh.pop %v3163
    %v3228 = vtanh.pop %v3165
    %v3229 = vtanh.pop %v3169
    %v3230 = vtanh.pop %v3171
    %v3231 = vtanh.pop %v3173
    %v3232 = vtanh.pop %v3175
    %v3233 = vtanh.pop %v3179
    %v3234 = vtanh.pop %v3181
    %v3235 = vpack.c.bf16 %v3187, %v3185
    %v3236 = vpack.c.bf16 %v3188, %v3186
    %v3237 = vpack.c.bf16 %v3191, %v3189
    %v3238 = vpack.c.bf16 %v3192, %v3190
    %v3239 = vpack.c.bf16 %v3195, %v3193
    %v3240 = vpack.c.bf16 %v3196, %v3194
    %v3241 = vpack.c.bf16 %v3199, %v3197
    %v3242 = vpack.c.bf16 %v3200, %v3198
    %v3243 = vpack.c.bf16 %v3203, %v3201
    %v3244 = vpack.c.bf16 %v3204, %v3202
    %v3245 = vpack.c.bf16 %v3207, %v3205
    %v3246 = vpack.c.bf16 %v3208, %v3206
    %v3247 = vpack.c.bf16 %v3211, %v3209
    %v3248 = vpack.c.bf16 %v3212, %v3210
    %v3249 = vpack.c.bf16 %v3215, %v3213
    %v3250 = vpack.c.bf16 %v3216, %v3214
    %v3251 = vpack.c.bf16 %v3219, %v3217
    %v3252 = vpack.c.bf16 %v3220, %v3218
    %v3253 = vpack.c.bf16 %v3223, %v3221
    %v3254 = vpack.c.bf16 %v3224, %v3222
    %v3255 = vpack.c.bf16 %v3227, %v3225
    %v3256 = vpack.c.bf16 %v3228, %v3226
    %v3257 = vpack.c.bf16 %v3231, %v3229
    %v3258 = vpack.c.bf16 %v3232, %v3230
    %v3259 = vpack.c.bf16 %v3233, %v3233
    %v3260 = vpack.c.bf16 %v3234, %v3234
    %v3261 = vld [vmem:[#allocation15] sm:$0xff]
    %v3262 = vld [vmem:[#allocation15 + $0x8] sm:$0xff]
    %v3263 = vld [vmem:[#allocation15 + $0x10] sm:$0xff]
    %v3264 = vld [vmem:[#allocation15 + $0x18] sm:$0xff]
    %v3265 = vld [vmem:[#allocation15 + $0x20] sm:$0xff]
    %v3266 = vld [vmem:[#allocation15 + $0x28] sm:$0xff]
    %v3267 = vld [vmem:[#allocation15 + $0x30] sm:$0xff]
    %v3268 = vld [vmem:[#allocation15 + $0x38] sm:$0xff]
    %v3269 = vld [vmem:[#allocation15 + $0x40] sm:$0xff]
    %v3270 = vld [vmem:[#allocation15 + $0x48] sm:$0xff]
    %v3271 = vld [vmem:[#allocation15 + $0x50] sm:$0xff]
    %v3272 = vld [vmem:[#allocation15 + $0x58] sm:$0xff]
    %v3273 = vld [vmem:[#allocation15 + $0x60] sm:$0xff]
    %v3274 = vld [vmem:[#allocation15 + $0x68] sm:$0xff]
    %v3275 = vld [vmem:[#allocation15 + $0x70] sm:$0xff]
    %v3276 = vld [vmem:[#allocation15 + $0x78] sm:$0xff]
    %v3277 = vld [vmem:[#allocation15 + $0x80] sm:$0xff]
    %v3278 = vld [vmem:[#allocation15 + $0x88] sm:$0xff]
    %v3279 = vld [vmem:[#allocation15 + $0x90] sm:$0xff]
    %v3280 = vld [vmem:[#allocation15 + $0x98] sm:$0xff]
    %v3281 = vld [vmem:[#allocation15 + $0xa0] sm:$0xff]
    %v3282 = vld [vmem:[#allocation15 + $0xa8] sm:$0xff]
    %v3283 = vld [vmem:[#allocation15 + $0xb0] sm:$0xff]
    %v3284 = vld [vmem:[#allocation15 + $0xb8] sm:$0xff]
    %v3285 = vld [vmem:[#allocation15 + $0xc0] sm:$0xff]
    %v3286 = vld [vmem:[#allocation15 + $0xc8] sm:$0xff]
    %v3287 = vld [vmem:[#allocation15 + $0xd0] sm:$0xff]
    %v3288 = vld [vmem:[#allocation15 + $0xd8] sm:$0xff]
    %v3289 = vld [vmem:[#allocation15 + $0xe0] sm:$0xff]
    %v3290 = vld [vmem:[#allocation15 + $0xe8] sm:$0xff]
    %v3291 = vld [vmem:[#allocation15 + $0xf0] sm:$0xff]
    %v3292 = vld [vmem:[#allocation15 + $0xf8] sm:$0xff]
    %v3293 = vld [vmem:[%s14] sm:$0x3]
    %v3295 = vlaneseq
    %v3296 = vshrl.u32 %v3295, 7
    %v3297 = vsub.s32 0, %v3296
    %v3298 = vrot.slane %v3293, %v3297
    %v3299 = vlaneseq
    %v3300 = vshrl.u32 %v3299, 7
    %v3301 = vsub.s32 1, %v3300
    %v3302 = vrot.slane %v3293, %v3301
    %v3337 = vunpack.c.l.b16 %v3261
    %v3338 = vunpack.c.h.b16 %v3261
    %v3339 = vunpack.c.l.b16 %v3262
    %v3340 = vunpack.c.h.b16 %v3262
    %v3341 = vunpack.c.l.b16 %v3263
    %v3342 = vunpack.c.h.b16 %v3263
    %v3343 = vunpack.c.l.b16 %v3264
    %v3344 = vunpack.c.h.b16 %v3264
    %v3345 = vunpack.c.l.b16 %v3265
    %v3346 = vunpack.c.h.b16 %v3265
    %v3347 = vunpack.c.l.b16 %v3266
    %v3348 = vunpack.c.h.b16 %v3266
    %v3349 = vunpack.c.l.b16 %v3267
    %v3350 = vunpack.c.h.b16 %v3267
    %v3351 = vunpack.c.l.b16 %v3268
    %v3352 = vunpack.c.h.b16 %v3268
    %v3353 = vunpack.c.l.b16 %v3269
    %v3354 = vunpack.c.h.b16 %v3269
    %v3355 = vunpack.c.l.b16 %v3270
    %v3356 = vunpack.c.h.b16 %v3270
    %v3357 = vunpack.c.l.b16 %v3271
    %v3358 = vunpack.c.h.b16 %v3271
    %v3359 = vunpack.c.l.b16 %v3272
    %v3360 = vunpack.c.h.b16 %v3272
    %v3361 = vunpack.c.l.b16 %v3273
    %v3362 = vunpack.c.h.b16 %v3273
    %v3363 = vunpack.c.l.b16 %v3274
    %v3364 = vunpack.c.h.b16 %v3274
    %v3365 = vunpack.c.l.b16 %v3275
    %v3366 = vunpack.c.h.b16 %v3275
    %v3367 = vunpack.c.l.b16 %v3276
    %v3368 = vunpack.c.h.b16 %v3276
    %v3369 = vunpack.c.l.b16 %v3277
    %v3370 = vunpack.c.h.b16 %v3277
    %v3371 = vunpack.c.l.b16 %v3278
    %v3372 = vunpack.c.h.b16 %v3278
    %v3373 = vunpack.c.l.b16 %v3279
    %v3374 = vunpack.c.h.b16 %v3279
    %v3375 = vunpack.c.l.b16 %v3280
    %v3376 = vunpack.c.h.b16 %v3280
    %v3377 = vunpack.c.l.b16 %v3281
    %v3378 = vunpack.c.h.b16 %v3281
    %v3379 = vunpack.c.l.b16 %v3282
    %v3380 = vunpack.c.h.b16 %v3282
    %v3381 = vunpack.c.l.b16 %v3283
    %v3382 = vunpack.c.h.b16 %v3283
    %v3383 = vunpack.c.l.b16 %v3284
    %v3384 = vunpack.c.h.b16 %v3284
    %v3385 = vunpack.c.l.b16 %v3285
    %v3386 = vunpack.c.h.b16 %v3285
    %v3387 = vunpack.c.l.b16 %v3286
    %v3388 = vunpack.c.h.b16 %v3286
    %v3389 = vunpack.c.l.b16 %v3287
    %v3390 = vunpack.c.h.b16 %v3287
    %v3391 = vunpack.c.l.b16 %v3288
    %v3392 = vunpack.c.h.b16 %v3288
    %v3393 = vunpack.c.l.b16 %v3289
    %v3394 = vunpack.c.h.b16 %v3289
    %v3395 = vunpack.c.l.b16 %v3290
    %v3396 = vunpack.c.h.b16 %v3290
    %v3397 = vunpack.c.l.b16 %v3291
    %v3398 = vunpack.c.h.b16 %v3291
    %v3399 = vunpack.c.l.b16 %v3292
    %v3400 = vunpack.c.h.b16 %v3292
    %v3401 = vpack.c.b16 %v3339, %v3337
    %v3402 = vpack.c.b16 %v3340, %v3338
    %v3403 = vpack.c.b16 %v3343, %v3341
    %v3404 = vpack.c.b16 %v3344, %v3342
    %v3405 = vpack.c.b16 %v3347, %v3345
    %v3406 = vpack.c.b16 %v3348, %v3346
    %v3407 = vpack.c.b16 %v3351, %v3349
    %v3408 = vpack.c.b16 %v3352, %v3350
    %v3409 = vpack.c.b16 %v3355, %v3353
    %v3410 = vpack.c.b16 %v3356, %v3354
    %v3411 = vpack.c.b16 %v3359, %v3357
    %v3412 = vpack.c.b16 %v3360, %v3358
    %v3413 = vpack.c.b16 %v3363, %v3361
    %v3414 = vpack.c.b16 %v3364, %v3362
    %v3415 = vpack.c.b16 %v3367, %v3365
    %v3416 = vpack.c.b16 %v3368, %v3366
    %v3417 = vpack.c.b16 %v3371, %v3369
    %v3418 = vpack.c.b16 %v3372, %v3370
    %v3419 = vpack.c.b16 %v3375, %v3373
    %v3420 = vpack.c.b16 %v3376, %v3374
    %v3421 = vpack.c.b16 %v3379, %v3377
    %v3422 = vpack.c.b16 %v3380, %v3378
    %v3423 = vpack.c.b16 %v3383, %v3381
    %v3424 = vpack.c.b16 %v3384, %v3382
    %v3425 = vpack.c.b16 %v3387, %v3385
    %v3426 = vpack.c.b16 %v3388, %v3386
    %v3427 = vpack.c.b16 %v3391, %v3389
    %v3428 = vpack.c.b16 %v3392, %v3390
    %v3429 = vpack.c.b16 %v3395, %v3393
    %v3430 = vpack.c.b16 %v3396, %v3394
    %v3431 = vpack.c.b16 %v3399, %v3397
    %v3432 = vpack.c.b16 %v3400, %v3398
    %3465 = vmatprep.subr.bf16.mxu0 %v3402
    %3466 = vmatpush1.bf16.msra.mxu0 %v3401
    %3467 = vmatprep.subr.bf16.mxu0 %v3404
    %3468 = vmatpush1.bf16.msra.mxu0 %v3403
    %3469 = vmatprep.subr.bf16.mxu0 %v3406
    %3470 = vmatpush1.bf16.msra.mxu0 %v3405
    %3471 = vmatprep.subr.bf16.mxu0 %v3408
    %3472 = vmatpush1.bf16.msra.mxu0 %v3407
    %3473 = vmatprep.subr.bf16.mxu0 %v3410
    %3474 = vmatpush1.bf16.msra.mxu0 %v3409
    %3475 = vmatprep.subr.bf16.mxu0 %v3412
    %3476 = vmatpush1.bf16.msra.mxu0 %v3411
    %3477 = vmatprep.subr.bf16.mxu0 %v3414
    %3478 = vmatpush1.bf16.msra.mxu0 %v3413
    %3479 = vmatprep.subr.bf16.mxu0 %v3416
    %3480 = vmatpush1.bf16.msra.mxu0 %v3415
    %3481 = vmatprep.subr.bf16.mxu0 %v3418
    %3482 = vmatpush1.bf16.msra.mxu0 %v3417
    %3483 = vmatprep.subr.bf16.mxu0 %v3420
    %3484 = vmatpush1.bf16.msra.mxu0 %v3419
    %3485 = vmatprep.subr.bf16.mxu0 %v3422
    %3486 = vmatpush1.bf16.msra.mxu0 %v3421
    %3487 = vmatprep.subr.bf16.mxu0 %v3424
    %3488 = vmatpush1.bf16.msra.mxu0 %v3423
    %3489 = vmatprep.subr.bf16.mxu0 %v3426
    %3490 = vmatpush1.bf16.msra.mxu0 %v3425
    %3491 = vmatprep.subr.bf16.mxu0 %v3428
    %3492 = vmatpush1.bf16.msra.mxu0 %v3427
    %3493 = vmatprep.subr.bf16.mxu0 %v3430
    %3494 = vmatpush1.bf16.msra.mxu0 %v3429
    %3495 = vmatprep.subr.bf16.mxu0 %v3432
    %3496 = vmatpush1.bf16.msra.mxu0 %v3431
    %3497 = vmatprep.mubr.bf16.mxu0 %v3236
    %3498 = vmatmul.mubr.bf16.gmra.mrb[0].mxu0 %v3235
    %v3499 = vpop.f32.mrb[0].mxu0
    %v3500 = vadd.f32 %v3298, %v3499
    %v3501 = vpop.f32.mrb[0].mxu0
    %v3502 = vadd.f32 %v3302, %v3501
    %v3503 = vpop.f32.mrb[0].mxu0
    %v3504 = vadd.f32 %v3298, %v3503
    %v3505 = vpop.f32.mrb[0].mxu0
    %v3506 = vadd.f32 %v3302, %v3505
    %3507 = vmatprep.mubr.bf16.mxu0 %v3238
    %3508 = vmatmul.mubr.bf16.gmra.mrb[0].mxu0 %v3237
    %v3509 = vpop.f32.mrb[0].mxu0
    %v3510 = vadd.f32 %v3298, %v3509
    %v3511 = vpop.f32.mrb[0].mxu0
    %v3512 = vadd.f32 %v3302, %v3511
    %v3513 = vpop.f32.mrb[0].mxu0
    %v3514 = vadd.f32 %v3298, %v3513
    %v3515 = vpop.f32.mrb[0].mxu0
    %v3516 = vadd.f32 %v3302, %v3515
    %3517 = vmatprep.mubr.bf16.mxu0 %v3240
    %3518 = vmatmul.mubr.bf16.gmra.mrb[0].mxu0 %v3239
    %v3519 = vpop.f32.mrb[0].mxu0
    %v3520 = vadd.f32 %v3298, %v3519
    %v3521 = vpop.f32.mrb[0].mxu0
    %v3522 = vadd.f32 %v3302, %v3521
    %v3523 = vpop.f32.mrb[0].mxu0
    %v3524 = vadd.f32 %v3298, %v3523
    %v3525 = vpop.f32.mrb[0].mxu0
    %v3526 = vadd.f32 %v3302, %v3525
    %3527 = vmatprep.mubr.bf16.mxu0 %v3242
    %3528 = vmatmul.mubr.bf16.gmra.mrb[0].mxu0 %v3241
    %v3529 = vpop.f32.mrb[0].mxu0
    %v3530 = vadd.f32 %v3298, %v3529
    %v3531 = vpop.f32.mrb[0].mxu0
    %v3532 = vadd.f32 %v3302, %v3531
    %v3533 = vpop.f32.mrb[0].mxu0
    %v3534 = vadd.f32 %v3298, %v3533
    %v3535 = vpop.f32.mrb[0].mxu0
    %v3536 = vadd.f32 %v3302, %v3535
    %3537 = vmatprep.mubr.bf16.mxu0 %v3244
    %3538 = vmatmul.mubr.bf16.gmra.mrb[0].mxu0 %v3243
    %v3539 = vpop.f32.mrb[0].mxu0
    %v3540 = vadd.f32 %v3298, %v3539
    %v3541 = vpop.f32.mrb[0].mxu0
    %v3542 = vadd.f32 %v3302, %v3541
    %v3543 = vpop.f32.mrb[0].mxu0
    %v3544 = vadd.f32 %v3298, %v3543
    %v3545 = vpop.f32.mrb[0].mxu0
    %v3546 = vadd.f32 %v3302, %v3545
    %3547 = vmatprep.mubr.bf16.mxu0 %v3246
    %3548 = vmatmul.mubr.bf16.gmra.mrb[0].mxu0 %v3245
    %v3549 = vpop.f32.mrb[0].mxu0
    %v3550 = vadd.f32 %v3298, %v3549
    %v3551 = vpop.f32.mrb[0].mxu0
    %v3552 = vadd.f32 %v3302, %v3551
    %v3553 = vpop.f32.mrb[0].mxu0
    %v3554 = vadd.f32 %v3298, %v3553
    %v3555 = vpop.f32.mrb[0].mxu0
    %v3556 = vadd.f32 %v3302, %v3555
    %3557 = vmatprep.mubr.bf16.mxu0 %v3248
    %3558 = vmatmul.mubr.bf16.gmra.mrb[0].mxu0 %v3247
    %v3559 = vpop.f32.mrb[0].mxu0
    %v3560 = vadd.f32 %v3298, %v3559
    %v3561 = vpop.f32.mrb[0].mxu0
    %v3562 = vadd.f32 %v3302, %v3561
    %v3563 = vpop.f32.mrb[0].mxu0
    %v3564 = vadd.f32 %v3298, %v3563
    %v3565 = vpop.f32.mrb[0].mxu0
    %v3566 = vadd.f32 %v3302, %v3565
    %3567 = vmatprep.mubr.bf16.mxu0 %v3250
    %3568 = vmatmul.mubr.bf16.gmra.mrb[0].mxu0 %v3249
    %v3569 = vpop.f32.mrb[0].mxu0
    %v3570 = vadd.f32 %v3298, %v3569
    %v3571 = vpop.f32.mrb[0].mxu0
    %v3572 = vadd.f32 %v3302, %v3571
    %v3573 = vpop.f32.mrb[0].mxu0
    %v3574 = vadd.f32 %v3298, %v3573
    %v3575 = vpop.f32.mrb[0].mxu0
    %v3576 = vadd.f32 %v3302, %v3575
    %3577 = vmatprep.mubr.bf16.mxu0 %v3252
    %3578 = vmatmul.mubr.bf16.gmra.mrb[0].mxu0 %v3251
    %v3579 = vpop.f32.mrb[0].mxu0
    %v3580 = vadd.f32 %v3298, %v3579
    %v3581 = vpop.f32.mrb[0].mxu0
    %v3582 = vadd.f32 %v3302, %v3581
    %v3583 = vpop.f32.mrb[0].mxu0
    %v3584 = vadd.f32 %v3298, %v3583
    %v3585 = vpop.f32.mrb[0].mxu0
    %v3586 = vadd.f32 %v3302, %v3585
    %3587 = vmatprep.mubr.bf16.mxu0 %v3254
    %3588 = vmatmul.mubr.bf16.gmra.mrb[0].mxu0 %v3253
    %v3589 = vpop.f32.mrb[0].mxu0
    %v3590 = vadd.f32 %v3298, %v3589
    %v3591 = vpop.f32.mrb[0].mxu0
    %v3592 = vadd.f32 %v3302, %v3591
    %v3593 = vpop.f32.mrb[0].mxu0
    %v3594 = vadd.f32 %v3298, %v3593
    %v3595 = vpop.f32.mrb[0].mxu0
    %v3596 = vadd.f32 %v3302, %v3595
    %3597 = vmatprep.mubr.bf16.mxu0 %v3256
    %3598 = vmatmul.mubr.bf16.gmra.mrb[0].mxu0 %v3255
    %v3599 = vpop.f32.mrb[0].mxu0
    %v3600 = vadd.f32 %v3298, %v3599
    %v3601 = vpop.f32.mrb[0].mxu0
    %v3602 = vadd.f32 %v3302, %v3601
    %v3603 = vpop.f32.mrb[0].mxu0
    %v3604 = vadd.f32 %v3298, %v3603
    %v3605 = vpop.f32.mrb[0].mxu0
    %v3606 = vadd.f32 %v3302, %v3605
    %3607 = vmatprep.mubr.bf16.mxu0 %v3258
    %3608 = vmatmul.mubr.bf16.gmra.mrb[0].mxu0 %v3257
    %v3609 = vpop.f32.mrb[0].mxu0
    %v3610 = vadd.f32 %v3298, %v3609
    %v3611 = vpop.f32.mrb[0].mxu0
    %v3612 = vadd.f32 %v3302, %v3611
    %v3613 = vpop.f32.mrb[0].mxu0
    %v3614 = vadd.f32 %v3298, %v3613
    %v3615 = vpop.f32.mrb[0].mxu0
    %v3616 = vadd.f32 %v3302, %v3615
    %3617 = vmatprep.mubr.bf16.mxu0 %v3260
    %3618 = vmatmul.mubr.bf16.gmra.mrb[0].mxu0 %v3259
    %v3619 = vpop.f32.mrb[0].mxu0
    %v3620 = vadd.f32 %v3298, %v3619
    %v3621 = vpop.f32.mrb[0].mxu0
    %v3622 = vadd.f32 %v3302, %v3621
    %v3623 = vpop.f32.mrb[0].mxu0
    %v3624 = vpop.f32.mrb[0].mxu0
    %3625 = vdwg.mxu0
    %v3626 = vtanh.pop %v3500
    %v3627 = vtanh.pop %v3502
    %v3628 = vtanh.pop %v3504
    %v3629 = vtanh.pop %v3506
    %v3630 = vtanh.pop %v3510
    %v3631 = vtanh.pop %v3512
    %v3632 = vtanh.pop %v3514
    %v3633 = vtanh.pop %v3516
    %v3634 = vtanh.pop %v3520
    %v3635 = vtanh.pop %v3522
    %v3636 = vtanh.pop %v3524
    %v3637 = vtanh.pop %v3526
    %v3638 = vtanh.pop %v3530
    %v3639 = vtanh.pop %v3532
    %v3640 = vtanh.pop %v3534
    %v3641 = vtanh.pop %v3536
    %v3642 = vtanh.pop %v3540
    %v3643 = vtanh.pop %v3542
    %v3644 = vtanh.pop %v3544
    %v3645 = vtanh.pop %v3546
    %v3646 = vtanh.pop %v3550
    %v3647 = vtanh.pop %v3552
    %v3648 = vtanh.pop %v3554
    %v3649 = vtanh.pop %v3556
    %v3650 = vtanh.pop %v3560
    %v3651 = vtanh.pop %v3562
    %v3652 = vtanh.pop %v3564
    %v3653 = vtanh.pop %v3566
    %v3654 = vtanh.pop %v3570
    %v3655 = vtanh.pop %v3572
    %v3656 = vtanh.pop %v3574
    %v3657 = vtanh.pop %v3576
    %v3658 = vtanh.pop %v3580
    %v3659 = vtanh.pop %v3582
    %v3660 = vtanh.pop %v3584
    %v3661 = vtanh.pop %v3586
    %v3662 = vtanh.pop %v3590
    %v3663 = vtanh.pop %v3592
    %v3664 = vtanh.pop %v3594
    %v3665 = vtanh.pop %v3596
    %v3666 = vtanh.pop %v3600
    %v3667 = vtanh.pop %v3602
    %v3668 = vtanh.pop %v3604
    %v3669 = vtanh.pop %v3606
    %v3670 = vtanh.pop %v3610
    %v3671 = vtanh.pop %v3612
    %v3672 = vtanh.pop %v3614
    %v3673 = vtanh.pop %v3616
    %v3674 = vtanh.pop %v3620
    %v3675 = vtanh.pop %v3622
    %v3676 = vpack.c.bf16 %v3628, %v3626
    %v3677 = vpack.c.bf16 %v3629, %v3627
    %v3678 = vpack.c.bf16 %v3632, %v3630
    %v3679 = vpack.c.bf16 %v3633, %v3631
    %v3680 = vpack.c.bf16 %v3636, %v3634
    %v3681 = vpack.c.bf16 %v3637, %v3635
    %v3682 = vpack.c.bf16 %v3640, %v3638
    %v3683 = vpack.c.bf16 %v3641, %v3639
    %v3684 = vpack.c.bf16 %v3644, %v3642
    %v3685 = vpack.c.bf16 %v3645, %v3643
    %v3686 = vpack.c.bf16 %v3648, %v3646
    %v3687 = vpack.c.bf16 %v3649, %v3647
    %v3688 = vpack.c.bf16 %v3652, %v3650
    %v3689 = vpack.c.bf16 %v3653, %v3651
    %v3690 = vpack.c.bf16 %v3656, %v3654
    %v3691 = vpack.c.bf16 %v3657, %v3655
    %v3692 = vpack.c.bf16 %v3660, %v3658
    %v3693 = vpack.c.bf16 %v3661, %v3659
    %v3694 = vpack.c.bf16 %v3664, %v3662
    %v3695 = vpack.c.bf16 %v3665, %v3663
    %v3696 = vpack.c.bf16 %v3668, %v3666
    %v3697 = vpack.c.bf16 %v3669, %v3667
    %v3698 = vpack.c.bf16 %v3672, %v3670
    %v3699 = vpack.c.bf16 %v3673, %v3671
    %v3700 = vpack.c.bf16 %v3674, %v3674
    %v3701 = vpack.c.bf16 %v3675, %v3675
    %v3702 = vld [vmem:[#allocation17] sm:$0xff]
    %v3703 = vld [vmem:[#allocation17 + $0x8] sm:$0xff]
    %v3704 = vld [vmem:[#allocation17 + $0x10] sm:$0xff]
    %v3705 = vld [vmem:[#allocation17 + $0x18] sm:$0xff]
    %v3706 = vld [vmem:[#allocation17 + $0x20] sm:$0xff]
    %v3707 = vld [vmem:[#allocation17 + $0x28] sm:$0xff]
    %v3708 = vld [vmem:[#allocation17 + $0x30] sm:$0xff]
    %v3709 = vld [vmem:[#allocation17 + $0x38] sm:$0xff]
    %v3710 = vld [vmem:[#allocation17 + $0x40] sm:$0xff]
    %v3711 = vld [vmem:[#allocation17 + $0x48] sm:$0xff]
    %v3712 = vld [vmem:[#allocation17 + $0x50] sm:$0xff]
    %v3713 = vld [vmem:[#allocation17 + $0x58] sm:$0xff]
    %v3714 = vld [vmem:[#allocation17 + $0x60] sm:$0xff]
    %v3715 = vld [vmem:[#allocation17 + $0x68] sm:$0xff]
    %v3716 = vld [vmem:[#allocation17 + $0x70] sm:$0xff]
    %v3717 = vld [vmem:[#allocation17 + $0x78] sm:$0xff]
    %v3718 = vld [vmem:[#allocation17 + $0x80] sm:$0xff]
    %v3719 = vld [vmem:[#allocation17 + $0x88] sm:$0xff]
    %v3720 = vld [vmem:[#allocation17 + $0x90] sm:$0xff]
    %v3721 = vld [vmem:[#allocation17 + $0x98] sm:$0xff]
    %v3722 = vld [vmem:[#allocation17 + $0xa0] sm:$0xff]
    %v3723 = vld [vmem:[#allocation17 + $0xa8] sm:$0xff]
    %v3724 = vld [vmem:[#allocation17 + $0xb0] sm:$0xff]
    %v3725 = vld [vmem:[#allocation17 + $0xb8] sm:$0xff]
    %v3726 = vld [vmem:[#allocation17 + $0xc0] sm:$0xff]
    %v3727 = vld [vmem:[#allocation17 + $0xc8] sm:$0xff]
    %v3728 = vld [vmem:[#allocation17 + $0xd0] sm:$0xff]
    %v3729 = vld [vmem:[#allocation17 + $0xd8] sm:$0xff]
    %v3730 = vld [vmem:[#allocation17 + $0xe0] sm:$0xff]
    %v3731 = vld [vmem:[#allocation17 + $0xe8] sm:$0xff]
    %v3732 = vld [vmem:[#allocation17 + $0xf0] sm:$0xff]
    %v3733 = vld [vmem:[#allocation17 + $0xf8] sm:$0xff]
    %v3734 = vld [vmem:[%s16] sm:$0x3]
    %v3736 = vlaneseq
    %v3737 = vshrl.u32 %v3736, 7
    %v3738 = vsub.s32 0, %v3737
    %v3739 = vrot.slane %v3734, %v3738
    %v3740 = vlaneseq
    %v3741 = vshrl.u32 %v3740, 7
    %v3742 = vsub.s32 1, %v3741
    %v3743 = vrot.slane %v3734, %v3742
    %v3778 = vunpack.c.l.b16 %v3702
    %v3779 = vunpack.c.h.b16 %v3702
    %v3780 = vunpack.c.l.b16 %v3703
    %v3781 = vunpack.c.h.b16 %v3703
    %v3782 = vunpack.c.l.b16 %v3704
    %v3783 = vunpack.c.h.b16 %v3704
    %v3784 = vunpack.c.l.b16 %v3705
    %v3785 = vunpack.c.h.b16 %v3705
    %v3786 = vunpack.c.l.b16 %v3706
    %v3787 = vunpack.c.h.b16 %v3706
    %v3788 = vunpack.c.l.b16 %v3707
    %v3789 = vunpack.c.h.b16 %v3707
    %v3790 = vunpack.c.l.b16 %v3708
    %v3791 = vunpack.c.h.b16 %v3708
    %v3792 = vunpack.c.l.b16 %v3709
    %v3793 = vunpack.c.h.b16 %v3709
    %v3794 = vunpack.c.l.b16 %v3710
    %v3795 = vunpack.c.h.b16 %v3710
    %v3796 = vunpack.c.l.b16 %v3711
    %v3797 = vunpack.c.h.b16 %v3711
    %v3798 = vunpack.c.l.b16 %v3712
    %v3799 = vunpack.c.h.b16 %v3712
    %v3800 = vunpack.c.l.b16 %v3713
    %v3801 = vunpack.c.h.b16 %v3713
    %v3802 = vunpack.c.l.b16 %v3714
    %v3803 = vunpack.c.h.b16 %v3714
    %v3804 = vunpack.c.l.b16 %v3715
    %v3805 = vunpack.c.h.b16 %v3715
    %v3806 = vunpack.c.l.b16 %v3716
    %v3807 = vunpack.c.h.b16 %v3716
    %v3808 = vunpack.c.l.b16 %v3717
    %v3809 = vunpack.c.h.b16 %v3717
    %v3810 = vunpack.c.l.b16 %v3718
    %v3811 = vunpack.c.h.b16 %v3718
    %v3812 = vunpack.c.l.b16 %v3719
    %v3813 = vunpack.c.h.b16 %v3719
    %v3814 = vunpack.c.l.b16 %v3720
    %v3815 = vunpack.c.h.b16 %v3720
    %v3816 = vunpack.c.l.b16 %v3721
    %v3817 = vunpack.c.h.b16 %v3721
    %v3818 = vunpack.c.l.b16 %v3722
    %v3819 = vunpack.c.h.b16 %v3722
    %v3820 = vunpack.c.l.b16 %v3723
    %v3821 = vunpack.c.h.b16 %v3723
    %v3822 = vunpack.c.l.b16 %v3724
    %v3823 = vunpack.c.h.b16 %v3724
    %v3824 = vunpack.c.l.b16 %v3725
    %v3825 = vunpack.c.h.b16 %v3725
    %v3826 = vunpack.c.l.b16 %v3726
    %v3827 = vunpack.c.h.b16 %v3726
    %v3828 = vunpack.c.l.b16 %v3727
    %v3829 = vunpack.c.h.b16 %v3727
    %v3830 = vunpack.c.l.b16 %v3728
    %v3831 = vunpack.c.h.b16 %v3728
    %v3832 = vunpack.c.l.b16 %v3729
    %v3833 = vunpack.c.h.b16 %v3729
    %v3834 = vunpack.c.l.b16 %v3730
    %v3835 = vunpack.c.h.b16 %v3730
    %v3836 = vunpack.c.l.b16 %v3731
    %v3837 = vunpack.c.h.b16 %v3731
    %v3838 = vunpack.c.l.b16 %v3732
    %v3839 = vunpack.c.h.b16 %v3732
    %v3840 = vunpack.c.l.b16 %v3733
    %v3841 = vunpack.c.h.b16 %v3733
    %v3842 = vpack.c.b16 %v3780, %v3778
    %v3843 = vpack.c.b16 %v3781, %v3779
    %v3844 = vpack.c.b16 %v3784, %v3782
    %v3845 = vpack.c.b16 %v3785, %v3783
    %v3846 = vpack.c.b16 %v3788, %v3786
    %v3847 = vpack.c.b16 %v3789, %v3787
    %v3848 = vpack.c.b16 %v3792, %v3790
    %v3849 = vpack.c.b16 %v3793, %v3791
    %v3850 = vpack.c.b16 %v3796, %v3794
    %v3851 = vpack.c.b16 %v3797, %v3795
    %v3852 = vpack.c.b16 %v3800, %v3798
    %v3853 = vpack.c.b16 %v3801, %v3799
    %v3854 = vpack.c.b16 %v3804, %v3802
    %v3855 = vpack.c.b16 %v3805, %v3803
    %v3856 = vpack.c.b16 %v3808, %v3806
    %v3857 = vpack.c.b16 %v3809, %v3807
    %v3858 = vpack.c.b16 %v3812, %v3810
    %v3859 = vpack.c.b16 %v3813, %v3811
    %v3860 = vpack.c.b16 %v3816, %v3814
    %v3861 = vpack.c.b16 %v3817, %v3815
    %v3862 = vpack.c.b16 %v3820, %v3818
    %v3863 = vpack.c.b16 %v3821, %v3819
    %v3864 = vpack.c.b16 %v3824, %v3822
    %v3865 = vpack.c.b16 %v3825, %v3823
    %v3866 = vpack.c.b16 %v3828, %v3826
    %v3867 = vpack.c.b16 %v3829, %v3827
    %v3868 = vpack.c.b16 %v3832, %v3830
    %v3869 = vpack.c.b16 %v3833, %v3831
    %v3870 = vpack.c.b16 %v3836, %v3834
    %v3871 = vpack.c.b16 %v3837, %v3835
    %v3872 = vpack.c.b16 %v3840, %v3838
    %v3873 = vpack.c.b16 %v3841, %v3839
    %3906 = vmatprep.subr.bf16.mxu0 %v3843
    %3907 = vmatpush1.bf16.msra.mxu0 %v3842
    %3908 = vmatprep.subr.bf16.mxu0 %v3845
    %3909 = vmatpush1.bf16.msra.mxu0 %v3844
    %3910 = vmatprep.subr.bf16.mxu0 %v3847
    %3911 = vmatpush1.bf16.msra.mxu0 %v3846
    %3912 = vmatprep.subr.bf16.mxu0 %v3849
    %3913 = vmatpush1.bf16.msra.mxu0 %v3848
    %3914 = vmatprep.subr.bf16.mxu0 %v3851
    %3915 = vmatpush1.bf16.msra.mxu0 %v3850
    %3916 = vmatprep.subr.bf16.mxu0 %v3853
    %3917 = vmatpush1.bf16.msra.mxu0 %v3852
    %3918 = vmatprep.subr.bf16.mxu0 %v3855
    %3919 = vmatpush1.bf16.msra.mxu0 %v3854
    %3920 = vmatprep.subr.bf16.mxu0 %v3857
    %3921 = vmatpush1.bf16.msra.mxu0 %v3856
    %3922 = vmatprep.subr.bf16.mxu0 %v3859
    %3923 = vmatpush1.bf16.msra.mxu0 %v3858
    %3924 = vmatprep.subr.bf16.mxu0 %v3861
    %3925 = vmatpush1.bf16.msra.mxu0 %v3860
    %3926 = vmatprep.subr.bf16.mxu0 %v3863
    %3927 = vmatpush1.bf16.msra.mxu0 %v3862
    %3928 = vmatprep.subr.bf16.mxu0 %v3865
    %3929 = vmatpush1.bf16.msra.mxu0 %v3864
    %3930 = vmatprep.subr.bf16.mxu0 %v3867
    %3931 = vmatpush1.bf16.msra.mxu0 %v3866
    %3932 = vmatprep.subr.bf16.mxu0 %v3869
    %3933 = vmatpush1.bf16.msra.mxu0 %v3868
    %3934 = vmatprep.subr.bf16.mxu0 %v3871
    %3935 = vmatpush1.bf16.msra.mxu0 %v3870
    %3936 = vmatprep.subr.bf16.mxu0 %v3873
    %3937 = vmatpush1.bf16.msra.mxu0 %v3872
    %3938 = vmatprep.mubr.bf16.mxu0 %v3677
    %3939 = vmatmul.mubr.bf16.gmra.mrb[0].mxu0 %v3676
    %v3940 = vpop.f32.mrb[0].mxu0
    %v3941 = vadd.f32 %v3739, %v3940
    %v3942 = vpop.f32.mrb[0].mxu0
    %v3943 = vadd.f32 %v3743, %v3942
    %v3944 = vpop.f32.mrb[0].mxu0
    %v3945 = vadd.f32 %v3739, %v3944
    %v3946 = vpop.f32.mrb[0].mxu0
    %v3947 = vadd.f32 %v3743, %v3946
    %3948 = vmatprep.mubr.bf16.mxu0 %v3679
    %3949 = vmatmul.mubr.bf16.gmra.mrb[0].mxu0 %v3678
    %v3950 = vpop.f32.mrb[0].mxu0
    %v3951 = vadd.f32 %v3739, %v3950
    %v3952 = vpop.f32.mrb[0].mxu0
    %v3953 = vadd.f32 %v3743, %v3952
    %v3954 = vpop.f32.mrb[0].mxu0
    %v3955 = vadd.f32 %v3739, %v3954
    %v3956 = vpop.f32.mrb[0].mxu0
    %v3957 = vadd.f32 %v3743, %v3956
    %3958 = vmatprep.mubr.bf16.mxu0 %v3681
    %3959 = vmatmul.mubr.bf16.gmra.mrb[0].mxu0 %v3680
    %v3960 = vpop.f32.mrb[0].mxu0
    %v3961 = vadd.f32 %v3739, %v3960
    %v3962 = vpop.f32.mrb[0].mxu0
    %v3963 = vadd.f32 %v3743, %v3962
    %v3964 = vpop.f32.mrb[0].mxu0
    %v3965 = vadd.f32 %v3739, %v3964
    %v3966 = vpop.f32.mrb[0].mxu0
    %v3967 = vadd.f32 %v3743, %v3966
    %3968 = vmatprep.mubr.bf16.mxu0 %v3683
    %3969 = vmatmul.mubr.bf16.gmra.mrb[0].mxu0 %v3682
    %v3970 = vpop.f32.mrb[0].mxu0
    %v3971 = vadd.f32 %v3739, %v3970
    %v3972 = vpop.f32.mrb[0].mxu0
    %v3973 = vadd.f32 %v3743, %v3972
    %v3974 = vpop.f32.mrb[0].mxu0
    %v3975 = vadd.f32 %v3739, %v3974
    %v3976 = vpop.f32.mrb[0].mxu0
    %v3977 = vadd.f32 %v3743, %v3976
    %3978 = vmatprep.mubr.bf16.mxu0 %v3685
    %3979 = vmatmul.mubr.bf16.gmra.mrb[0].mxu0 %v3684
    %v3980 = vpop.f32.mrb[0].mxu0
    %v3981 = vadd.f32 %v3739, %v3980
    %v3982 = vpop.f32.mrb[0].mxu0
    %v3983 = vadd.f32 %v3743, %v3982
    %v3984 = vpop.f32.mrb[0].mxu0
    %v3985 = vadd.f32 %v3739, %v3984
    %v3986 = vpop.f32.mrb[0].mxu0
    %v3987 = vadd.f32 %v3743, %v3986
    %3988 = vmatprep.mubr.bf16.mxu0 %v3687
    %3989 = vmatmul.mubr.bf16.gmra.mrb[0].mxu0 %v3686
    %v3990 = vpop.f32.mrb[0].mxu0
    %v3991 = vadd.f32 %v3739, %v3990
    %v3992 = vpop.f32.mrb[0].mxu0
    %v3993 = vadd.f32 %v3743, %v3992
    %v3994 = vpop.f32.mrb[0].mxu0
    %v3995 = vadd.f32 %v3739, %v3994
    %v3996 = vpop.f32.mrb[0].mxu0
    %v3997 = vadd.f32 %v3743, %v3996
    %3998 = vmatprep.mubr.bf16.mxu0 %v3689
    %3999 = vmatmul.mubr.bf16.gmra.mrb[0].mxu0 %v3688
    %v4000 = vpop.f32.mrb[0].mxu0
    %v4001 = vadd.f32 %v3739, %v4000
    %v4002 = vpop.f32.mrb[0].mxu0
    %v4003 = vadd.f32 %v3743, %v4002
    %v4004 = vpop.f32.mrb[0].mxu0
    %v4005 = vadd.f32 %v3739, %v4004
    %v4006 = vpop.f32.mrb[0].mxu0
    %v4007 = vadd.f32 %v3743, %v4006
    %4008 = vmatprep.mubr.bf16.mxu0 %v3691
    %4009 = vmatmul.mubr.bf16.gmra.mrb[0].mxu0 %v3690
    %v4010 = vpop.f32.mrb[0].mxu0
    %v4011 = vadd.f32 %v3739, %v4010
    %v4012 = vpop.f32.mrb[0].mxu0
    %v4013 = vadd.f32 %v3743, %v4012
    %v4014 = vpop.f32.mrb[0].mxu0
    %v4015 = vadd.f32 %v3739, %v4014
    %v4016 = vpop.f32.mrb[0].mxu0
    %v4017 = vadd.f32 %v3743, %v4016
    %4018 = vmatprep.mubr.bf16.mxu0 %v3693
    %4019 = vmatmul.mubr.bf16.gmra.mrb[0].mxu0 %v3692
    %v4020 = vpop.f32.mrb[0].mxu0
    %v4021 = vadd.f32 %v3739, %v4020
    %v4022 = vpop.f32.mrb[0].mxu0
    %v4023 = vadd.f32 %v3743, %v4022
    %v4024 = vpop.f32.mrb[0].mxu0
    %v4025 = vadd.f32 %v3739, %v4024
    %v4026 = vpop.f32.mrb[0].mxu0
    %v4027 = vadd.f32 %v3743, %v4026
    %4028 = vmatprep.mubr.bf16.mxu0 %v3695
    %4029 = vmatmul.mubr.bf16.gmra.mrb[0].mxu0 %v3694
    %v4030 = vpop.f32.mrb[0].mxu0
    %v4031 = vadd.f32 %v3739, %v4030
    %v4032 = vpop.f32.mrb[0].mxu0
    %v4033 = vadd.f32 %v3743, %v4032
    %v4034 = vpop.f32.mrb[0].mxu0
    %v4035 = vadd.f32 %v3739, %v4034
    %v4036 = vpop.f32.mrb[0].mxu0
    %v4037 = vadd.f32 %v3743, %v4036
    %4038 = vmatprep.mubr.bf16.mxu0 %v3697
    %4039 = vmatmul.mubr.bf16.gmra.mrb[0].mxu0 %v3696
    %v4040 = vpop.f32.mrb[0].mxu0
    %v4041 = vadd.f32 %v3739, %v4040
    %v4042 = vpop.f32.mrb[0].mxu0
    %v4043 = vadd.f32 %v3743, %v4042
    %v4044 = vpop.f32.mrb[0].mxu0
    %v4045 = vadd.f32 %v3739, %v4044
    %v4046 = vpop.f32.mrb[0].mxu0
    %v4047 = vadd.f32 %v3743, %v4046
    %4048 = vmatprep.mubr.bf16.mxu0 %v3699
    %4049 = vmatmul.mubr.bf16.gmra.mrb[0].mxu0 %v3698
    %v4050 = vpop.f32.mrb[0].mxu0
    %v4051 = vadd.f32 %v3739, %v4050
    %v4052 = vpop.f32.mrb[0].mxu0
    %v4053 = vadd.f32 %v3743, %v4052
    %v4054 = vpop.f32.mrb[0].mxu0
    %v4055 = vadd.f32 %v3739, %v4054
    %v4056 = vpop.f32.mrb[0].mxu0
    %v4057 = vadd.f32 %v3743, %v4056
    %4058 = vmatprep.mubr.bf16.mxu0 %v3701
    %4059 = vmatmul.mubr.bf16.gmra.mrb[0].mxu0 %v3700
    %v4060 = vpop.f32.mrb[0].mxu0
    %v4061 = vadd.f32 %v3739, %v4060
    %v4062 = vpop.f32.mrb[0].mxu0
    %v4063 = vadd.f32 %v3743, %v4062
    %v4064 = vpop.f32.mrb[0].mxu0
    %v4065 = vpop.f32.mrb[0].mxu0
    %4066 = vdwg.mxu0
    %4067 = vst [vmem:[#allocation18] sm:$0xff] %v3941
    %4068 = vst [vmem:[#allocation18 + $0x8] sm:$0xff] %v3943
    %4069 = vst [vmem:[#allocation18 + $0x10] sm:$0xff] %v3945
    %4070 = vst [vmem:[#allocation18 + $0x18] sm:$0xff] %v3947
    %4071 = vst [vmem:[#allocation18 + $0x20] sm:$0xff] %v3951
    %4072 = vst [vmem:[#allocation18 + $0x28] sm:$0xff] %v3953
    %4073 = vst [vmem:[#allocation18 + $0x30] sm:$0xff] %v3955
    %4074 = vst [vmem:[#allocation18 + $0x38] sm:$0xff] %v3957
    %4075 = vst [vmem:[#allocation18 + $0x40] sm:$0xff] %v3961
    %4076 = vst [vmem:[#allocation18 + $0x48] sm:$0xff] %v3963
    %4077 = vst [vmem:[#allocation18 + $0x50] sm:$0xff] %v3965
    %4078 = vst [vmem:[#allocation18 + $0x58] sm:$0xff] %v3967
    %4079 = vst [vmem:[#allocation18 + $0x60] sm:$0xff] %v3971
    %4080 = vst [vmem:[#allocation18 + $0x68] sm:$0xff] %v3973
    %4081 = vst [vmem:[#allocation18 + $0x70] sm:$0xff] %v3975
    %4082 = vst [vmem:[#allocation18 + $0x78] sm:$0xff] %v3977
    %4083 = vst [vmem:[#allocation18 + $0x80] sm:$0xff] %v3981
    %4084 = vst [vmem:[#allocation18 + $0x88] sm:$0xff] %v3983
    %4085 = vst [vmem:[#allocation18 + $0x90] sm:$0xff] %v3985
    %4086 = vst [vmem:[#allocation18 + $0x98] sm:$0xff] %v3987
    %4087 = vst [vmem:[#allocation18 + $0xa0] sm:$0xff] %v3991
    %4088 = vst [vmem:[#allocation18 + $0xa8] sm:$0xff] %v3993
    %4089 = vst [vmem:[#allocation18 + $0xb0] sm:$0xff] %v3995
    %4090 = vst [vmem:[#allocation18 + $0xb8] sm:$0xff] %v3997
    %4091 = vst [vmem:[#allocation18 + $0xc0] sm:$0xff] %v4001
    %4092 = vst [vmem:[#allocation18 + $0xc8] sm:$0xff] %v4003
    %4093 = vst [vmem:[#allocation18 + $0xd0] sm:$0xff] %v4005
    %4094 = vst [vmem:[#allocation18 + $0xd8] sm:$0xff] %v4007
    %4095 = vst [vmem:[#allocation18 + $0xe0] sm:$0xff] %v4011
    %4096 = vst [vmem:[#allocation18 + $0xe8] sm:$0xff] %v4013
    %4097 = vst [vmem:[#allocation18 + $0xf0] sm:$0xff] %v4015
    %4098 = vst [vmem:[#allocation18 + $0xf8] sm:$0xff] %v4017
    %4099 = vst [vmem:[#allocation18 + $0x100] sm:$0xff] %v4021
    %4100 = vst [vmem:[#allocation18 + $0x108] sm:$0xff] %v4023
    %4101 = vst [vmem:[#allocation18 + $0x110] sm:$0xff] %v4025
    %4102 = vst [vmem:[#allocation18 + $0x118] sm:$0xff] %v4027
    %4103 = vst [vmem:[#allocation18 + $0x120] sm:$0xff] %v4031
    %4104 = vst [vmem:[#allocation18 + $0x128] sm:$0xff] %v4033
    %4105 = vst [vmem:[#allocation18 + $0x130] sm:$0xff] %v4035
    %4106 = vst [vmem:[#allocation18 + $0x138] sm:$0xff] %v4037
    %4107 = vst [vmem:[#allocation18 + $0x140] sm:$0xff] %v4041
    %4108 = vst [vmem:[#allocation18 + $0x148] sm:$0xff] %v4043
    %4109 = vst [vmem:[#allocation18 + $0x150] sm:$0xff] %v4045
    %4110 = vst [vmem:[#allocation18 + $0x158] sm:$0xff] %v4047
    %4111 = vst [vmem:[#allocation18 + $0x160] sm:$0xff] %v4051
    %4112 = vst [vmem:[#allocation18 + $0x168] sm:$0xff] %v4053
    %4113 = vst [vmem:[#allocation18 + $0x170] sm:$0xff] %v4055
    %4114 = vst [vmem:[#allocation18 + $0x178] sm:$0xff] %v4057
    %4115 = vst [vmem:[#allocation18 + $0x180] sm:$0xff] %v4061
    %4116 = vst [vmem:[#allocation18 + $0x188] sm:$0xff] %v4063
    // Predicated region
    $region110: #{tpu_custom_call.1} parent=1 // pred_check
      _
    $region111: #{tpu_custom_call.1} parent=1 // pred_check_branch
      %4118 = sbr.rel (0) target = $region113
    $region112: #{tpu_custom_call.1} parent=1 // pred_region
      %s4120 = ssub.s32 6400, 6400
      %4121 = vsyncadd [#allocation5], %s4120
      %s4122 = sshll.u32 [#allocation18], 4
      %s4123 = int_to_ptr.vmem [resolvable:$true] %s4122
      %4128 = dma.vmem_to_hbm [thread:$0]  %s4123, 6400, %s18, [#allocation5], 256, 256, 16
    $region113: #{tpu_custom_call.1} parent=1 // pred_fallthru
      _
    // Predicated region
    $region114: #{tpu_custom_call.1} parent=1 // pred_check
      _
    $region115: #{tpu_custom_call.1} parent=1 // pred_check_branch
      %4130 = sbr.rel (0) target = $region117
    $region116: #{tpu_custom_call.1} parent=1 // pred_region
      %s4132 = ssub.s32 6400, 6400
      %4133 = vsyncadd [#allocation20], %s4132
      %s4134 = sshll.u32 [#allocation19], 4
      %s4135 = int_to_ptr.vmem [resolvable:$true] %s4134
      %4140 = dma.vmem_to_hbm [thread:$0]  %s4135, 6400, %s19, [#allocation20], 256, 256, 16
    $region117: #{tpu_custom_call.1} parent=1 // pred_fallthru
      _
    // Predicated region
    $region118: #{tpu_custom_call.1} parent=1 // pred_check
      _
    $region119: #{tpu_custom_call.1} parent=1 // pred_check_branch
      %4142 = sbr.rel (0) target = $region121
    $region120: #{tpu_custom_call.1} parent=1 // pred_region
      %4143 = dma.done [#allocation5], 6400
    $region121: #{tpu_custom_call.1} parent=1 // pred_fallthru
      _
    // Predicated region
    $region122: #{tpu_custom_call.1} parent=1 // pred_check
      _
    $region123: #{tpu_custom_call.1} parent=1 // pred_check_branch
      %4145 = sbr.rel (0) target = $region125
    $region124: #{tpu_custom_call.1} parent=1 // pred_region
      %4146 = dma.done [#allocation20], 6400
    $region125: #{tpu_custom_call.1} parent=1 // pred_fallthru
      _
    %4147 = vsyncpa [#allocation4], 1
    %4148 = vsyncpa [#allocation7], 1
    %4149 = vsyncpa [#allocation10], 1
    %4150 = vsyncpa [#allocation13], 1
    %4151 = vsyncpa [#allocation16], 1
    %4152 = vsyncpa [#allocation5], 1
    %4153 = vsyncpa [#allocation20], 1

</llo_original>
